<compile_context>
chip_gen: v6e
topology: v6e:2x2x1
jax: 0.10.0
libtpu: 0.0.40
codegen_flags: <defaults>
</compile_context>

<pallas_src>
import functools

import jax
import jax.numpy as jnp
from jax import lax
from jax.experimental import pallas as pl
from jax.experimental.pallas import tpu as pltpu


def _rup(x, m):
    return (x + m - 1) // m * m


def _pad_to(x, shape):
    return jnp.pad(x, [(0, s - d) for d, s in zip(x.shape, shape)])


def _lstm_block_kernel(x_ref, w_x_ref, w_h_ref, b_ref, h_out_ref,
                       xg_scr, h_scr, c_scr, *, hidden_pad, t_block):
    """One grid step = `t_block` LSTM time steps for one batch tile.

    x_ref      : (Tb, Bb, Ep)   bf16  time-major inputs for this block
    w_x_ref    : (Ep, 4Hp)      bf16  W_ih^T, per-gate padded (whole, VMEM-resident)
    w_h_ref    : (Hp, 4Hp)      bf16  W_hh^T, per-gate padded (whole, VMEM-resident)
    b_ref      : (1, 4Hp)       f32   b_ih + b_hh, per-gate padded
    h_out_ref  : (Tb, Bb, Hp)   bf16  hidden states emitted for the hoisted fc matmul
    xg_scr     : (Tb, Bb, 4Hp)  f32   block-batched input-projection pre-activations
    h_scr/c_scr: (Bb, Hp)       f32   recurrent state carried across time blocks
    """
    t_blk = pl.program_id(1)
    Hp = hidden_pad
    Tb, Bb, Ep = x_ref.shape

    @pl.when(t_blk == 0)
    def _():
        h_scr[...] = jnp.zeros_like(h_scr)
        c_scr[...] = jnp.zeros_like(c_scr)

    # ---- sequence-independent half of the gates: ONE big MXU matmul over all
    # Tb*Bb rows (full M occupancy); bias added once per block, not per step.
    x2 = x_ref[...].reshape(Tb * Bb, Ep)            # no-op reshape (Bb % 8 == 0)
    xg = jnp.dot(x2, w_x_ref[...], preferred_element_type=jnp.float32) + b_ref[...]
    xg_scr[...] = xg.reshape(Tb, Bb, 4 * Hp)

    # ---- serial recurrence: only h @ W_hh per step; h/c are f32 loop carries.
    def step(i, carry):
        h, c = carry                                # (Bb, Hp) f32
        gates = xg_scr[i] + jnp.dot(h.astype(jnp.bfloat16), w_h_ref[...],
                                    preferred_element_type=jnp.float32)
        # PyTorch gate order i, f, g, o; every slice is lane-aligned (Hp % 128 == 0)
        i_g = jax.nn.sigmoid(gates[:, 0 * Hp:1 * Hp])
        f_g = jax.nn.sigmoid(gates[:, 1 * Hp:2 * Hp])
        g_g = jnp.tanh(gates[:, 2 * Hp:3 * Hp])
        o_g = jax.nn.sigmoid(gates[:, 3 * Hp:4 * Hp])
        c_new = f_g * c + i_g * g_g
        h_new = o_g * jnp.tanh(c_new)
        h_out_ref[i] = h_new.astype(h_out_ref.dtype)
        return h_new, c_new

    h, c = lax.fori_loop(0, t_block, step, (h_scr[...], c_scr[...]), unroll=True)

    # write recurrent state back once per time block (not once per step)
    h_scr[...] = h
    c_scr[...] = c


def decoder_rnn_forward(features, captions, params, *, t_block=8, b_block=None):
    """features: (B, E) f32, captions: (B, L) int32 -> logits (B, L, V) f32."""
    embed_tbl = params["embed"]          # (V, E)
    w_ih = params["w_ih"]                # (4H, E)
    w_hh = params["w_hh"]                # (4H, H)
    b_ih = params["b_ih"]                # (4H,)
    b_hh = params["b_hh"]                # (4H,)
    fc_w = params["fc_w"]                # (V, H)
    fc_b = params["fc_b"]                # (V,)

    H = w_hh.shape[1]
    E = w_ih.shape[1]
    V = fc_w.shape[0]
    B = features.shape[0]

    # --- glue: embedding gather + concat, built directly TIME-MAJOR (no big transpose)
    cap_emb = jnp.take(embed_tbl, captions[:, :-1].T, axis=0)              # (L-1, B, E)
    x = jnp.concatenate([features[None].astype(jnp.float32), cap_emb], 0)  # (T, B, E)
    T = x.shape[0]

    # --- hardware-friendly padded sizes
    Hp = _rup(H, 128)
    Ep = _rup(E, 128)
    if b_block is None:
        # Largest sublane-aligned batch tile covering B, capped at the 128-row MXU
        # tile.  (On v6e/v7x Bb=256 also works when B and VMEM allow; on v7x keep
        # Bp // Bb >= 2 when B is large enough so the 'parallel' batch axis really
        # splits across the 2 TensorCores.)
        Bb = min(_rup(B, 8), 128)
    else:
        Bb = b_block
    Bp = _rup(max(B, Bb), Bb)
    Tb = min(t_block, T)
    Tp = _rup(T, Tb)

    x_p = _pad_to(x, (Tp, Bp, Ep)).astype(jnp.bfloat16)

    # --- per-gate-padded, pre-transposed gate weights (separate x / h halves,
    # so the kernel never materializes concat([x_t, h]))
    w_ih_p = _pad_to(w_ih.reshape(4, H, E), (4, Hp, Ep))
    w_hh_p = _pad_to(w_hh.reshape(4, H, H), (4, Hp, Hp))
    w_x = jnp.transpose(w_ih_p, (2, 0, 1)).reshape(Ep, 4 * Hp).astype(jnp.bfloat16)
    w_h = jnp.transpose(w_hh_p, (2, 0, 1)).reshape(Hp, 4 * Hp).astype(jnp.bfloat16)
    bias = _pad_to((b_ih + b_hh).reshape(4, H), (4, Hp))
    bias = bias.reshape(1, 4 * Hp).astype(jnp.float32)

    kernel = functools.partial(_lstm_block_kernel, hidden_pad=Hp, t_block=Tb)

    # Grid-invariant operands: whole-array VMEM residents (single-buffered; no
    # 2x pipeline copies of the weights eating VMEM).
    vmem_whole = pl.BlockSpec(memory_space=pltpu.MemorySpace.VMEM)

    # Recurrent Pallas kernel: emits hidden states; fc is hoisted out.
    h_slab = pl.pallas_call(
        kernel,
        out_shape=jax.ShapeDtypeStruct((Tp, Bp, Hp), jnp.bfloat16),
        grid_spec=pltpu.PrefetchScalarGridSpec(
            num_scalar_prefetch=0,
            grid=(Bp // Bb, Tp // Tb),
            in_specs=[
                pl.BlockSpec((Tb, Bb, Ep), lambda b, t: (t, b, 0)),   # x block
                vmem_whole,                                           # W_x (Ep, 4Hp)
                vmem_whole,                                           # W_h (Hp, 4Hp)
                vmem_whole,                                           # bias (1, 4Hp)
            ],
            out_specs=pl.BlockSpec((Tb, Bb, Hp), lambda b, t: (t, b, 0)),  # h block
            scratch_shapes=[
                pltpu.VMEM((Tb, Bb, 4 * Hp), jnp.float32),  # block-batched x-projection
                pltpu.VMEM((Bb, Hp), jnp.float32),          # h state (f32)
                pltpu.VMEM((Bb, Hp), jnp.float32),          # c state (f32)
            ],
        ),
        compiler_params=pltpu.CompilerParams(
            # batch tiles independent (v7x 2-core split); time must stay sequential
            dimension_semantics=("parallel", "arbitrary"),
            # raise v5e's 16 MiB default scoped VMEM; stays under v7x's 64 MiB physical
            vmem_limit_bytes=48 * 1024 * 1024,
        ),
    )(x_p, w_x, w_h, bias)

    # --- hoisted vocab projection: transpose the SMALL (T, B, Hp) hidden slab
    # (not the huge (B, T, V) logits) and emit logits batch-first in one matmul.
    fc_w_p = _pad_to(fc_w, (V, Hp)).astype(jnp.bfloat16)
    h_bt = jnp.transpose(h_slab[:T, :B, :], (1, 0, 2))            # (B, T, Hp)
    logits = jnp.einsum('bth,vh->btv', h_bt, fc_w_p,
                        preferred_element_type=jnp.float32)
    return logits + fc_b[None, None, :]


def _reference_forward(features, captions, params):
    """Pure-JAX f32 reference matching torch.nn.LSTM(batch_first=True) + Linear."""
    embed_tbl = params["embed"]
    w_ih, w_hh = params["w_ih"], params["w_hh"]
    b_ih, b_hh = params["b_ih"], params["b_hh"]
    fc_w, fc_b = params["fc_w"], params["fc_b"]
    H = w_hh.shape[1]

    cap_emb = jnp.take(embed_tbl, captions[:, :-1], axis=0)
    x = jnp.concatenate([features[:, None, :], cap_emb], 1)   # (B, T, E)
    B, T, _ = x.shape

    h = jnp.zeros((B, H), jnp.float32)
    c = jnp.zeros((B, H), jnp.float32)
    outs = []
    for t in range(T):
        gates = x[:, t, :] @ w_ih.T + b_ih + h @ w_hh.T + b_hh
        i_g = jax.nn.sigmoid(gates[:, 0 * H:1 * H])
        f_g = jax.nn.sigmoid(gates[:, 1 * H:2 * H])
        g_g = jnp.tanh(gates[:, 2 * H:3 * H])
        o_g = jax.nn.sigmoid(gates[:, 3 * H:4 * H])
        c = f_g * c + i_g * g_g
        h = o_g * jnp.tanh(c)
        outs.append(h @ fc_w.T + fc_b)
    return jnp.stack(outs, axis=1)                              # (B, T, V)


def init_params(key, embed_size, hidden_size, vocab_size):
    ks = jax.random.split(key, 7)
    u = lambda k, shape, s=0.1: jax.random.uniform(k, shape, jnp.float32, -s, s)
    return {
        "embed": u(ks[0], (vocab_size, embed_size)),
        "w_ih": u(ks[1], (4 * hidden_size, embed_size)),
        "w_hh": u(ks[2], (4 * hidden_size, hidden_size)),
        "b_ih": u(ks[3], (4 * hidden_size,)),
        "b_hh": u(ks[4], (4 * hidden_size,)),
        "fc_w": u(ks[5], (vocab_size, hidden_size)),
        "fc_b": jnp.zeros((vocab_size,), jnp.float32),
    }


# TODO(synk): sample()/gsample() greedy decoding loops are not implemented; only
# the training-time forward() path is translated.

if __name__ == "__main__":
    B, E, H, V, L = 2, 32, 32, 64, 8   # batch, embed, hidden, vocab, caption len

    key = jax.random.PRNGKey(0)
    k_par, k_feat, k_cap = jax.random.split(key, 3)

    params = init_params(k_par, E, H, V)
    features = jax.random.normal(k_feat, (B, E), jnp.float32)
    captions = jax.random.randint(k_cap, (B, L), 0, V, jnp.int32)

    out = decoder_rnn_forward(features, captions, params)
    out = jax.block_until_ready(out)

    ref = _reference_forward(features, captions, params)
    assert out.shape == (B, L, V), out.shape
    # bf16 matmul inputs (f32 accumulation) vs. all-f32 reference -> loose tol.
    max_err = float(jnp.max(jnp.abs(out - ref)))
    assert max_err < 3e-2, f"mismatch vs reference: max abs err = {max_err}"

    print("KERNEL_OK")
</pallas_src>

<mosaic_0001>
module attributes {stable_mosaic.version = 11 : i64} {
  func.func @_lstm_block_kernel(%arg0: i32, %arg1: i32, %arg2: memref<8x8x128xbf16, #tpu.memory_space<vmem>>, %arg3: memref<128x512xbf16, #tpu.memory_space<vmem>>, %arg4: memref<128x512xbf16, #tpu.memory_space<vmem>>, %arg5: memref<1x512xf32, #tpu.memory_space<vmem>>, %arg6: memref<8x8x128xbf16, #tpu.memory_space<vmem>>, %arg7: memref<8x8x512xf32, #tpu.memory_space<vmem>>, %arg8: memref<8x128xf32, #tpu.memory_space<vmem>>, %arg9: memref<8x128xf32, #tpu.memory_space<vmem>>) attributes {dimension_semantics = [#tpu.dimension_semantics<parallel>, #tpu.dimension_semantics<arbitrary>], iteration_bounds = array<i64: 1, 1>, scalar_prefetch = 0 : i64, scratch_operands = 3 : i64, tpu.core_type = #tpu.core_type<tc>, window_params = [{transform_indices = @transform_0, window_bounds = array<i64: 8, 8, 128>}, {pipeline_mode = #tpu.pipeline_mode<synchronous>, transform_indices = @transform_1, window_bounds = array<i64: 128, 512>}, {pipeline_mode = #tpu.pipeline_mode<synchronous>, transform_indices = @transform_2, window_bounds = array<i64: 128, 512>}, {pipeline_mode = #tpu.pipeline_mode<synchronous>, transform_indices = @transform_3, window_bounds = array<i64: 1, 512>}, {transform_indices = @transform_4, window_bounds = array<i64: 8, 8, 128>}]} {
    %c0_i32 = arith.constant 0 : i32
    %0 = arith.cmpi eq, %arg1, %c0_i32 : i32
    %1 = arith.extui %0 : i1 to i32
    %c0_i32_0 = arith.constant 0 : i32
    %2 = arith.cmpi ne, %1, %c0_i32_0 : i32
    scf.if %2 {
      %cst_99 = arith.constant 0.000000e+00 : f32
      %312 = vector.broadcast %cst_99 : f32 to vector<8x128xf32>
      %c0_100 = arith.constant 0 : index
      %c0_101 = arith.constant 0 : index
      %313 = vector.load %arg8[%c0_100, %c0_101] : memref<8x128xf32, #tpu.memory_space<vmem>>, vector<8x128xf32>
      tpu.vector_store %arg8[%c0_100, %c0_101], %312 {strides = array<i32>} : memref<8x128xf32, #tpu.memory_space<vmem>>, vector<8x128xf32>,
      %cst_102 = arith.constant 0.000000e+00 : f32
      %314 = vector.broadcast %cst_102 : f32 to vector<8x128xf32>
      %c0_103 = arith.constant 0 : index
      %c0_104 = arith.constant 0 : index
      %315 = vector.load %arg9[%c0_103, %c0_104] : memref<8x128xf32, #tpu.memory_space<vmem>>, vector<8x128xf32>
      tpu.vector_store %arg9[%c0_103, %c0_104], %314 {strides = array<i32>} : memref<8x128xf32, #tpu.memory_space<vmem>>, vector<8x128xf32>,
    } else {
    }
    %c0 = arith.constant 0 : index
    %c0_1 = arith.constant 0 : index
    %c0_2 = arith.constant 0 : index
    %3 = vector.load %arg2[%c0, %c0_1, %c0_2] : memref<8x8x128xbf16, #tpu.memory_space<vmem>>, vector<8x8x128xbf16>
    %4 = vector.shape_cast %3 : vector<8x8x128xbf16> to vector<64x128xbf16>
    %c0_3 = arith.constant 0 : index
    %c0_4 = arith.constant 0 : index
    %5 = vector.load %arg3[%c0_3, %c0_4] : memref<128x512xbf16, #tpu.memory_space<vmem>>, vector<128x512xbf16>
    %cst = arith.constant dense<0.000000e+00> : vector<64x512xf32>
    %6 = tpu.matmul %4, %5, %cst {dimension_numbers = #tpu.dot_dimension_numbers<[1], [0], [0], [1], [0, 0, 1, 1], [], []>} : vector<64x128xbf16>, vector<128x512xbf16>, vector<64x512xf32> -> vector<64x512xf32>
    %c0_5 = arith.constant 0 : index
    %c0_6 = arith.constant 0 : index
    %7 = vector.load %arg5[%c0_5, %c0_6] : memref<1x512xf32, #tpu.memory_space<vmem>>, vector<1x512xf32>
    %8 = vector.broadcast %7 : vector<1x512xf32> to vector<64x512xf32>
    %9 = arith.addf %6, %8 : vector<64x512xf32>
    %10 = vector.shape_cast %9 : vector<64x512xf32> to vector<8x8x512xf32>
    %c0_7 = arith.constant 0 : index
    %c0_8 = arith.constant 0 : index
    %c0_9 = arith.constant 0 : index
    %11 = vector.load %arg7[%c0_7, %c0_8, %c0_9] : memref<8x8x512xf32, #tpu.memory_space<vmem>>, vector<8x8x512xf32>
    tpu.vector_store %arg7[%c0_7, %c0_8, %c0_9], %10 {strides = array<i32>} : memref<8x8x512xf32, #tpu.memory_space<vmem>>, vector<8x8x512xf32>,
    %c0_10 = arith.constant 0 : index
    %c0_11 = arith.constant 0 : index
    %12 = vector.load %arg8[%c0_10, %c0_11] : memref<8x128xf32, #tpu.memory_space<vmem>>, vector<8x128xf32>
    %c0_12 = arith.constant 0 : index
    %c0_13 = arith.constant 0 : index
    %13 = vector.load %arg9[%c0_12, %c0_13] : memref<8x128xf32, #tpu.memory_space<vmem>>, vector<8x128xf32>
    %c0_i32_14 = arith.constant 0 : i32
    %14 = arith.index_cast %c0_i32_14 : i32 to index
    %c0_15 = arith.constant 0 : index
    %c0_16 = arith.constant 0 : index
    %15 = vector.load %arg7[%14, %c0_15, %c0_16] : memref<8x8x512xf32, #tpu.memory_space<vmem>>, vector<1x8x512xf32>
    %16 = vector.shape_cast %15 : vector<1x8x512xf32> to vector<8x512xf32>
    %17 = arith.truncf %12 : vector<8x128xf32> to vector<8x128xbf16>
    %c0_17 = arith.constant 0 : index
    %c0_18 = arith.constant 0 : index
    %18 = vector.load %arg4[%c0_17, %c0_18] : memref<128x512xbf16, #tpu.memory_space<vmem>>, vector<128x512xbf16>
    %cst_19 = arith.constant dense<0.000000e+00> : vector<8x512xf32>
    %19 = tpu.matmul %17, %18, %cst_19 {dimension_numbers = #tpu.dot_dimension_numbers<[1], [0], [0], [1], [0, 0, 1, 1], [], []>} : vector<8x128xbf16>, vector<128x512xbf16>, vector<8x512xf32> -> vector<8x512xf32>
    %20 = arith.addf %16, %19 : vector<8x512xf32>
    %21 = vector.extract_strided_slice %20 {offsets = [0, 0], sizes = [8, 128], strides = [1, 1]} : vector<8x512xf32> to vector<8x128xf32>
    %22 = arith.negf %21 : vector<8x128xf32>
    %23 = math.exp %22 : vector<8x128xf32>
    %cst_20 = arith.constant 1.000000e+00 : f32
    %24 = vector.broadcast %cst_20 : f32 to vector<8x128xf32>
    %25 = arith.addf %24, %23 : vector<8x128xf32>
    %26 = arith.divf %24, %25 : vector<8x128xf32>
    %27 = vector.extract_strided_slice %20 {offsets = [0, 128], sizes = [8, 128], strides = [1, 1]} : vector<8x512xf32> to vector<8x128xf32>
    %28 = arith.negf %27 : vector<8x128xf32>
    %29 = math.exp %28 : vector<8x128xf32>
    %cst_21 = arith.constant 1.000000e+00 : f32
    %30 = vector.broadcast %cst_21 : f32 to vector<8x128xf32>
    %31 = arith.addf %30, %29 : vector<8x128xf32>
    %32 = arith.divf %30, %31 : vector<8x128xf32>
    %33 = vector.extract_strided_slice %20 {offsets = [0, 256], sizes = [8, 128], strides = [1, 1]} : vector<8x512xf32> to vector<8x128xf32>
    %34 = math.tanh %33 : vector<8x128xf32>
    %35 = vector.extract_strided_slice %20 {offsets = [0, 384], sizes = [8, 128], strides = [1, 1]} : vector<8x512xf32> to vector<8x128xf32>
    %36 = arith.negf %35 : vector<8x128xf32>
    %37 = math.exp %36 : vector<8x128xf32>
    %cst_22 = arith.constant 1.000000e+00 : f32
    %38 = vector.broadcast %cst_22 : f32 to vector<8x128xf32>
    %39 = arith.addf %38, %37 : vector<8x128xf32>
    %40 = arith.divf %38, %39 : vector<8x128xf32>
    %41 = arith.mulf %32, %13 : vector<8x128xf32>
    %42 = arith.mulf %26, %34 : vector<8x128xf32>
    %43 = arith.addf %41, %42 : vector<8x128xf32>
    %44 = math.tanh %43 : vector<8x128xf32>
    %45 = arith.mulf %40, %44 : vector<8x128xf32>
    %46 = arith.truncf %45 : vector<8x128xf32> to vector<8x128xbf16>
    %47 = arith.index_cast %c0_i32_14 : i32 to index
    %c0_23 = arith.constant 0 : index
    %c0_24 = arith.constant 0 : index
    %48 = vector.load %arg6[%47, %c0_23, %c0_24] : memref<8x8x128xbf16, #tpu.memory_space<vmem>>, vector<1x8x128xbf16>
    %49 = vector.shape_cast %48 : vector<1x8x128xbf16> to vector<8x128xbf16>
    %50 = vector.shape_cast %46 : vector<8x128xbf16> to vector<1x8x128xbf16>
    tpu.vector_store %arg6[%47, %c0_23, %c0_24], %50 {strides = array<i32>} : memref<8x8x128xbf16, #tpu.memory_space<vmem>>, vector<1x8x128xbf16>,
    %c1_i32 = arith.constant 1 : i32
    %51 = arith.index_cast %c1_i32 : i32 to index
    %c0_25 = arith.constant 0 : index
    %c0_26 = arith.constant 0 : index
    %52 = vector.load %arg7[%51, %c0_25, %c0_26] : memref<8x8x512xf32, #tpu.memory_space<vmem>>, vector<1x8x512xf32>
    %53 = vector.shape_cast %52 : vector<1x8x512xf32> to vector<8x512xf32>
    %54 = arith.truncf %45 : vector<8x128xf32> to vector<8x128xbf16>
    %c0_27 = arith.constant 0 : index
    %c0_28 = arith.constant 0 : index
    %55 = vector.load %arg4[%c0_27, %c0_28] : memref<128x512xbf16, #tpu.memory_space<vmem>>, vector<128x512xbf16>
    %cst_29 = arith.constant dense<0.000000e+00> : vector<8x512xf32>
    %56 = tpu.matmul %54, %55, %cst_29 {dimension_numbers = #tpu.dot_dimension_numbers<[1], [0], [0], [1], [0, 0, 1, 1], [], []>} : vector<8x128xbf16>, vector<128x512xbf16>, vector<8x512xf32> -> vector<8x512xf32>
    %57 = arith.addf %53, %56 : vector<8x512xf32>
    %58 = vector.extract_strided_slice %57 {offsets = [0, 0], sizes = [8, 128], strides = [1, 1]} : vector<8x512xf32> to vector<8x128xf32>
    %59 = arith.negf %58 : vector<8x128xf32>
    %60 = math.exp %59 : vector<8x128xf32>
    %cst_30 = arith.constant 1.000000e+00 : f32
    %61 = vector.broadcast %cst_30 : f32 to vector<8x128xf32>
    %62 = arith.addf %61, %60 : vector<8x128xf32>
    %63 = arith.divf %61, %62 : vector<8x128xf32>
    %64 = vector.extract_strided_slice %57 {offsets = [0, 128], sizes = [8, 128], strides = [1, 1]} : vector<8x512xf32> to vector<8x128xf32>
    %65 = arith.negf %64 : vector<8x128xf32>
    %66 = math.exp %65 : vector<8x128xf32>
    %cst_31 = arith.constant 1.000000e+00 : f32
    %67 = vector.broadcast %cst_31 : f32 to vector<8x128xf32>
    %68 = arith.addf %67, %66 : vector<8x128xf32>
    %69 = arith.divf %67, %68 : vector<8x128xf32>
    %70 = vector.extract_strided_slice %57 {offsets = [0, 256], sizes = [8, 128], strides = [1, 1]} : vector<8x512xf32> to vector<8x128xf32>
    %71 = math.tanh %70 : vector<8x128xf32>
    %72 = vector.extract_strided_slice %57 {offsets = [0, 384], sizes = [8, 128], strides = [1, 1]} : vector<8x512xf32> to vector<8x128xf32>
    %73 = arith.negf %72 : vector<8x128xf32>
    %74 = math.exp %73 : vector<8x128xf32>
    %cst_32 = arith.constant 1.000000e+00 : f32
    %75 = vector.broadcast %cst_32 : f32 to vector<8x128xf32>
    %76 = arith.addf %75, %74 : vector<8x128xf32>
    %77 = arith.divf %75, %76 : vector<8x128xf32>
    %78 = arith.mulf %69, %43 : vector<8x128xf32>
    %79 = arith.mulf %63, %71 : vector<8x128xf32>
    %80 = arith.addf %78, %79 : vector<8x128xf32>
    %81 = math.tanh %80 : vector<8x128xf32>
    %82 = arith.mulf %77, %81 : vector<8x128xf32>
    %83 = arith.truncf %82 : vector<8x128xf32> to vector<8x128xbf16>
    %84 = arith.index_cast %c1_i32 : i32 to index
    %c0_33 = arith.constant 0 : index
    %c0_34 = arith.constant 0 : index
    %85 = vector.load %arg6[%84, %c0_33, %c0_34] : memref<8x8x128xbf16, #tpu.memory_space<vmem>>, vector<1x8x128xbf16>
    %86 = vector.shape_cast %85 : vector<1x8x128xbf16> to vector<8x128xbf16>
    %87 = vector.shape_cast %83 : vector<8x128xbf16> to vector<1x8x128xbf16>
    tpu.vector_store %arg6[%84, %c0_33, %c0_34], %87 {strides = array<i32>} : memref<8x8x128xbf16, #tpu.memory_space<vmem>>, vector<1x8x128xbf16>,
    %c2_i32 = arith.constant 2 : i32
    %88 = arith.index_cast %c2_i32 : i32 to index
    %c0_35 = arith.constant 0 : index
    %c0_36 = arith.constant 0 : index
    %89 = vector.load %arg7[%88, %c0_35, %c0_36] : memref<8x8x512xf32, #tpu.memory_space<vmem>>, vector<1x8x512xf32>
    %90 = vector.shape_cast %89 : vector<1x8x512xf32> to vector<8x512xf32>
    %91 = arith.truncf %82 : vector<8x128xf32> to vector<8x128xbf16>
    %c0_37 = arith.constant 0 : index
    %c0_38 = arith.constant 0 : index
    %92 = vector.load %arg4[%c0_37, %c0_38] : memref<128x512xbf16, #tpu.memory_space<vmem>>, vector<128x512xbf16>
    %cst_39 = arith.constant dense<0.000000e+00> : vector<8x512xf32>
    %93 = tpu.matmul %91, %92, %cst_39 {dimension_numbers = #tpu.dot_dimension_numbers<[1], [0], [0], [1], [0, 0, 1, 1], [], []>} : vector<8x128xbf16>, vector<128x512xbf16>, vector<8x512xf32> -> vector<8x512xf32>
    %94 = arith.addf %90, %93 : vector<8x512xf32>
    %95 = vector.extract_strided_slice %94 {offsets = [0, 0], sizes = [8, 128], strides = [1, 1]} : vector<8x512xf32> to vector<8x128xf32>
    %96 = arith.negf %95 : vector<8x128xf32>
    %97 = math.exp %96 : vector<8x128xf32>
    %cst_40 = arith.constant 1.000000e+00 : f32
    %98 = vector.broadcast %cst_40 : f32 to vector<8x128xf32>
    %99 = arith.addf %98, %97 : vector<8x128xf32>
    %100 = arith.divf %98, %99 : vector<8x128xf32>
    %101 = vector.extract_strided_slice %94 {offsets = [0, 128], sizes = [8, 128], strides = [1, 1]} : vector<8x512xf32> to vector<8x128xf32>
    %102 = arith.negf %101 : vector<8x128xf32>
    %103 = math.exp %102 : vector<8x128xf32>
    %cst_41 = arith.constant 1.000000e+00 : f32
    %104 = vector.broadcast %cst_41 : f32 to vector<8x128xf32>
    %105 = arith.addf %104, %103 : vector<8x128xf32>
    %106 = arith.divf %104, %105 : vector<8x128xf32>
    %107 = vector.extract_strided_slice %94 {offsets = [0, 256], sizes = [8, 128], strides = [1, 1]} : vector<8x512xf32> to vector<8x128xf32>
    %108 = math.tanh %107 : vector<8x128xf32>
    %109 = vector.extract_strided_slice %94 {offsets = [0, 384], sizes = [8, 128], strides = [1, 1]} : vector<8x512xf32> to vector<8x128xf32>
    %110 = arith.negf %109 : vector<8x128xf32>
    %111 = math.exp %110 : vector<8x128xf32>
    %cst_42 = arith.constant 1.000000e+00 : f32
    %112 = vector.broadcast %cst_42 : f32 to vector<8x128xf32>
    %113 = arith.addf %112, %111 : vector<8x128xf32>
    %114 = arith.divf %112, %113 : vector<8x128xf32>
    %115 = arith.mulf %106, %80 : vector<8x128xf32>
    %116 = arith.mulf %100, %108 : vector<8x128xf32>
    %117 = arith.addf %115, %116 : vector<8x128xf32>
    %118 = math.tanh %117 : vector<8x128xf32>
    %119 = arith.mulf %114, %118 : vector<8x128xf32>
    %120 = arith.truncf %119 : vector<8x128xf32> to vector<8x128xbf16>
    %121 = arith.index_cast %c2_i32 : i32 to index
    %c0_43 = arith.constant 0 : index
    %c0_44 = arith.constant 0 : index
    %122 = vector.load %arg6[%121, %c0_43, %c0_44] : memref<8x8x128xbf16, #tpu.memory_space<vmem>>, vector<1x8x128xbf16>
    %123 = vector.shape_cast %122 : vector<1x8x128xbf16> to vector<8x128xbf16>
    %124 = vector.shape_cast %120 : vector<8x128xbf16> to vector<1x8x128xbf16>
    tpu.vector_store %arg6[%121, %c0_43, %c0_44], %124 {strides = array<i32>} : memref<8x8x128xbf16, #tpu.memory_space<vmem>>, vector<1x8x128xbf16>,
    %c3_i32 = arith.constant 3 : i32
    %125 = arith.index_cast %c3_i32 : i32 to index
    %c0_45 = arith.constant 0 : index
    %c0_46 = arith.constant 0 : index
    %126 = vector.load %arg7[%125, %c0_45, %c0_46] : memref<8x8x512xf32, #tpu.memory_space<vmem>>, vector<1x8x512xf32>
    %127 = vector.shape_cast %126 : vector<1x8x512xf32> to vector<8x512xf32>
    %128 = arith.truncf %119 : vector<8x128xf32> to vector<8x128xbf16>
    %c0_47 = arith.constant 0 : index
    %c0_48 = arith.constant 0 : index
    %129 = vector.load %arg4[%c0_47, %c0_48] : memref<128x512xbf16, #tpu.memory_space<vmem>>, vector<128x512xbf16>
    %cst_49 = arith.constant dense<0.000000e+00> : vector<8x512xf32>
    %130 = tpu.matmul %128, %129, %cst_49 {dimension_numbers = #tpu.dot_dimension_numbers<[1], [0], [0], [1], [0, 0, 1, 1], [], []>} : vector<8x128xbf16>, vector<128x512xbf16>, vector<8x512xf32> -> vector<8x512xf32>
    %131 = arith.addf %127, %130 : vector<8x512xf32>
    %132 = vector.extract_strided_slice %131 {offsets = [0, 0], sizes = [8, 128], strides = [1, 1]} : vector<8x512xf32> to vector<8x128xf32>
    %133 = arith.negf %132 : vector<8x128xf32>
    %134 = math.exp %133 : vector<8x128xf32>
    %cst_50 = arith.constant 1.000000e+00 : f32
    %135 = vector.broadcast %cst_50 : f32 to vector<8x128xf32>
    %136 = arith.addf %135, %134 : vector<8x128xf32>
    %137 = arith.divf %135, %136 : vector<8x128xf32>
    %138 = vector.extract_strided_slice %131 {offsets = [0, 128], sizes = [8, 128], strides = [1, 1]} : vector<8x512xf32> to vector<8x128xf32>
    %139 = arith.negf %138 : vector<8x128xf32>
    %140 = math.exp %139 : vector<8x128xf32>
    %cst_51 = arith.constant 1.000000e+00 : f32
    %141 = vector.broadcast %cst_51 : f32 to vector<8x128xf32>
    %142 = arith.addf %141, %140 : vector<8x128xf32>
    %143 = arith.divf %141, %142 : vector<8x128xf32>
    %144 = vector.extract_strided_slice %131 {offsets = [0, 256], sizes = [8, 128], strides = [1, 1]} : vector<8x512xf32> to vector<8x128xf32>
    %145 = math.tanh %144 : vector<8x128xf32>
    %146 = vector.extract_strided_slice %131 {offsets = [0, 384], sizes = [8, 128], strides = [1, 1]} : vector<8x512xf32> to vector<8x128xf32>
    %147 = arith.negf %146 : vector<8x128xf32>
    %148 = math.exp %147 : vector<8x128xf32>
    %cst_52 = arith.constant 1.000000e+00 : f32
    %149 = vector.broadcast %cst_52 : f32 to vector<8x128xf32>
    %150 = arith.addf %149, %148 : vector<8x128xf32>
    %151 = arith.divf %149, %150 : vector<8x128xf32>
    %152 = arith.mulf %143, %117 : vector<8x128xf32>
    %153 = arith.mulf %137, %145 : vector<8x128xf32>
    %154 = arith.addf %152, %153 : vector<8x128xf32>
    %155 = math.tanh %154 : vector<8x128xf32>
    %156 = arith.mulf %151, %155 : vector<8x128xf32>
    %157 = arith.truncf %156 : vector<8x128xf32> to vector<8x128xbf16>
    %158 = arith.index_cast %c3_i32 : i32 to index
    %c0_53 = arith.constant 0 : index
    %c0_54 = arith.constant 0 : index
    %159 = vector.load %arg6[%158, %c0_53, %c0_54] : memref<8x8x128xbf16, #tpu.memory_space<vmem>>, vector<1x8x128xbf16>
    %160 = vector.shape_cast %159 : vector<1x8x128xbf16> to vector<8x128xbf16>
    %161 = vector.shape_cast %157 : vector<8x128xbf16> to vector<1x8x128xbf16>
    tpu.vector_store %arg6[%158, %c0_53, %c0_54], %161 {strides = array<i32>} : memref<8x8x128xbf16, #tpu.memory_space<vmem>>, vector<1x8x128xbf16>,
    %c4_i32 = arith.constant 4 : i32
    %162 = arith.index_cast %c4_i32 : i32 to index
    %c0_55 = arith.constant 0 : index
    %c0_56 = arith.constant 0 : index
    %163 = vector.load %arg7[%162, %c0_55, %c0_56] : memref<8x8x512xf32, #tpu.memory_space<vmem>>, vector<1x8x512xf32>
    %164 = vector.shape_cast %163 : vector<1x8x512xf32> to vector<8x512xf32>
    %165 = arith.truncf %156 : vector<8x128xf32> to vector<8x128xbf16>
    %c0_57 = arith.constant 0 : index
    %c0_58 = arith.constant 0 : index
    %166 = vector.load %arg4[%c0_57, %c0_58] : memref<128x512xbf16, #tpu.memory_space<vmem>>, vector<128x512xbf16>
    %cst_59 = arith.constant dense<0.000000e+00> : vector<8x512xf32>
    %167 = tpu.matmul %165, %166, %cst_59 {dimension_numbers = #tpu.dot_dimension_numbers<[1], [0], [0], [1], [0, 0, 1, 1], [], []>} : vector<8x128xbf16>, vector<128x512xbf16>, vector<8x512xf32> -> vector<8x512xf32>
    %168 = arith.addf %164, %167 : vector<8x512xf32>
    %169 = vector.extract_strided_slice %168 {offsets = [0, 0], sizes = [8, 128], strides = [1, 1]} : vector<8x512xf32> to vector<8x128xf32>
    %170 = arith.negf %169 : vector<8x128xf32>
    %171 = math.exp %170 : vector<8x128xf32>
    %cst_60 = arith.constant 1.000000e+00 : f32
    %172 = vector.broadcast %cst_60 : f32 to vector<8x128xf32>
    %173 = arith.addf %172, %171 : vector<8x128xf32>
    %174 = arith.divf %172, %173 : vector<8x128xf32>
    %175 = vector.extract_strided_slice %168 {offsets = [0, 128], sizes = [8, 128], strides = [1, 1]} : vector<8x512xf32> to vector<8x128xf32>
    %176 = arith.negf %175 : vector<8x128xf32>
    %177 = math.exp %176 : vector<8x128xf32>
    %cst_61 = arith.constant 1.000000e+00 : f32
    %178 = vector.broadcast %cst_61 : f32 to vector<8x128xf32>
    %179 = arith.addf %178, %177 : vector<8x128xf32>
    %180 = arith.divf %178, %179 : vector<8x128xf32>
    %181 = vector.extract_strided_slice %168 {offsets = [0, 256], sizes = [8, 128], strides = [1, 1]} : vector<8x512xf32> to vector<8x128xf32>
    %182 = math.tanh %181 : vector<8x128xf32>
    %183 = vector.extract_strided_slice %168 {offsets = [0, 384], sizes = [8, 128], strides = [1, 1]} : vector<8x512xf32> to vector<8x128xf32>
    %184 = arith.negf %183 : vector<8x128xf32>
    %185 = math.exp %184 : vector<8x128xf32>
    %cst_62 = arith.constant 1.000000e+00 : f32
    %186 = vector.broadcast %cst_62 : f32 to vector<8x128xf32>
    %187 = arith.addf %186, %185 : vector<8x128xf32>
    %188 = arith.divf %186, %187 : vector<8x128xf32>
    %189 = arith.mulf %180, %154 : vector<8x128xf32>
    %190 = arith.mulf %174, %182 : vector<8x128xf32>
    %191 = arith.addf %189, %190 : vector<8x128xf32>
    %192 = math.tanh %191 : vector<8x128xf32>
    %193 = arith.mulf %188, %192 : vector<8x128xf32>
    %194 = arith.truncf %193 : vector<8x128xf32> to vector<8x128xbf16>
    %195 = arith.index_cast %c4_i32 : i32 to index
    %c0_63 = arith.constant 0 : index
    %c0_64 = arith.constant 0 : index
    %196 = vector.load %arg6[%195, %c0_63, %c0_64] : memref<8x8x128xbf16, #tpu.memory_space<vmem>>, vector<1x8x128xbf16>
    %197 = vector.shape_cast %196 : vector<1x8x128xbf16> to vector<8x128xbf16>
    %198 = vector.shape_cast %194 : vector<8x128xbf16> to vector<1x8x128xbf16>
    tpu.vector_store %arg6[%195, %c0_63, %c0_64], %198 {strides = array<i32>} : memref<8x8x128xbf16, #tpu.memory_space<vmem>>, vector<1x8x128xbf16>,
    %c5_i32 = arith.constant 5 : i32
    %199 = arith.index_cast %c5_i32 : i32 to index
    %c0_65 = arith.constant 0 : index
    %c0_66 = arith.constant 0 : index
    %200 = vector.load %arg7[%199, %c0_65, %c0_66] : memref<8x8x512xf32, #tpu.memory_space<vmem>>, vector<1x8x512xf32>
    %201 = vector.shape_cast %200 : vector<1x8x512xf32> to vector<8x512xf32>
    %202 = arith.truncf %193 : vector<8x128xf32> to vector<8x128xbf16>
    %c0_67 = arith.constant 0 : index
    %c0_68 = arith.constant 0 : index
    %203 = vector.load %arg4[%c0_67, %c0_68] : memref<128x512xbf16, #tpu.memory_space<vmem>>, vector<128x512xbf16>
    %cst_69 = arith.constant dense<0.000000e+00> : vector<8x512xf32>
    %204 = tpu.matmul %202, %203, %cst_69 {dimension_numbers = #tpu.dot_dimension_numbers<[1], [0], [0], [1], [0, 0, 1, 1], [], []>} : vector<8x128xbf16>, vector<128x512xbf16>, vector<8x512xf32> -> vector<8x512xf32>
    %205 = arith.addf %201, %204 : vector<8x512xf32>
    %206 = vector.extract_strided_slice %205 {offsets = [0, 0], sizes = [8, 128], strides = [1, 1]} : vector<8x512xf32> to vector<8x128xf32>
    %207 = arith.negf %206 : vector<8x128xf32>
    %208 = math.exp %207 : vector<8x128xf32>
    %cst_70 = arith.constant 1.000000e+00 : f32
    %209 = vector.broadcast %cst_70 : f32 to vector<8x128xf32>
    %210 = arith.addf %209, %208 : vector<8x128xf32>
    %211 = arith.divf %209, %210 : vector<8x128xf32>
    %212 = vector.extract_strided_slice %205 {offsets = [0, 128], sizes = [8, 128], strides = [1, 1]} : vector<8x512xf32> to vector<8x128xf32>
    %213 = arith.negf %212 : vector<8x128xf32>
    %214 = math.exp %213 : vector<8x128xf32>
    %cst_71 = arith.constant 1.000000e+00 : f32
    %215 = vector.broadcast %cst_71 : f32 to vector<8x128xf32>
    %216 = arith.addf %215, %214 : vector<8x128xf32>
    %217 = arith.divf %215, %216 : vector<8x128xf32>
    %218 = vector.extract_strided_slice %205 {offsets = [0, 256], sizes = [8, 128], strides = [1, 1]} : vector<8x512xf32> to vector<8x128xf32>
    %219 = math.tanh %218 : vector<8x128xf32>
    %220 = vector.extract_strided_slice %205 {offsets = [0, 384], sizes = [8, 128], strides = [1, 1]} : vector<8x512xf32> to vector<8x128xf32>
    %221 = arith.negf %220 : vector<8x128xf32>
    %222 = math.exp %221 : vector<8x128xf32>
    %cst_72 = arith.constant 1.000000e+00 : f32
    %223 = vector.broadcast %cst_72 : f32 to vector<8x128xf32>
    %224 = arith.addf %223, %222 : vector<8x128xf32>
    %225 = arith.divf %223, %224 : vector<8x128xf32>
    %226 = arith.mulf %217, %191 : vector<8x128xf32>
    %227 = arith.mulf %211, %219 : vector<8x128xf32>
    %228 = arith.addf %226, %227 : vector<8x128xf32>
    %229 = math.tanh %228 : vector<8x128xf32>
    %230 = arith.mulf %225, %229 : vector<8x128xf32>
    %231 = arith.truncf %230 : vector<8x128xf32> to vector<8x128xbf16>
    %232 = arith.index_cast %c5_i32 : i32 to index
    %c0_73 = arith.constant 0 : index
    %c0_74 = arith.constant 0 : index
    %233 = vector.load %arg6[%232, %c0_73, %c0_74] : memref<8x8x128xbf16, #tpu.memory_space<vmem>>, vector<1x8x128xbf16>
    %234 = vector.shape_cast %233 : vector<1x8x128xbf16> to vector<8x128xbf16>
    %235 = vector.shape_cast %231 : vector<8x128xbf16> to vector<1x8x128xbf16>
    tpu.vector_store %arg6[%232, %c0_73, %c0_74], %235 {strides = array<i32>} : memref<8x8x128xbf16, #tpu.memory_space<vmem>>, vector<1x8x128xbf16>,
    %c6_i32 = arith.constant 6 : i32
    %236 = arith.index_cast %c6_i32 : i32 to index
    %c0_75 = arith.constant 0 : index
    %c0_76 = arith.constant 0 : index
    %237 = vector.load %arg7[%236, %c0_75, %c0_76] : memref<8x8x512xf32, #tpu.memory_space<vmem>>, vector<1x8x512xf32>
    %238 = vector.shape_cast %237 : vector<1x8x512xf32> to vector<8x512xf32>
    %239 = arith.truncf %230 : vector<8x128xf32> to vector<8x128xbf16>
    %c0_77 = arith.constant 0 : index
    %c0_78 = arith.constant 0 : index
    %240 = vector.load %arg4[%c0_77, %c0_78] : memref<128x512xbf16, #tpu.memory_space<vmem>>, vector<128x512xbf16>
    %cst_79 = arith.constant dense<0.000000e+00> : vector<8x512xf32>
    %241 = tpu.matmul %239, %240, %cst_79 {dimension_numbers = #tpu.dot_dimension_numbers<[1], [0], [0], [1], [0, 0, 1, 1], [], []>} : vector<8x128xbf16>, vector<128x512xbf16>, vector<8x512xf32> -> vector<8x512xf32>
    %242 = arith.addf %238, %241 : vector<8x512xf32>
    %243 = vector.extract_strided_slice %242 {offsets = [0, 0], sizes = [8, 128], strides = [1, 1]} : vector<8x512xf32> to vector<8x128xf32>
    %244 = arith.negf %243 : vector<8x128xf32>
    %245 = math.exp %244 : vector<8x128xf32>
    %cst_80 = arith.constant 1.000000e+00 : f32
    %246 = vector.broadcast %cst_80 : f32 to vector<8x128xf32>
    %247 = arith.addf %246, %245 : vector<8x128xf32>
    %248 = arith.divf %246, %247 : vector<8x128xf32>
    %249 = vector.extract_strided_slice %242 {offsets = [0, 128], sizes = [8, 128], strides = [1, 1]} : vector<8x512xf32> to vector<8x128xf32>
    %250 = arith.negf %249 : vector<8x128xf32>
    %251 = math.exp %250 : vector<8x128xf32>
    %cst_81 = arith.constant 1.000000e+00 : f32
    %252 = vector.broadcast %cst_81 : f32 to vector<8x128xf32>
    %253 = arith.addf %252, %251 : vector<8x128xf32>
    %254 = arith.divf %252, %253 : vector<8x128xf32>
    %255 = vector.extract_strided_slice %242 {offsets = [0, 256], sizes = [8, 128], strides = [1, 1]} : vector<8x512xf32> to vector<8x128xf32>
    %256 = math.tanh %255 : vector<8x128xf32>
    %257 = vector.extract_strided_slice %242 {offsets = [0, 384], sizes = [8, 128], strides = [1, 1]} : vector<8x512xf32> to vector<8x128xf32>
    %258 = arith.negf %257 : vector<8x128xf32>
    %259 = math.exp %258 : vector<8x128xf32>
    %cst_82 = arith.constant 1.000000e+00 : f32
    %260 = vector.broadcast %cst_82 : f32 to vector<8x128xf32>
    %261 = arith.addf %260, %259 : vector<8x128xf32>
    %262 = arith.divf %260, %261 : vector<8x128xf32>
    %263 = arith.mulf %254, %228 : vector<8x128xf32>
    %264 = arith.mulf %248, %256 : vector<8x128xf32>
    %265 = arith.addf %263, %264 : vector<8x128xf32>
    %266 = math.tanh %265 : vector<8x128xf32>
    %267 = arith.mulf %262, %266 : vector<8x128xf32>
    %268 = arith.truncf %267 : vector<8x128xf32> to vector<8x128xbf16>
    %269 = arith.index_cast %c6_i32 : i32 to index
    %c0_83 = arith.constant 0 : index
    %c0_84 = arith.constant 0 : index
    %270 = vector.load %arg6[%269, %c0_83, %c0_84] : memref<8x8x128xbf16, #tpu.memory_space<vmem>>, vector<1x8x128xbf16>
    %271 = vector.shape_cast %270 : vector<1x8x128xbf16> to vector<8x128xbf16>
    %272 = vector.shape_cast %268 : vector<8x128xbf16> to vector<1x8x128xbf16>
    tpu.vector_store %arg6[%269, %c0_83, %c0_84], %272 {strides = array<i32>} : memref<8x8x128xbf16, #tpu.memory_space<vmem>>, vector<1x8x128xbf16>,
    %c7_i32 = arith.constant 7 : i32
    %273 = arith.index_cast %c7_i32 : i32 to index
    %c0_85 = arith.constant 0 : index
    %c0_86 = arith.constant 0 : index
    %274 = vector.load %arg7[%273, %c0_85, %c0_86] : memref<8x8x512xf32, #tpu.memory_space<vmem>>, vector<1x8x512xf32>
    %275 = vector.shape_cast %274 : vector<1x8x512xf32> to vector<8x512xf32>
    %276 = arith.truncf %267 : vector<8x128xf32> to vector<8x128xbf16>
    %c0_87 = arith.constant 0 : index
    %c0_88 = arith.constant 0 : index
    %277 = vector.load %arg4[%c0_87, %c0_88] : memref<128x512xbf16, #tpu.memory_space<vmem>>, vector<128x512xbf16>
    %cst_89 = arith.constant dense<0.000000e+00> : vector<8x512xf32>
    %278 = tpu.matmul %276, %277, %cst_89 {dimension_numbers = #tpu.dot_dimension_numbers<[1], [0], [0], [1], [0, 0, 1, 1], [], []>} : vector<8x128xbf16>, vector<128x512xbf16>, vector<8x512xf32> -> vector<8x512xf32>
    %279 = arith.addf %275, %278 : vector<8x512xf32>
    %280 = vector.extract_strided_slice %279 {offsets = [0, 0], sizes = [8, 128], strides = [1, 1]} : vector<8x512xf32> to vector<8x128xf32>
    %281 = arith.negf %280 : vector<8x128xf32>
    %282 = math.exp %281 : vector<8x128xf32>
    %cst_90 = arith.constant 1.000000e+00 : f32
    %283 = vector.broadcast %cst_90 : f32 to vector<8x128xf32>
    %284 = arith.addf %283, %282 : vector<8x128xf32>
    %285 = arith.divf %283, %284 : vector<8x128xf32>
    %286 = vector.extract_strided_slice %279 {offsets = [0, 128], sizes = [8, 128], strides = [1, 1]} : vector<8x512xf32> to vector<8x128xf32>
    %287 = arith.negf %286 : vector<8x128xf32>
    %288 = math.exp %287 : vector<8x128xf32>
    %cst_91 = arith.constant 1.000000e+00 : f32
    %289 = vector.broadcast %cst_91 : f32 to vector<8x128xf32>
    %290 = arith.addf %289, %288 : vector<8x128xf32>
    %291 = arith.divf %289, %290 : vector<8x128xf32>
    %292 = vector.extract_strided_slice %279 {offsets = [0, 256], sizes = [8, 128], strides = [1, 1]} : vector<8x512xf32> to vector<8x128xf32>
    %293 = math.tanh %292 : vector<8x128xf32>
    %294 = vector.extract_strided_slice %279 {offsets = [0, 384], sizes = [8, 128], strides = [1, 1]} : vector<8x512xf32> to vector<8x128xf32>
    %295 = arith.negf %294 : vector<8x128xf32>
    %296 = math.exp %295 : vector<8x128xf32>
    %cst_92 = arith.constant 1.000000e+00 : f32
    %297 = vector.broadcast %cst_92 : f32 to vector<8x128xf32>
    %298 = arith.addf %297, %296 : vector<8x128xf32>
    %299 = arith.divf %297, %298 : vector<8x128xf32>
    %300 = arith.mulf %291, %265 : vector<8x128xf32>
    %301 = arith.mulf %285, %293 : vector<8x128xf32>
    %302 = arith.addf %300, %301 : vector<8x128xf32>
    %303 = math.tanh %302 : vector<8x128xf32>
    %304 = arith.mulf %299, %303 : vector<8x128xf32>
    %305 = arith.truncf %304 : vector<8x128xf32> to vector<8x128xbf16>
    %306 = arith.index_cast %c7_i32 : i32 to index
    %c0_93 = arith.constant 0 : index
    %c0_94 = arith.constant 0 : index
    %307 = vector.load %arg6[%306, %c0_93, %c0_94] : memref<8x8x128xbf16, #tpu.memory_space<vmem>>, vector<1x8x128xbf16>
    %308 = vector.shape_cast %307 : vector<1x8x128xbf16> to vector<8x128xbf16>
    %309 = vector.shape_cast %305 : vector<8x128xbf16> to vector<1x8x128xbf16>
    tpu.vector_store %arg6[%306, %c0_93, %c0_94], %309 {strides = array<i32>} : memref<8x8x128xbf16, #tpu.memory_space<vmem>>, vector<1x8x128xbf16>,
    %c8_i32 = arith.constant 8 : i32
    %c0_95 = arith.constant 0 : index
    %c0_96 = arith.constant 0 : index
    %310 = vector.load %arg8[%c0_95, %c0_96] : memref<8x128xf32, #tpu.memory_space<vmem>>, vector<8x128xf32>
    tpu.vector_store %arg8[%c0_95, %c0_96], %304 {strides = array<i32>} : memref<8x128xf32, #tpu.memory_space<vmem>>, vector<8x128xf32>,
    %c0_97 = arith.constant 0 : index
    %c0_98 = arith.constant 0 : index
    %311 = vector.load %arg9[%c0_97, %c0_98] : memref<8x128xf32, #tpu.memory_space<vmem>>, vector<8x128xf32>
    tpu.vector_store %arg9[%c0_97, %c0_98], %302 {strides = array<i32>} : memref<8x128xf32, #tpu.memory_space<vmem>>, vector<8x128xf32>,
    return
  }
  func.func @transform_0(%arg0: i32, %arg1: i32) -> (i32, i32, i32) {
    %c0_i32 = arith.constant 0 : i32
    %c0_i32_0 = arith.constant 0 : i32
    return %arg1, %arg0, %c0_i32 : i32, i32, i32
  }
  func.func @transform_1(%arg0: i32, %arg1: i32) -> (i32, i32) {
    %c0_i32 = arith.constant 0 : i32
    %c0_i32_0 = arith.constant 0 : i32
    %c0_i32_1 = arith.constant 0 : i32
    return %c0_i32, %c0_i32_0 : i32, i32
  }
  func.func @transform_2(%arg0: i32, %arg1: i32) -> (i32, i32) {
    %c0_i32 = arith.constant 0 : i32
    %c0_i32_0 = arith.constant 0 : i32
    %c0_i32_1 = arith.constant 0 : i32
    return %c0_i32, %c0_i32_0 : i32, i32
  }
  func.func @transform_3(%arg0: i32, %arg1: i32) -> (i32, i32) {
    %c0_i32 = arith.constant 0 : i32
    %c0_i32_0 = arith.constant 0 : i32
    %c0_i32_1 = arith.constant 0 : i32
    return %c0_i32, %c0_i32_0 : i32, i32
  }
  func.func @transform_4(%arg0: i32, %arg1: i32) -> (i32, i32, i32) {
    %c0_i32 = arith.constant 0 : i32
    %c0_i32_0 = arith.constant 0 : i32
    return %arg1, %arg0, %c0_i32 : i32, i32, i32
  }
}

</mosaic_0001>

<llo_original>
// kernel: tpu_custom_call.1
$region0: #{tpu_custom_call.1}
  #allocation0 [shape = 'u32[]', space=smem, size = 0x4, offset = 0x4, fixed_abs, tag = 'smem constant byte address 0x4 - core index']
  #allocation1 [shape = 'u32[144,128]{1,0:T(1,128)}', space=vmem, size = 0x12000, scoped, tag = 'internal scratch']
  #allocation2 [shape = 'f32[8,8,512]{2,1,0:T(8,128)}', space=vmem, size = 0x20000, scoped, tag = 'scratch operand']
  #allocation3 [shape = 'f32[8,128]{1,0:T(8,128)}', space=vmem, size = 0x1000, scoped, tag = 'scratch operand']
  #allocation4 [shape = 'f32[8,128]{1,0:T(8,128)}', space=vmem, size = 0x1000, scoped, tag = 'scratch operand']
  %s0 = inlined_call_operand.hbm [shape: bf16[8,8,128], index: 0, kind: input, shape index: {}]
  %s1 = inlined_call_operand.hbm [shape: bf16[128,512], index: 1, kind: input, shape index: {}]
  %s2 = inlined_call_operand.hbm [shape: bf16[128,512], index: 2, kind: input, shape index: {}]
  %s3 = inlined_call_operand.vmem [shape: f32[1,512], index: 3, kind: input, shape index: {}]
  %s4 = inlined_call_operand.hbm [shape: bf16[8,8,128], index: 4, kind: output, shape index: {}]
  %s5 = sld [smem:[#allocation0]]
  $region42: #{tpu_custom_call.1} parent=0
    _
  %s7 = ssub.s32 1, %s5
  %s8 = scalar_select 0, %s7, %s5
  $region1: #{tpu_custom_call.1} parent=0
    #allocation5 [shape = 'u8[16384]{0}', space=vmem, size = 0x4000, scoped, tag = 'input window, operand 0, single buffered']
    #allocation6 [shape = 's32[1]{0}', space=sflag, size = 0x4, scoped, tag = 'scoped memory for tpu_custom_call.1']
    #allocation7 [shape = 's32[1]{0}', space=sflag, size = 0x4, scoped, tag = 'scoped memory for tpu_custom_call.1']
    #allocation8 [shape = 'u8[131072]{0}', space=vmem, size = 0x20000, scoped, tag = 'input window, operand 1, single buffered']
    #allocation9 [shape = 's32[1]{0}', space=sflag, size = 0x4, scoped, tag = 'scoped memory for tpu_custom_call.1']
    #allocation10 [shape = 'u8[131072]{0}', space=vmem, size = 0x20000, scoped, tag = 'input window, operand 2, single buffered']
    #allocation11 [shape = 'u8[16384]{0}', space=vmem, size = 0x4000, scoped, tag = 'output window, operand 0, single buffered']
    %9 = vsyncpa [#allocation6], 0
    %10 = vsyncpa [#allocation9], 0
    %11 = vsyncpa [#allocation7], 0
    // Predicated region
    $region2: #{tpu_custom_call.1} parent=1 // pred_check
      _
    $region3: #{tpu_custom_call.1} parent=1 // pred_check_branch
      %13 = sbr.rel (0) target = $region5
    $region4: #{tpu_custom_call.1} parent=1 // pred_region
      %s15 = ssub.s32 512, 512
      %16 = vsyncadd [#allocation6], %s15
      %s17 = sshll.u32 [#allocation5], 4
      %s18 = int_to_ptr.vmem [resolvable:$true] %s17
      %23 = dma.hbm_to_vmem [thread:$0]  %s0, 512, %s18, [#allocation6], 64, 64, 4
    $region5: #{tpu_custom_call.1} parent=1 // pred_fallthru
      _
    // Predicated region
    $region6: #{tpu_custom_call.1} parent=1 // pred_check
      _
    $region7: #{tpu_custom_call.1} parent=1 // pred_check_branch
      %25 = sbr.rel (0) target = $region9
    $region8: #{tpu_custom_call.1} parent=1 // pred_region
      %s27 = ssub.s32 4096, 4096
      %28 = vsyncadd [#allocation9], %s27
      %s29 = sshll.u32 [#allocation8], 4
      %s30 = int_to_ptr.vmem [resolvable:$true] %s29
      %35 = dma.hbm_to_vmem [thread:$0]  %s1, 4096, %s30, [#allocation9], 256, 256, 16
    $region9: #{tpu_custom_call.1} parent=1 // pred_fallthru
      _
    // Predicated region
    $region10: #{tpu_custom_call.1} parent=1 // pred_check
      _
    $region11: #{tpu_custom_call.1} parent=1 // pred_check_branch
      %37 = sbr.rel (0) target = $region13
    $region12: #{tpu_custom_call.1} parent=1 // pred_region
      %s39 = ssub.s32 4096, 4096
      %40 = vsyncadd [#allocation9], %s39
      %s41 = sshll.u32 [#allocation10], 4
      %s42 = int_to_ptr.vmem [resolvable:$true] %s41
      %47 = dma.hbm_to_vmem [thread:$0]  %s2, 4096, %s42, [#allocation9], 256, 256, 16
    $region13: #{tpu_custom_call.1} parent=1 // pred_fallthru
      _
    // Predicated region
    $region14: #{tpu_custom_call.1} parent=1 // pred_check
      _
    $region15: #{tpu_custom_call.1} parent=1 // pred_check_branch
      %49 = sbr.rel (0) target = $region17
    $region16: #{tpu_custom_call.1} parent=1 // pred_region
      _
    $region17: #{tpu_custom_call.1} parent=1 // pred_fallthru
      _
    // Predicated region
    $region18: #{tpu_custom_call.1} parent=1 // pred_check
      _
    $region19: #{tpu_custom_call.1} parent=1 // pred_check_branch
      %51 = sbr.rel (0) target = $region21
    $region20: #{tpu_custom_call.1} parent=1 // pred_region
      %52 = dma.done [#allocation6], 512
    $region21: #{tpu_custom_call.1} parent=1 // pred_fallthru
      _
    // Predicated region
    $region22: #{tpu_custom_call.1} parent=1 // pred_check
      _
    $region23: #{tpu_custom_call.1} parent=1 // pred_check_branch
      %54 = sbr.rel (0) target = $region25
    $region24: #{tpu_custom_call.1} parent=1 // pred_region
      %55 = dma.done [#allocation9], 4096
    $region25: #{tpu_custom_call.1} parent=1 // pred_fallthru
      _
    // Predicated region
    $region26: #{tpu_custom_call.1} parent=1 // pred_check
      _
    $region27: #{tpu_custom_call.1} parent=1 // pred_check_branch
      %57 = sbr.rel (0) target = $region29
    $region28: #{tpu_custom_call.1} parent=1 // pred_region
      %58 = dma.done [#allocation9], 4096
    $region29: #{tpu_custom_call.1} parent=1 // pred_fallthru
      _
    %p60 = scmp.eq.s32.totalorder 0, 0
    // Predicated region
    $region30: #{tpu_custom_call.1} parent=1 // pred_check
      %p61 = pneg %p60
    $region31: #{tpu_custom_call.1} parent=1 // pred_check_branch
      %63 = sbr.rel (%p61) target = $region33
    $region32: #{tpu_custom_call.1} parent=1 // pred_region
      %64 = vst [vmem:[#allocation3] sm:$0xff] 0.0
      %65 = vst [vmem:[#allocation4] sm:$0xff] 0.0
    $region33: #{tpu_custom_call.1} parent=1 // pred_fallthru
      _
    %v66 = vld [vmem:[#allocation5] sm:$0xf]
    %v67 = vld [vmem:[#allocation5 + $0x4] sm:$0xf]
    %v68 = vld [vmem:[#allocation5 + $0x8] sm:$0xf]
    %v69 = vld [vmem:[#allocation5 + $0xc] sm:$0xf]
    %v70 = vld [vmem:[#allocation5 + $0x10] sm:$0xf]
    %v71 = vld [vmem:[#allocation5 + $0x14] sm:$0xf]
    %v72 = vld [vmem:[#allocation5 + $0x18] sm:$0xf]
    %v73 = vld [vmem:[#allocation5 + $0x1c] sm:$0xf]
    %v74 = vld [vmem:[#allocation8] sm:$0xff]
    %v75 = vld [vmem:[#allocation8 + $0x8] sm:$0xff]
    %v76 = vld [vmem:[#allocation8 + $0x10] sm:$0xff]
    %v77 = vld [vmem:[#allocation8 + $0x18] sm:$0xff]
    %v78 = vld [vmem:[#allocation8 + $0x20] sm:$0xff]
    %v79 = vld [vmem:[#allocation8 + $0x28] sm:$0xff]
    %v80 = vld [vmem:[#allocation8 + $0x30] sm:$0xff]
    %v81 = vld [vmem:[#allocation8 + $0x38] sm:$0xff]
    %v82 = vld [vmem:[#allocation8 + $0x40] sm:$0xff]
    %v83 = vld [vmem:[#allocation8 + $0x48] sm:$0xff]
    %v84 = vld [vmem:[#allocation8 + $0x50] sm:$0xff]
    %v85 = vld [vmem:[#allocation8 + $0x58] sm:$0xff]
    %v86 = vld [vmem:[#allocation8 + $0x60] sm:$0xff]
    %v87 = vld [vmem:[#allocation8 + $0x68] sm:$0xff]
    %v88 = vld [vmem:[#allocation8 + $0x70] sm:$0xff]
    %v89 = vld [vmem:[#allocation8 + $0x78] sm:$0xff]
    %v90 = vld [vmem:[#allocation8 + $0x80] sm:$0xff]
    %v91 = vld [vmem:[#allocation8 + $0x88] sm:$0xff]
    %v92 = vld [vmem:[#allocation8 + $0x90] sm:$0xff]
    %v93 = vld [vmem:[#allocation8 + $0x98] sm:$0xff]
    %v94 = vld [vmem:[#allocation8 + $0xa0] sm:$0xff]
    %v95 = vld [vmem:[#allocation8 + $0xa8] sm:$0xff]
    %v96 = vld [vmem:[#allocation8 + $0xb0] sm:$0xff]
    %v97 = vld [vmem:[#allocation8 + $0xb8] sm:$0xff]
    %v98 = vld [vmem:[#allocation8 + $0xc0] sm:$0xff]
    %v99 = vld [vmem:[#allocation8 + $0xc8] sm:$0xff]
    %v100 = vld [vmem:[#allocation8 + $0xd0] sm:$0xff]
    %v101 = vld [vmem:[#allocation8 + $0xd8] sm:$0xff]
    %v102 = vld [vmem:[#allocation8 + $0xe0] sm:$0xff]
    %v103 = vld [vmem:[#allocation8 + $0xe8] sm:$0xff]
    %v104 = vld [vmem:[#allocation8 + $0xf0] sm:$0xff]
    %v105 = vld [vmem:[#allocation8 + $0xf8] sm:$0xff]
    %v106 = vld [vmem:[%s3] sm:$0xf]
    %v108 = vlaneseq
    %v109 = vshrl.u32 %v108, 7
    %v110 = vsub.s32 0, %v109
    %v111 = vrot.slane %v106, %v110
    %v112 = vlaneseq
    %v113 = vshrl.u32 %v112, 7
    %v114 = vsub.s32 1, %v113
    %v115 = vrot.slane %v106, %v114
    %v116 = vlaneseq
    %v117 = vshrl.u32 %v116, 7
    %v118 = vsub.s32 2, %v117
    %v119 = vrot.slane %v106, %v118
    %v120 = vlaneseq
    %v121 = vshrl.u32 %v120, 7
    %v122 = vsub.s32 3, %v121
    %v123 = vrot.slane %v106, %v122
    %v136 = vunpack.c.l.b16 %v66
    %v137 = vunpack.c.l.b16 %v67
    %v138 = vunpack.c.l.b16 %v68
    %v139 = vunpack.c.l.b16 %v69
    %v140 = vunpack.c.l.b16 %v70
    %v141 = vunpack.c.l.b16 %v71
    %v142 = vunpack.c.l.b16 %v72
    %v143 = vunpack.c.l.b16 %v73
    %v144 = vpack.c.b16 %v137, %v136
    %v145 = vpack.c.b16 %v139, %v138
    %v146 = vpack.c.b16 %v141, %v140
    %v147 = vpack.c.b16 %v143, %v142
    %v184 = vunpack.c.l.b16 %v74
    %v185 = vunpack.c.h.b16 %v74
    %v186 = vunpack.c.l.b16 %v75
    %v187 = vunpack.c.h.b16 %v75
    %v188 = vunpack.c.l.b16 %v76
    %v189 = vunpack.c.h.b16 %v76
    %v190 = vunpack.c.l.b16 %v77
    %v191 = vunpack.c.h.b16 %v77
    %v192 = vunpack.c.l.b16 %v78
    %v193 = vunpack.c.h.b16 %v78
    %v194 = vunpack.c.l.b16 %v79
    %v195 = vunpack.c.h.b16 %v79
    %v196 = vunpack.c.l.b16 %v80
    %v197 = vunpack.c.h.b16 %v80
    %v198 = vunpack.c.l.b16 %v81
    %v199 = vunpack.c.h.b16 %v81
    %v200 = vunpack.c.l.b16 %v82
    %v201 = vunpack.c.h.b16 %v82
    %v202 = vunpack.c.l.b16 %v83
    %v203 = vunpack.c.h.b16 %v83
    %v204 = vunpack.c.l.b16 %v84
    %v205 = vunpack.c.h.b16 %v84
    %v206 = vunpack.c.l.b16 %v85
    %v207 = vunpack.c.h.b16 %v85
    %v208 = vunpack.c.l.b16 %v86
    %v209 = vunpack.c.h.b16 %v86
    %v210 = vunpack.c.l.b16 %v87
    %v211 = vunpack.c.h.b16 %v87
    %v212 = vunpack.c.l.b16 %v88
    %v213 = vunpack.c.h.b16 %v88
    %v214 = vunpack.c.l.b16 %v89
    %v215 = vunpack.c.h.b16 %v89
    %v216 = vunpack.c.l.b16 %v90
    %v217 = vunpack.c.h.b16 %v90
    %v218 = vunpack.c.l.b16 %v91
    %v219 = vunpack.c.h.b16 %v91
    %v220 = vunpack.c.l.b16 %v92
    %v221 = vunpack.c.h.b16 %v92
    %v222 = vunpack.c.l.b16 %v93
    %v223 = vunpack.c.h.b16 %v93
    %v224 = vunpack.c.l.b16 %v94
    %v225 = vunpack.c.h.b16 %v94
    %v226 = vunpack.c.l.b16 %v95
    %v227 = vunpack.c.h.b16 %v95
    %v228 = vunpack.c.l.b16 %v96
    %v229 = vunpack.c.h.b16 %v96
    %v230 = vunpack.c.l.b16 %v97
    %v231 = vunpack.c.h.b16 %v97
    %v232 = vunpack.c.l.b16 %v98
    %v233 = vunpack.c.h.b16 %v98
    %v234 = vunpack.c.l.b16 %v99
    %v235 = vunpack.c.h.b16 %v99
    %v236 = vunpack.c.l.b16 %v100
    %v237 = vunpack.c.h.b16 %v100
    %v238 = vunpack.c.l.b16 %v101
    %v239 = vunpack.c.h.b16 %v101
    %v240 = vunpack.c.l.b16 %v102
    %v241 = vunpack.c.h.b16 %v102
    %v242 = vunpack.c.l.b16 %v103
    %v243 = vunpack.c.h.b16 %v103
    %v244 = vunpack.c.l.b16 %v104
    %v245 = vunpack.c.h.b16 %v104
    %v246 = vunpack.c.l.b16 %v105
    %v247 = vunpack.c.h.b16 %v105
    %v248 = vpack.c.b16 %v188, %v184
    %v249 = vpack.c.b16 %v189, %v185
    %v250 = vpack.c.b16 %v190, %v186
    %v251 = vpack.c.b16 %v191, %v187
    %v252 = vpack.c.b16 %v196, %v192
    %v253 = vpack.c.b16 %v197, %v193
    %v254 = vpack.c.b16 %v198, %v194
    %v255 = vpack.c.b16 %v199, %v195
    %v256 = vpack.c.b16 %v204, %v200
    %v257 = vpack.c.b16 %v205, %v201
    %v258 = vpack.c.b16 %v206, %v202
    %v259 = vpack.c.b16 %v207, %v203
    %v260 = vpack.c.b16 %v212, %v208
    %v261 = vpack.c.b16 %v213, %v209
    %v262 = vpack.c.b16 %v214, %v210
    %v263 = vpack.c.b16 %v215, %v211
    %v264 = vpack.c.b16 %v220, %v216
    %v265 = vpack.c.b16 %v221, %v217
    %v266 = vpack.c.b16 %v222, %v218
    %v267 = vpack.c.b16 %v223, %v219
    %v268 = vpack.c.b16 %v228, %v224
    %v269 = vpack.c.b16 %v229, %v225
    %v270 = vpack.c.b16 %v230, %v226
    %v271 = vpack.c.b16 %v231, %v227
    %v272 = vpack.c.b16 %v236, %v232
    %v273 = vpack.c.b16 %v237, %v233
    %v274 = vpack.c.b16 %v238, %v234
    %v275 = vpack.c.b16 %v239, %v235
    %v276 = vpack.c.b16 %v244, %v240
    %v277 = vpack.c.b16 %v245, %v241
    %v278 = vpack.c.b16 %v246, %v242
    %v279 = vpack.c.b16 %v247, %v243
    %312 = vmatprep.subr.bf16.mxu0 %v277
    %313 = vmatpush1.bf16.msra.mxu0 %v276
    %314 = vmatprep.subr.bf16.mxu0 %v273
    %315 = vmatpush1.bf16.msra.mxu0 %v272
    %316 = vmatprep.subr.bf16.mxu0 %v269
    %317 = vmatpush1.bf16.msra.mxu0 %v268
    %318 = vmatprep.subr.bf16.mxu0 %v265
    %319 = vmatpush1.bf16.msra.mxu0 %v264
    %320 = vmatprep.subr.bf16.mxu0 %v261
    %321 = vmatpush1.bf16.msra.mxu0 %v260
    %322 = vmatprep.subr.bf16.mxu0 %v257
    %323 = vmatpush1.bf16.msra.mxu0 %v256
    %324 = vmatprep.subr.bf16.mxu0 %v253
    %325 = vmatpush1.bf16.msra.mxu0 %v252
    %326 = vmatprep.subr.bf16.mxu0 %v249
    %327 = vmatpush1.bf16.msra.mxu0 %v248
    %328 = vmatprep.subr.bf16.mxu0 0
    %329 = vmatpush2.bf16.msra.mxu0 0
    %330 = vmatprep.subr.bf16.mxu0 0
    %331 = vmatpush2.bf16.msra.mxu0 0
    %332 = vmatprep.subr.bf16.mxu0 0
    %333 = vmatpush2.bf16.msra.mxu0 0
    %334 = vmatprep.subr.bf16.mxu0 0
    %335 = vmatpush2.bf16.msra.mxu0 0
    %336 = vmatprep.subr.bf16.mxu0 0
    %337 = vmatpush2.bf16.msra.mxu0 0
    %338 = vmatprep.subr.bf16.mxu0 0
    %339 = vmatpush2.bf16.msra.mxu0 0
    %340 = vmatprep.subr.bf16.mxu0 0
    %341 = vmatpush2.bf16.msra.mxu0 0
    %342 = vmatprep.subr.bf16.mxu0 0
    %343 = vmatpush2.bf16.msra.mxu0 0
    %344 = vmatprep.mubr.bf16.mxu0 0
    %345 = vmatmul.mubr.bf16.gmra.mxu0 %v144
    %v346 = vpop.f32.mrf.mxu0
    %v347 = vadd.f32 %v111, %v346
    %v348 = vpop.f32.mrf.mxu0
    %v349 = vadd.f32 %v115, %v348
    %v350 = vpop.f32.mrf.mxu0
    %v351 = vadd.f32 %v111, %v350
    %v352 = vpop.f32.mrf.mxu0
    %v353 = vadd.f32 %v115, %v352
    %354 = vmatprep.mubr.bf16.mxu0 0
    %355 = vmatmul.mubr.bf16.gmra.mxu0 %v145
    %v356 = vpop.f32.mrf.mxu0
    %v357 = vadd.f32 %v111, %v356
    %v358 = vpop.f32.mrf.mxu0
    %v359 = vadd.f32 %v115, %v358
    %v360 = vpop.f32.mrf.mxu0
    %v361 = vadd.f32 %v111, %v360
    %v362 = vpop.f32.mrf.mxu0
    %v363 = vadd.f32 %v115, %v362
    %364 = vmatprep.mubr.bf16.mxu0 0
    %365 = vmatmul.mubr.bf16.gmra.mxu0 %v146
    %v366 = vpop.f32.mrf.mxu0
    %v367 = vadd.f32 %v111, %v366
    %v368 = vpop.f32.mrf.mxu0
    %v369 = vadd.f32 %v115, %v368
    %v370 = vpop.f32.mrf.mxu0
    %v371 = vadd.f32 %v111, %v370
    %v372 = vpop.f32.mrf.mxu0
    %v373 = vadd.f32 %v115, %v372
    %374 = vmatprep.mubr.bf16.mxu0 0
    %375 = vmatmul.mubr.bf16.gmra.mxu0 %v147
    %v376 = vpop.f32.mrf.mxu0
    %v377 = vadd.f32 %v111, %v376
    %v378 = vpop.f32.mrf.mxu0
    %v379 = vadd.f32 %v115, %v378
    %v380 = vpop.f32.mrf.mxu0
    %v381 = vadd.f32 %v111, %v380
    %v382 = vpop.f32.mrf.mxu0
    %v383 = vadd.f32 %v115, %v382
    %384 = vdwg.mxu0
    %385 = vmatprep.subr.bf16.mxu0 %v279
    %386 = vmatpush1.bf16.msra.mxu0 %v278
    %387 = vmatprep.subr.bf16.mxu0 %v275
    %388 = vmatpush1.bf16.msra.mxu0 %v274
    %389 = vmatprep.subr.bf16.mxu0 %v271
    %390 = vmatpush1.bf16.msra.mxu0 %v270
    %391 = vmatprep.subr.bf16.mxu0 %v267
    %392 = vmatpush1.bf16.msra.mxu0 %v266
    %393 = vmatprep.subr.bf16.mxu0 %v263
    %394 = vmatpush1.bf16.msra.mxu0 %v262
    %395 = vmatprep.subr.bf16.mxu0 %v259
    %396 = vmatpush1.bf16.msra.mxu0 %v258
    %397 = vmatprep.subr.bf16.mxu0 %v255
    %398 = vmatpush1.bf16.msra.mxu0 %v254
    %399 = vmatprep.subr.bf16.mxu0 %v251
    %400 = vmatpush1.bf16.msra.mxu0 %v250
    %401 = vmatprep.subr.bf16.mxu0 0
    %402 = vmatpush2.bf16.msra.mxu0 0
    %403 = vmatprep.subr.bf16.mxu0 0
    %404 = vmatpush2.bf16.msra.mxu0 0
    %405 = vmatprep.subr.bf16.mxu0 0
    %406 = vmatpush2.bf16.msra.mxu0 0
    %407 = vmatprep.subr.bf16.mxu0 0
    %408 = vmatpush2.bf16.msra.mxu0 0
    %409 = vmatprep.subr.bf16.mxu0 0
    %410 = vmatpush2.bf16.msra.mxu0 0
    %411 = vmatprep.subr.bf16.mxu0 0
    %412 = vmatpush2.bf16.msra.mxu0 0
    %413 = vmatprep.subr.bf16.mxu0 0
    %414 = vmatpush2.bf16.msra.mxu0 0
    %415 = vmatprep.subr.bf16.mxu0 0
    %416 = vmatpush2.bf16.msra.mxu0 0
    %417 = vmatprep.mubr.bf16.mxu0 0
    %418 = vmatmul.mubr.bf16.gmra.mxu0 %v144
    %v419 = vpop.f32.mrf.mxu0
    %v420 = vadd.f32 %v119, %v419
    %v421 = vpop.f32.mrf.mxu0
    %v422 = vadd.f32 %v123, %v421
    %v423 = vpop.f32.mrf.mxu0
    %v424 = vadd.f32 %v119, %v423
    %v425 = vpop.f32.mrf.mxu0
    %v426 = vadd.f32 %v123, %v425
    %427 = vmatprep.mubr.bf16.mxu0 0
    %428 = vmatmul.mubr.bf16.gmra.mxu0 %v145
    %v429 = vpop.f32.mrf.mxu0
    %v430 = vadd.f32 %v119, %v429
    %v431 = vpop.f32.mrf.mxu0
    %v432 = vadd.f32 %v123, %v431
    %v433 = vpop.f32.mrf.mxu0
    %v434 = vadd.f32 %v119, %v433
    %v435 = vpop.f32.mrf.mxu0
    %v436 = vadd.f32 %v123, %v435
    %437 = vmatprep.mubr.bf16.mxu0 0
    %438 = vmatmul.mubr.bf16.gmra.mxu0 %v146
    %v439 = vpop.f32.mrf.mxu0
    %v440 = vadd.f32 %v119, %v439
    %v441 = vpop.f32.mrf.mxu0
    %v442 = vadd.f32 %v123, %v441
    %v443 = vpop.f32.mrf.mxu0
    %v444 = vadd.f32 %v119, %v443
    %v445 = vpop.f32.mrf.mxu0
    %v446 = vadd.f32 %v123, %v445
    %447 = vmatprep.mubr.bf16.mxu0 0
    %448 = vmatmul.mubr.bf16.gmra.mxu0 %v147
    %v449 = vpop.f32.mrf.mxu0
    %v450 = vadd.f32 %v119, %v449
    %v451 = vpop.f32.mrf.mxu0
    %v452 = vadd.f32 %v123, %v451
    %v453 = vpop.f32.mrf.mxu0
    %v454 = vadd.f32 %v119, %v453
    %v455 = vpop.f32.mrf.mxu0
    %v456 = vadd.f32 %v123, %v455
    %457 = vdwg.mxu0
    %458 = vst [vmem:[#allocation2] sm:$0xff] %v347
    %459 = vst [vmem:[#allocation2 + $0x8] sm:$0xff] %v349
    %460 = vst [vmem:[#allocation2 + $0x10] sm:$0xff] %v420
    %461 = vst [vmem:[#allocation2 + $0x18] sm:$0xff] %v422
    %462 = vst [vmem:[#allocation2 + $0x20] sm:$0xff] %v351
    %463 = vst [vmem:[#allocation2 + $0x28] sm:$0xff] %v353
    %464 = vst [vmem:[#allocation2 + $0x30] sm:$0xff] %v424
    %465 = vst [vmem:[#allocation2 + $0x38] sm:$0xff] %v426
    %466 = vst [vmem:[#allocation2 + $0x40] sm:$0xff] %v357
    %467 = vst [vmem:[#allocation2 + $0x48] sm:$0xff] %v359
    %468 = vst [vmem:[#allocation2 + $0x50] sm:$0xff] %v430
    %469 = vst [vmem:[#allocation2 + $0x58] sm:$0xff] %v432
    %470 = vst [vmem:[#allocation2 + $0x60] sm:$0xff] %v361
    %471 = vst [vmem:[#allocation2 + $0x68] sm:$0xff] %v363
    %472 = vst [vmem:[#allocation2 + $0x70] sm:$0xff] %v434
    %473 = vst [vmem:[#allocation2 + $0x78] sm:$0xff] %v436
    %474 = vst [vmem:[#allocation2 + $0x80] sm:$0xff] %v367
    %475 = vst [vmem:[#allocation2 + $0x88] sm:$0xff] %v369
    %476 = vst [vmem:[#allocation2 + $0x90] sm:$0xff] %v440
    %477 = vst [vmem:[#allocation2 + $0x98] sm:$0xff] %v442
    %478 = vst [vmem:[#allocation2 + $0xa0] sm:$0xff] %v371
    %479 = vst [vmem:[#allocation2 + $0xa8] sm:$0xff] %v373
    %480 = vst [vmem:[#allocation2 + $0xb0] sm:$0xff] %v444
    %481 = vst [vmem:[#allocation2 + $0xb8] sm:$0xff] %v446
    %482 = vst [vmem:[#allocation2 + $0xc0] sm:$0xff] %v377
    %483 = vst [vmem:[#allocation2 + $0xc8] sm:$0xff] %v379
    %484 = vst [vmem:[#allocation2 + $0xd0] sm:$0xff] %v450
    %485 = vst [vmem:[#allocation2 + $0xd8] sm:$0xff] %v452
    %486 = vst [vmem:[#allocation2 + $0xe0] sm:$0xff] %v381
    %487 = vst [vmem:[#allocation2 + $0xe8] sm:$0xff] %v383
    %488 = vst [vmem:[#allocation2 + $0xf0] sm:$0xff] %v454
    %489 = vst [vmem:[#allocation2 + $0xf8] sm:$0xff] %v456
    %v490 = vld [vmem:[#allocation3] sm:$0xff]
    %v491 = vld [vmem:[#allocation4] sm:$0xff]
    %v492 = vld [vmem:[#allocation2] sm:$0xff]
    %v493 = vld [vmem:[#allocation2 + $0x8] sm:$0xff]
    %v494 = vld [vmem:[#allocation2 + $0x10] sm:$0xff]
    %v495 = vld [vmem:[#allocation2 + $0x18] sm:$0xff]
    %v496 = vpack.c.bf16 %v490, %v490
    %v497 = vld [vmem:[#allocation10] sm:$0xff]
    %v498 = vld [vmem:[#allocation10 + $0x8] sm:$0xff]
    %v499 = vld [vmem:[#allocation10 + $0x10] sm:$0xff]
    %v500 = vld [vmem:[#allocation10 + $0x18] sm:$0xff]
    %v501 = vld [vmem:[#allocation10 + $0x20] sm:$0xff]
    %v502 = vld [vmem:[#allocation10 + $0x28] sm:$0xff]
    %v503 = vld [vmem:[#allocation10 + $0x30] sm:$0xff]
    %v504 = vld [vmem:[#allocation10 + $0x38] sm:$0xff]
    %v505 = vld [vmem:[#allocation10 + $0x40] sm:$0xff]
    %v506 = vld [vmem:[#allocation10 + $0x48] sm:$0xff]
    %v507 = vld [vmem:[#allocation10 + $0x50] sm:$0xff]
    %v508 = vld [vmem:[#allocation10 + $0x58] sm:$0xff]
    %v509 = vld [vmem:[#allocation10 + $0x60] sm:$0xff]
    %v510 = vld [vmem:[#allocation10 + $0x68] sm:$0xff]
    %v511 = vld [vmem:[#allocation10 + $0x70] sm:$0xff]
    %v512 = vld [vmem:[#allocation10 + $0x78] sm:$0xff]
    %v513 = vld [vmem:[#allocation10 + $0x80] sm:$0xff]
    %v514 = vld [vmem:[#allocation10 + $0x88] sm:$0xff]
    %v515 = vld [vmem:[#allocation10 + $0x90] sm:$0xff]
    %v516 = vld [vmem:[#allocation10 + $0x98] sm:$0xff]
    %v517 = vld [vmem:[#allocation10 + $0xa0] sm:$0xff]
    %v518 = vld [vmem:[#allocation10 + $0xa8] sm:$0xff]
    %v519 = vld [vmem:[#allocation10 + $0xb0] sm:$0xff]
    %v520 = vld [vmem:[#allocation10 + $0xb8] sm:$0xff]
    %v521 = vld [vmem:[#allocation10 + $0xc0] sm:$0xff]
    %v522 = vld [vmem:[#allocation10 + $0xc8] sm:$0xff]
    %v523 = vld [vmem:[#allocation10 + $0xd0] sm:$0xff]
    %v524 = vld [vmem:[#allocation10 + $0xd8] sm:$0xff]
    %v525 = vld [vmem:[#allocation10 + $0xe0] sm:$0xff]
    %v526 = vld [vmem:[#allocation10 + $0xe8] sm:$0xff]
    %v527 = vld [vmem:[#allocation10 + $0xf0] sm:$0xff]
    %v528 = vld [vmem:[#allocation10 + $0xf8] sm:$0xff]
    %v561 = vunpack.c.l.b16 %v497
    %v562 = vunpack.c.h.b16 %v497
    %v563 = vunpack.c.l.b16 %v498
    %v564 = vunpack.c.h.b16 %v498
    %v565 = vunpack.c.l.b16 %v499
    %v566 = vunpack.c.h.b16 %v499
    %v567 = vunpack.c.l.b16 %v500
    %v568 = vunpack.c.h.b16 %v500
    %v569 = vunpack.c.l.b16 %v501
    %v570 = vunpack.c.h.b16 %v501
    %v571 = vunpack.c.l.b16 %v502
    %v572 = vunpack.c.h.b16 %v502
    %v573 = vunpack.c.l.b16 %v503
    %v574 = vunpack.c.h.b16 %v503
    %v575 = vunpack.c.l.b16 %v504
    %v576 = vunpack.c.h.b16 %v504
    %v577 = vunpack.c.l.b16 %v505
    %v578 = vunpack.c.h.b16 %v505
    %v579 = vunpack.c.l.b16 %v506
    %v580 = vunpack.c.h.b16 %v506
    %v581 = vunpack.c.l.b16 %v507
    %v582 = vunpack.c.h.b16 %v507
    %v583 = vunpack.c.l.b16 %v508
    %v584 = vunpack.c.h.b16 %v508
    %v585 = vunpack.c.l.b16 %v509
    %v586 = vunpack.c.h.b16 %v509
    %v587 = vunpack.c.l.b16 %v510
    %v588 = vunpack.c.h.b16 %v510
    %v589 = vunpack.c.l.b16 %v511
    %v590 = vunpack.c.h.b16 %v511
    %v591 = vunpack.c.l.b16 %v512
    %v592 = vunpack.c.h.b16 %v512
    %v593 = vunpack.c.l.b16 %v513
    %v594 = vunpack.c.h.b16 %v513
    %v595 = vunpack.c.l.b16 %v514
    %v596 = vunpack.c.h.b16 %v514
    %v597 = vunpack.c.l.b16 %v515
    %v598 = vunpack.c.h.b16 %v515
    %v599 = vunpack.c.l.b16 %v516
    %v600 = vunpack.c.h.b16 %v516
    %v601 = vunpack.c.l.b16 %v517
    %v602 = vunpack.c.h.b16 %v517
    %v603 = vunpack.c.l.b16 %v518
    %v604 = vunpack.c.h.b16 %v518
    %v605 = vunpack.c.l.b16 %v519
    %v606 = vunpack.c.h.b16 %v519
    %v607 = vunpack.c.l.b16 %v520
    %v608 = vunpack.c.h.b16 %v520
    %v609 = vunpack.c.l.b16 %v521
    %v610 = vunpack.c.h.b16 %v521
    %v611 = vunpack.c.l.b16 %v522
    %v612 = vunpack.c.h.b16 %v522
    %v613 = vunpack.c.l.b16 %v523
    %v614 = vunpack.c.h.b16 %v523
    %v615 = vunpack.c.l.b16 %v524
    %v616 = vunpack.c.h.b16 %v524
    %v617 = vunpack.c.l.b16 %v525
    %v618 = vunpack.c.h.b16 %v525
    %v619 = vunpack.c.l.b16 %v526
    %v620 = vunpack.c.h.b16 %v526
    %v621 = vunpack.c.l.b16 %v527
    %v622 = vunpack.c.h.b16 %v527
    %v623 = vunpack.c.l.b16 %v528
    %v624 = vunpack.c.h.b16 %v528
    %v625 = vpack.c.b16 %v565, %v561
    %v626 = vpack.c.b16 %v566, %v562
    %v627 = vpack.c.b16 %v567, %v563
    %v628 = vpack.c.b16 %v568, %v564
    %v629 = vpack.c.b16 %v573, %v569
    %v630 = vpack.c.b16 %v574, %v570
    %v631 = vpack.c.b16 %v575, %v571
    %v632 = vpack.c.b16 %v576, %v572
    %v633 = vpack.c.b16 %v581, %v577
    %v634 = vpack.c.b16 %v582, %v578
    %v635 = vpack.c.b16 %v583, %v579
    %v636 = vpack.c.b16 %v584, %v580
    %v637 = vpack.c.b16 %v589, %v585
    %v638 = vpack.c.b16 %v590, %v586
    %v639 = vpack.c.b16 %v591, %v587
    %v640 = vpack.c.b16 %v592, %v588
    %v641 = vpack.c.b16 %v597, %v593
    %v642 = vpack.c.b16 %v598, %v594
    %v643 = vpack.c.b16 %v599, %v595
    %v644 = vpack.c.b16 %v600, %v596
    %v645 = vpack.c.b16 %v605, %v601
    %v646 = vpack.c.b16 %v606, %v602
    %v647 = vpack.c.b16 %v607, %v603
    %v648 = vpack.c.b16 %v608, %v604
    %v649 = vpack.c.b16 %v613, %v609
    %v650 = vpack.c.b16 %v614, %v610
    %v651 = vpack.c.b16 %v615, %v611
    %v652 = vpack.c.b16 %v616, %v612
    %v653 = vpack.c.b16 %v621, %v617
    %v654 = vpack.c.b16 %v622, %v618
    %v655 = vpack.c.b16 %v623, %v619
    %v656 = vpack.c.b16 %v624, %v620
    %689 = vmatprep.subr.bf16.mxu0 %v654
    %690 = vmatpush1.bf16.msra.mxu0 %v653
    %691 = vmatprep.subr.bf16.mxu0 %v650
    %692 = vmatpush1.bf16.msra.mxu0 %v649
    %693 = vmatprep.subr.bf16.mxu0 %v646
    %694 = vmatpush1.bf16.msra.mxu0 %v645
    %695 = vmatprep.subr.bf16.mxu0 %v642
    %696 = vmatpush1.bf16.msra.mxu0 %v641
    %697 = vmatprep.subr.bf16.mxu0 %v638
    %698 = vmatpush1.bf16.msra.mxu0 %v637
    %699 = vmatprep.subr.bf16.mxu0 %v634
    %700 = vmatpush1.bf16.msra.mxu0 %v633
    %701 = vmatprep.subr.bf16.mxu0 %v630
    %702 = vmatpush1.bf16.msra.mxu0 %v629
    %703 = vmatprep.subr.bf16.mxu0 %v626
    %704 = vmatpush1.bf16.msra.mxu0 %v625
    %705 = vmatprep.subr.bf16.mxu0 0
    %706 = vmatpush2.bf16.msra.mxu0 0
    %707 = vmatprep.subr.bf16.mxu0 0
    %708 = vmatpush2.bf16.msra.mxu0 0
    %709 = vmatprep.subr.bf16.mxu0 0
    %710 = vmatpush2.bf16.msra.mxu0 0
    %711 = vmatprep.subr.bf16.mxu0 0
    %712 = vmatpush2.bf16.msra.mxu0 0
    %713 = vmatprep.subr.bf16.mxu0 0
    %714 = vmatpush2.bf16.msra.mxu0 0
    %715 = vmatprep.subr.bf16.mxu0 0
    %716 = vmatpush2.bf16.msra.mxu0 0
    %717 = vmatprep.subr.bf16.mxu0 0
    %718 = vmatpush2.bf16.msra.mxu0 0
    %719 = vmatprep.subr.bf16.mxu0 0
    %720 = vmatpush2.bf16.msra.mxu0 0
    %721 = vmatprep.mubr.bf16.mxu0 0
    %722 = vmatmul.mubr.bf16.gmra.mxu0 %v496
    %v723 = vpop.f32.mrf.mxu0
    %v724 = vadd.f32 0.0, %v723
    %v725 = vpop.f32.mrf.mxu0
    %v726 = vadd.f32 0.0, %v725
    %v727 = vpop.f32.mrf.mxu0
    %v728 = vpop.f32.mrf.mxu0
    %729 = vdwg.mxu0
    %730 = vmatprep.subr.bf16.mxu0 %v656
    %731 = vmatpush1.bf16.msra.mxu0 %v655
    %732 = vmatprep.subr.bf16.mxu0 %v652
    %733 = vmatpush1.bf16.msra.mxu0 %v651
    %734 = vmatprep.subr.bf16.mxu0 %v648
    %735 = vmatpush1.bf16.msra.mxu0 %v647
    %736 = vmatprep.subr.bf16.mxu0 %v644
    %737 = vmatpush1.bf16.msra.mxu0 %v643
    %738 = vmatprep.subr.bf16.mxu0 %v640
    %739 = vmatpush1.bf16.msra.mxu0 %v639
    %740 = vmatprep.subr.bf16.mxu0 %v636
    %741 = vmatpush1.bf16.msra.mxu0 %v635
    %742 = vmatprep.subr.bf16.mxu0 %v632
    %743 = vmatpush1.bf16.msra.mxu0 %v631
    %744 = vmatprep.subr.bf16.mxu0 %v628
    %745 = vmatpush1.bf16.msra.mxu0 %v627
    %746 = vmatprep.subr.bf16.mxu0 0
    %747 = vmatpush2.bf16.msra.mxu0 0
    %748 = vmatprep.subr.bf16.mxu0 0
    %749 = vmatpush2.bf16.msra.mxu0 0
    %750 = vmatprep.subr.bf16.mxu0 0
    %751 = vmatpush2.bf16.msra.mxu0 0
    %752 = vmatprep.subr.bf16.mxu0 0
    %753 = vmatpush2.bf16.msra.mxu0 0
    %754 = vmatprep.subr.bf16.mxu0 0
    %755 = vmatpush2.bf16.msra.mxu0 0
    %756 = vmatprep.subr.bf16.mxu0 0
    %757 = vmatpush2.bf16.msra.mxu0 0
    %758 = vmatprep.subr.bf16.mxu0 0
    %759 = vmatpush2.bf16.msra.mxu0 0
    %760 = vmatprep.subr.bf16.mxu0 0
    %761 = vmatpush2.bf16.msra.mxu0 0
    %762 = vmatprep.mubr.bf16.mxu0 0
    %763 = vmatmul.mubr.bf16.gmra.mxu0 %v496
    %v764 = vpop.f32.mrf.mxu0
    %v765 = vadd.f32 0.0, %v764
    %v766 = vpop.f32.mrf.mxu0
    %v767 = vadd.f32 0.0, %v766
    %v768 = vpop.f32.mrf.mxu0
    %v769 = vpop.f32.mrf.mxu0
    %770 = vdwg.mxu0
    %v771 = vadd.f32 %v492, %v724
    %v772 = vadd.f32 %v493, %v726
    %v773 = vadd.f32 %v494, %v765
    %v774 = vadd.f32 %v495, %v767
    %v775 = vxor.u32 %v771, 2147483648
    %v776 = vmul.f32 %v775, 1.442695
    %v777 = vpow.pop %v776
    %v778 = vadd.f32 %v777, 1.0
    %v779 = vrcp.pop %v778
    %v780 = vmul.f32 1.0, %v779
    %v781 = vxor.u32 %v772, 2147483648
    %v782 = vmul.f32 %v781, 1.442695
    %v783 = vpow.pop %v782
    %v784 = vadd.f32 %v783, 1.0
    %v785 = vrcp.pop %v784
    %v786 = vmul.f32 1.0, %v785
    %v787 = vtanh.pop %v773
    %v788 = vxor.u32 %v774, 2147483648
    %v789 = vmul.f32 %v788, 1.442695
    %v790 = vpow.pop %v789
    %v791 = vadd.f32 %v790, 1.0
    %v792 = vrcp.pop %v791
    %v793 = vmul.f32 1.0, %v792
    %v794 = vmul.f32 %v786, %v491
    %v795 = vmul.f32 %v780, %v787
    %v796 = vadd.f32 %v794, %v795
    %v797 = vtanh.pop %v796
    %v798 = vmul.f32 %v793, %v797
    %v799 = vpack.c.bf16 %v798, %v798
    %800 = vst [vmem:[#allocation11] sm:$0xf] %v799
    %s801 = scalar_lea.vmem [#allocation2], 32
    %v802 = vld [vmem:[%s801] sm:$0xff]
    %v803 = vld [vmem:[%s801 + $0x8] sm:$0xff]
    %v804 = vld [vmem:[%s801 + $0x10] sm:$0xff]
    %v805 = vld [vmem:[%s801 + $0x18] sm:$0xff]
    %v806 = vld [vmem:[#allocation10] sm:$0xff]
    %v807 = vld [vmem:[#allocation10 + $0x8] sm:$0xff]
    %v808 = vld [vmem:[#allocation10 + $0x10] sm:$0xff]
    %v809 = vld [vmem:[#allocation10 + $0x18] sm:$0xff]
    %v810 = vld [vmem:[#allocation10 + $0x20] sm:$0xff]
    %v811 = vld [vmem:[#allocation10 + $0x28] sm:$0xff]
    %v812 = vld [vmem:[#allocation10 + $0x30] sm:$0xff]
    %v813 = vld [vmem:[#allocation10 + $0x38] sm:$0xff]
    %v814 = vld [vmem:[#allocation10 + $0x40] sm:$0xff]
    %v815 = vld [vmem:[#allocation10 + $0x48] sm:$0xff]
    %v816 = vld [vmem:[#allocation10 + $0x50] sm:$0xff]
    %v817 = vld [vmem:[#allocation10 + $0x58] sm:$0xff]
    %v818 = vld [vmem:[#allocation10 + $0x60] sm:$0xff]
    %v819 = vld [vmem:[#allocation10 + $0x68] sm:$0xff]
    %v820 = vld [vmem:[#allocation10 + $0x70] sm:$0xff]
    %v821 = vld [vmem:[#allocation10 + $0x78] sm:$0xff]
    %v822 = vld [vmem:[#allocation10 + $0x80] sm:$0xff]
    %v823 = vld [vmem:[#allocation10 + $0x88] sm:$0xff]
    %v824 = vld [vmem:[#allocation10 + $0x90] sm:$0xff]
    %v825 = vld [vmem:[#allocation10 + $0x98] sm:$0xff]
    %v826 = vld [vmem:[#allocation10 + $0xa0] sm:$0xff]
    %v827 = vld [vmem:[#allocation10 + $0xa8] sm:$0xff]
    %v828 = vld [vmem:[#allocation10 + $0xb0] sm:$0xff]
    %v829 = vld [vmem:[#allocation10 + $0xb8] sm:$0xff]
    %v830 = vld [vmem:[#allocation10 + $0xc0] sm:$0xff]
    %v831 = vld [vmem:[#allocation10 + $0xc8] sm:$0xff]
    %v832 = vld [vmem:[#allocation10 + $0xd0] sm:$0xff]
    %v833 = vld [vmem:[#allocation10 + $0xd8] sm:$0xff]
    %v834 = vld [vmem:[#allocation10 + $0xe0] sm:$0xff]
    %v835 = vld [vmem:[#allocation10 + $0xe8] sm:$0xff]
    %v836 = vld [vmem:[#allocation10 + $0xf0] sm:$0xff]
    %v837 = vld [vmem:[#allocation10 + $0xf8] sm:$0xff]
    %v870 = vunpack.c.l.b16 %v806
    %v871 = vunpack.c.h.b16 %v806
    %v872 = vunpack.c.l.b16 %v807
    %v873 = vunpack.c.h.b16 %v807
    %v874 = vunpack.c.l.b16 %v808
    %v875 = vunpack.c.h.b16 %v808
    %v876 = vunpack.c.l.b16 %v809
    %v877 = vunpack.c.h.b16 %v809
    %v878 = vunpack.c.l.b16 %v810
    %v879 = vunpack.c.h.b16 %v810
    %v880 = vunpack.c.l.b16 %v811
    %v881 = vunpack.c.h.b16 %v811
    %v882 = vunpack.c.l.b16 %v812
    %v883 = vunpack.c.h.b16 %v812
    %v884 = vunpack.c.l.b16 %v813
    %v885 = vunpack.c.h.b16 %v813
    %v886 = vunpack.c.l.b16 %v814
    %v887 = vunpack.c.h.b16 %v814
    %v888 = vunpack.c.l.b16 %v815
    %v889 = vunpack.c.h.b16 %v815
    %v890 = vunpack.c.l.b16 %v816
    %v891 = vunpack.c.h.b16 %v816
    %v892 = vunpack.c.l.b16 %v817
    %v893 = vunpack.c.h.b16 %v817
    %v894 = vunpack.c.l.b16 %v818
    %v895 = vunpack.c.h.b16 %v818
    %v896 = vunpack.c.l.b16 %v819
    %v897 = vunpack.c.h.b16 %v819
    %v898 = vunpack.c.l.b16 %v820
    %v899 = vunpack.c.h.b16 %v820
    %v900 = vunpack.c.l.b16 %v821
    %v901 = vunpack.c.h.b16 %v821
    %v902 = vunpack.c.l.b16 %v822
    %v903 = vunpack.c.h.b16 %v822
    %v904 = vunpack.c.l.b16 %v823
    %v905 = vunpack.c.h.b16 %v823
    %v906 = vunpack.c.l.b16 %v824
    %v907 = vunpack.c.h.b16 %v824
    %v908 = vunpack.c.l.b16 %v825
    %v909 = vunpack.c.h.b16 %v825
    %v910 = vunpack.c.l.b16 %v826
    %v911 = vunpack.c.h.b16 %v826
    %v912 = vunpack.c.l.b16 %v827
    %v913 = vunpack.c.h.b16 %v827
    %v914 = vunpack.c.l.b16 %v828
    %v915 = vunpack.c.h.b16 %v828
    %v916 = vunpack.c.l.b16 %v829
    %v917 = vunpack.c.h.b16 %v829
    %v918 = vunpack.c.l.b16 %v830
    %v919 = vunpack.c.h.b16 %v830
    %v920 = vunpack.c.l.b16 %v831
    %v921 = vunpack.c.h.b16 %v831
    %v922 = vunpack.c.l.b16 %v832
    %v923 = vunpack.c.h.b16 %v832
    %v924 = vunpack.c.l.b16 %v833
    %v925 = vunpack.c.h.b16 %v833
    %v926 = vunpack.c.l.b16 %v834
    %v927 = vunpack.c.h.b16 %v834
    %v928 = vunpack.c.l.b16 %v835
    %v929 = vunpack.c.h.b16 %v835
    %v930 = vunpack.c.l.b16 %v836
    %v931 = vunpack.c.h.b16 %v836
    %v932 = vunpack.c.l.b16 %v837
    %v933 = vunpack.c.h.b16 %v837
    %v934 = vpack.c.b16 %v874, %v870
    %v935 = vpack.c.b16 %v875, %v871
    %v936 = vpack.c.b16 %v876, %v872
    %v937 = vpack.c.b16 %v877, %v873
    %v938 = vpack.c.b16 %v882, %v878
    %v939 = vpack.c.b16 %v883, %v879
    %v940 = vpack.c.b16 %v884, %v880
    %v941 = vpack.c.b16 %v885, %v881
    %v942 = vpack.c.b16 %v890, %v886
    %v943 = vpack.c.b16 %v891, %v887
    %v944 = vpack.c.b16 %v892, %v888
    %v945 = vpack.c.b16 %v893, %v889
    %v946 = vpack.c.b16 %v898, %v894
    %v947 = vpack.c.b16 %v899, %v895
    %v948 = vpack.c.b16 %v900, %v896
    %v949 = vpack.c.b16 %v901, %v897
    %v950 = vpack.c.b16 %v906, %v902
    %v951 = vpack.c.b16 %v907, %v903
    %v952 = vpack.c.b16 %v908, %v904
    %v953 = vpack.c.b16 %v909, %v905
    %v954 = vpack.c.b16 %v914, %v910
    %v955 = vpack.c.b16 %v915, %v911
    %v956 = vpack.c.b16 %v916, %v912
    %v957 = vpack.c.b16 %v917, %v913
    %v958 = vpack.c.b16 %v922, %v918
    %v959 = vpack.c.b16 %v923, %v919
    %v960 = vpack.c.b16 %v924, %v920
    %v961 = vpack.c.b16 %v925, %v921
    %v962 = vpack.c.b16 %v930, %v926
    %v963 = vpack.c.b16 %v931, %v927
    %v964 = vpack.c.b16 %v932, %v928
    %v965 = vpack.c.b16 %v933, %v929
    %998 = vmatprep.subr.bf16.mxu0 %v963
    %999 = vmatpush1.bf16.msra.mxu0 %v962
    %1000 = vmatprep.subr.bf16.mxu0 %v959
    %1001 = vmatpush1.bf16.msra.mxu0 %v958
    %1002 = vmatprep.subr.bf16.mxu0 %v955
    %1003 = vmatpush1.bf16.msra.mxu0 %v954
    %1004 = vmatprep.subr.bf16.mxu0 %v951
    %1005 = vmatpush1.bf16.msra.mxu0 %v950
    %1006 = vmatprep.subr.bf16.mxu0 %v947
    %1007 = vmatpush1.bf16.msra.mxu0 %v946
    %1008 = vmatprep.subr.bf16.mxu0 %v943
    %1009 = vmatpush1.bf16.msra.mxu0 %v942
    %1010 = vmatprep.subr.bf16.mxu0 %v939
    %1011 = vmatpush1.bf16.msra.mxu0 %v938
    %1012 = vmatprep.subr.bf16.mxu0 %v935
    %1013 = vmatpush1.bf16.msra.mxu0 %v934
    %1014 = vmatprep.subr.bf16.mxu0 0
    %1015 = vmatpush2.bf16.msra.mxu0 0
    %1016 = vmatprep.subr.bf16.mxu0 0
    %1017 = vmatpush2.bf16.msra.mxu0 0
    %1018 = vmatprep.subr.bf16.mxu0 0
    %1019 = vmatpush2.bf16.msra.mxu0 0
    %1020 = vmatprep.subr.bf16.mxu0 0
    %1021 = vmatpush2.bf16.msra.mxu0 0
    %1022 = vmatprep.subr.bf16.mxu0 0
    %1023 = vmatpush2.bf16.msra.mxu0 0
    %1024 = vmatprep.subr.bf16.mxu0 0
    %1025 = vmatpush2.bf16.msra.mxu0 0
    %1026 = vmatprep.subr.bf16.mxu0 0
    %1027 = vmatpush2.bf16.msra.mxu0 0
    %1028 = vmatprep.subr.bf16.mxu0 0
    %1029 = vmatpush2.bf16.msra.mxu0 0
    %1030 = vmatprep.mubr.bf16.mxu0 0
    %1031 = vmatmul.mubr.bf16.gmra.mxu0 %v799
    %v1032 = vpop.f32.mrf.mxu0
    %v1033 = vadd.f32 0.0, %v1032
    %v1034 = vpop.f32.mrf.mxu0
    %v1035 = vadd.f32 0.0, %v1034
    %v1036 = vpop.f32.mrf.mxu0
    %v1037 = vpop.f32.mrf.mxu0
    %1038 = vdwg.mxu0
    %1039 = vmatprep.subr.bf16.mxu0 %v965
    %1040 = vmatpush1.bf16.msra.mxu0 %v964
    %1041 = vmatprep.subr.bf16.mxu0 %v961
    %1042 = vmatpush1.bf16.msra.mxu0 %v960
    %1043 = vmatprep.subr.bf16.mxu0 %v957
    %1044 = vmatpush1.bf16.msra.mxu0 %v956
    %1045 = vmatprep.subr.bf16.mxu0 %v953
    %1046 = vmatpush1.bf16.msra.mxu0 %v952
    %1047 = vmatprep.subr.bf16.mxu0 %v949
    %1048 = vmatpush1.bf16.msra.mxu0 %v948
    %1049 = vmatprep.subr.bf16.mxu0 %v945
    %1050 = vmatpush1.bf16.msra.mxu0 %v944
    %1051 = vmatprep.subr.bf16.mxu0 %v941
    %1052 = vmatpush1.bf16.msra.mxu0 %v940
    %1053 = vmatprep.subr.bf16.mxu0 %v937
    %1054 = vmatpush1.bf16.msra.mxu0 %v936
    %1055 = vmatprep.subr.bf16.mxu0 0
    %1056 = vmatpush2.bf16.msra.mxu0 0
    %1057 = vmatprep.subr.bf16.mxu0 0
    %1058 = vmatpush2.bf16.msra.mxu0 0
    %1059 = vmatprep.subr.bf16.mxu0 0
    %1060 = vmatpush2.bf16.msra.mxu0 0
    %1061 = vmatprep.subr.bf16.mxu0 0
    %1062 = vmatpush2.bf16.msra.mxu0 0
    %1063 = vmatprep.subr.bf16.mxu0 0
    %1064 = vmatpush2.bf16.msra.mxu0 0
    %1065 = vmatprep.subr.bf16.mxu0 0
    %1066 = vmatpush2.bf16.msra.mxu0 0
    %1067 = vmatprep.subr.bf16.mxu0 0
    %1068 = vmatpush2.bf16.msra.mxu0 0
    %1069 = vmatprep.subr.bf16.mxu0 0
    %1070 = vmatpush2.bf16.msra.mxu0 0
    %1071 = vmatprep.mubr.bf16.mxu0 0
    %1072 = vmatmul.mubr.bf16.gmra.mxu0 %v799
    %v1073 = vpop.f32.mrf.mxu0
    %v1074 = vadd.f32 0.0, %v1073
    %v1075 = vpop.f32.mrf.mxu0
    %v1076 = vadd.f32 0.0, %v1075
    %v1077 = vpop.f32.mrf.mxu0
    %v1078 = vpop.f32.mrf.mxu0
    %1079 = vdwg.mxu0
    %v1080 = vadd.f32 %v802, %v1033
    %v1081 = vadd.f32 %v803, %v1035
    %v1082 = vadd.f32 %v804, %v1074
    %v1083 = vadd.f32 %v805, %v1076
    %v1084 = vxor.u32 %v1080, 2147483648
    %v1085 = vmul.f32 %v1084, 1.442695
    %v1086 = vpow.pop %v1085
    %v1087 = vadd.f32 %v1086, 1.0
    %v1088 = vrcp.pop %v1087
    %v1089 = vmul.f32 1.0, %v1088
    %v1090 = vxor.u32 %v1081, 2147483648
    %v1091 = vmul.f32 %v1090, 1.442695
    %v1092 = vpow.pop %v1091
    %v1093 = vadd.f32 %v1092, 1.0
    %v1094 = vrcp.pop %v1093
    %v1095 = vmul.f32 1.0, %v1094
    %v1096 = vtanh.pop %v1082
    %v1097 = vxor.u32 %v1083, 2147483648
    %v1098 = vmul.f32 %v1097, 1.442695
    %v1099 = vpow.pop %v1098
    %v1100 = vadd.f32 %v1099, 1.0
    %v1101 = vrcp.pop %v1100
    %v1102 = vmul.f32 1.0, %v1101
    %v1103 = vmul.f32 %v1095, %v796
    %v1104 = vmul.f32 %v1089, %v1096
    %v1105 = vadd.f32 %v1103, %v1104
    %v1106 = vtanh.pop %v1105
    %v1107 = vmul.f32 %v1102, %v1106
    %v1108 = vpack.c.bf16 %v1107, %v1107
    %s1109 = scalar_lea.vmem [#allocation11], 4
    %1110 = vst [vmem:[%s1109] sm:$0xf] %v1108
    %s1111 = scalar_lea.vmem [#allocation2], 64
    %v1112 = vld [vmem:[%s1111] sm:$0xff]
    %v1113 = vld [vmem:[%s1111 + $0x8] sm:$0xff]
    %v1114 = vld [vmem:[%s1111 + $0x10] sm:$0xff]
    %v1115 = vld [vmem:[%s1111 + $0x18] sm:$0xff]
    %v1116 = vld [vmem:[#allocation10] sm:$0xff]
    %v1117 = vld [vmem:[#allocation10 + $0x8] sm:$0xff]
    %v1118 = vld [vmem:[#allocation10 + $0x10] sm:$0xff]
    %v1119 = vld [vmem:[#allocation10 + $0x18] sm:$0xff]
    %v1120 = vld [vmem:[#allocation10 + $0x20] sm:$0xff]
    %v1121 = vld [vmem:[#allocation10 + $0x28] sm:$0xff]
    %v1122 = vld [vmem:[#allocation10 + $0x30] sm:$0xff]
    %v1123 = vld [vmem:[#allocation10 + $0x38] sm:$0xff]
    %v1124 = vld [vmem:[#allocation10 + $0x40] sm:$0xff]
    %v1125 = vld [vmem:[#allocation10 + $0x48] sm:$0xff]
    %v1126 = vld [vmem:[#allocation10 + $0x50] sm:$0xff]
    %v1127 = vld [vmem:[#allocation10 + $0x58] sm:$0xff]
    %v1128 = vld [vmem:[#allocation10 + $0x60] sm:$0xff]
    %v1129 = vld [vmem:[#allocation10 + $0x68] sm:$0xff]
    %v1130 = vld [vmem:[#allocation10 + $0x70] sm:$0xff]
    %v1131 = vld [vmem:[#allocation10 + $0x78] sm:$0xff]
    %v1132 = vld [vmem:[#allocation10 + $0x80] sm:$0xff]
    %v1133 = vld [vmem:[#allocation10 + $0x88] sm:$0xff]
    %v1134 = vld [vmem:[#allocation10 + $0x90] sm:$0xff]
    %v1135 = vld [vmem:[#allocation10 + $0x98] sm:$0xff]
    %v1136 = vld [vmem:[#allocation10 + $0xa0] sm:$0xff]
    %v1137 = vld [vmem:[#allocation10 + $0xa8] sm:$0xff]
    %v1138 = vld [vmem:[#allocation10 + $0xb0] sm:$0xff]
    %v1139 = vld [vmem:[#allocation10 + $0xb8] sm:$0xff]
    %v1140 = vld [vmem:[#allocation10 + $0xc0] sm:$0xff]
    %v1141 = vld [vmem:[#allocation10 + $0xc8] sm:$0xff]
    %v1142 = vld [vmem:[#allocation10 + $0xd0] sm:$0xff]
    %v1143 = vld [vmem:[#allocation10 + $0xd8] sm:$0xff]
    %v1144 = vld [vmem:[#allocation10 + $0xe0] sm:$0xff]
    %v1145 = vld [vmem:[#allocation10 + $0xe8] sm:$0xff]
    %v1146 = vld [vmem:[#allocation10 + $0xf0] sm:$0xff]
    %v1147 = vld [vmem:[#allocation10 + $0xf8] sm:$0xff]
    %v1180 = vunpack.c.l.b16 %v1116
    %v1181 = vunpack.c.h.b16 %v1116
    %v1182 = vunpack.c.l.b16 %v1117
    %v1183 = vunpack.c.h.b16 %v1117
    %v1184 = vunpack.c.l.b16 %v1118
    %v1185 = vunpack.c.h.b16 %v1118
    %v1186 = vunpack.c.l.b16 %v1119
    %v1187 = vunpack.c.h.b16 %v1119
    %v1188 = vunpack.c.l.b16 %v1120
    %v1189 = vunpack.c.h.b16 %v1120
    %v1190 = vunpack.c.l.b16 %v1121
    %v1191 = vunpack.c.h.b16 %v1121
    %v1192 = vunpack.c.l.b16 %v1122
    %v1193 = vunpack.c.h.b16 %v1122
    %v1194 = vunpack.c.l.b16 %v1123
    %v1195 = vunpack.c.h.b16 %v1123
    %v1196 = vunpack.c.l.b16 %v1124
    %v1197 = vunpack.c.h.b16 %v1124
    %v1198 = vunpack.c.l.b16 %v1125
    %v1199 = vunpack.c.h.b16 %v1125
    %v1200 = vunpack.c.l.b16 %v1126
    %v1201 = vunpack.c.h.b16 %v1126
    %v1202 = vunpack.c.l.b16 %v1127
    %v1203 = vunpack.c.h.b16 %v1127
    %v1204 = vunpack.c.l.b16 %v1128
    %v1205 = vunpack.c.h.b16 %v1128
    %v1206 = vunpack.c.l.b16 %v1129
    %v1207 = vunpack.c.h.b16 %v1129
    %v1208 = vunpack.c.l.b16 %v1130
    %v1209 = vunpack.c.h.b16 %v1130
    %v1210 = vunpack.c.l.b16 %v1131
    %v1211 = vunpack.c.h.b16 %v1131
    %v1212 = vunpack.c.l.b16 %v1132
    %v1213 = vunpack.c.h.b16 %v1132
    %v1214 = vunpack.c.l.b16 %v1133
    %v1215 = vunpack.c.h.b16 %v1133
    %v1216 = vunpack.c.l.b16 %v1134
    %v1217 = vunpack.c.h.b16 %v1134
    %v1218 = vunpack.c.l.b16 %v1135
    %v1219 = vunpack.c.h.b16 %v1135
    %v1220 = vunpack.c.l.b16 %v1136
    %v1221 = vunpack.c.h.b16 %v1136
    %v1222 = vunpack.c.l.b16 %v1137
    %v1223 = vunpack.c.h.b16 %v1137
    %v1224 = vunpack.c.l.b16 %v1138
    %v1225 = vunpack.c.h.b16 %v1138
    %v1226 = vunpack.c.l.b16 %v1139
    %v1227 = vunpack.c.h.b16 %v1139
    %v1228 = vunpack.c.l.b16 %v1140
    %v1229 = vunpack.c.h.b16 %v1140
    %v1230 = vunpack.c.l.b16 %v1141
    %v1231 = vunpack.c.h.b16 %v1141
    %v1232 = vunpack.c.l.b16 %v1142
    %v1233 = vunpack.c.h.b16 %v1142
    %v1234 = vunpack.c.l.b16 %v1143
    %v1235 = vunpack.c.h.b16 %v1143
    %v1236 = vunpack.c.l.b16 %v1144
    %v1237 = vunpack.c.h.b16 %v1144
    %v1238 = vunpack.c.l.b16 %v1145
    %v1239 = vunpack.c.h.b16 %v1145
    %v1240 = vunpack.c.l.b16 %v1146
    %v1241 = vunpack.c.h.b16 %v1146
    %v1242 = vunpack.c.l.b16 %v1147
    %v1243 = vunpack.c.h.b16 %v1147
    %v1244 = vpack.c.b16 %v1184, %v1180
    %v1245 = vpack.c.b16 %v1185, %v1181
    %v1246 = vpack.c.b16 %v1186, %v1182
    %v1247 = vpack.c.b16 %v1187, %v1183
    %v1248 = vpack.c.b16 %v1192, %v1188
    %v1249 = vpack.c.b16 %v1193, %v1189
    %v1250 = vpack.c.b16 %v1194, %v1190
    %v1251 = vpack.c.b16 %v1195, %v1191
    %v1252 = vpack.c.b16 %v1200, %v1196
    %v1253 = vpack.c.b16 %v1201, %v1197
    %v1254 = vpack.c.b16 %v1202, %v1198
    %v1255 = vpack.c.b16 %v1203, %v1199
    %v1256 = vpack.c.b16 %v1208, %v1204
    %v1257 = vpack.c.b16 %v1209, %v1205
    %v1258 = vpack.c.b16 %v1210, %v1206
    %v1259 = vpack.c.b16 %v1211, %v1207
    %v1260 = vpack.c.b16 %v1216, %v1212
    %v1261 = vpack.c.b16 %v1217, %v1213
    %v1262 = vpack.c.b16 %v1218, %v1214
    %v1263 = vpack.c.b16 %v1219, %v1215
    %v1264 = vpack.c.b16 %v1224, %v1220
    %v1265 = vpack.c.b16 %v1225, %v1221
    %v1266 = vpack.c.b16 %v1226, %v1222
    %v1267 = vpack.c.b16 %v1227, %v1223
    %v1268 = vpack.c.b16 %v1232, %v1228
    %v1269 = vpack.c.b16 %v1233, %v1229
    %v1270 = vpack.c.b16 %v1234, %v1230
    %v1271 = vpack.c.b16 %v1235, %v1231
    %v1272 = vpack.c.b16 %v1240, %v1236
    %v1273 = vpack.c.b16 %v1241, %v1237
    %v1274 = vpack.c.b16 %v1242, %v1238
    %v1275 = vpack.c.b16 %v1243, %v1239
    %1308 = vmatprep.subr.bf16.mxu0 %v1273
    %1309 = vmatpush1.bf16.msra.mxu0 %v1272
    %1310 = vmatprep.subr.bf16.mxu0 %v1269
    %1311 = vmatpush1.bf16.msra.mxu0 %v1268
    %1312 = vmatprep.subr.bf16.mxu0 %v1265
    %1313 = vmatpush1.bf16.msra.mxu0 %v1264
    %1314 = vmatprep.subr.bf16.mxu0 %v1261
    %1315 = vmatpush1.bf16.msra.mxu0 %v1260
    %1316 = vmatprep.subr.bf16.mxu0 %v1257
    %1317 = vmatpush1.bf16.msra.mxu0 %v1256
    %1318 = vmatprep.subr.bf16.mxu0 %v1253
    %1319 = vmatpush1.bf16.msra.mxu0 %v1252
    %1320 = vmatprep.subr.bf16.mxu0 %v1249
    %1321 = vmatpush1.bf16.msra.mxu0 %v1248
    %1322 = vmatprep.subr.bf16.mxu0 %v1245
    %1323 = vmatpush1.bf16.msra.mxu0 %v1244
    %1324 = vmatprep.subr.bf16.mxu0 0
    %1325 = vmatpush2.bf16.msra.mxu0 0
    %1326 = vmatprep.subr.bf16.mxu0 0
    %1327 = vmatpush2.bf16.msra.mxu0 0
    %1328 = vmatprep.subr.bf16.mxu0 0
    %1329 = vmatpush2.bf16.msra.mxu0 0
    %1330 = vmatprep.subr.bf16.mxu0 0
    %1331 = vmatpush2.bf16.msra.mxu0 0
    %1332 = vmatprep.subr.bf16.mxu0 0
    %1333 = vmatpush2.bf16.msra.mxu0 0
    %1334 = vmatprep.subr.bf16.mxu0 0
    %1335 = vmatpush2.bf16.msra.mxu0 0
    %1336 = vmatprep.subr.bf16.mxu0 0
    %1337 = vmatpush2.bf16.msra.mxu0 0
    %1338 = vmatprep.subr.bf16.mxu0 0
    %1339 = vmatpush2.bf16.msra.mxu0 0
    %1340 = vmatprep.mubr.bf16.mxu0 0
    %1341 = vmatmul.mubr.bf16.gmra.mxu0 %v1108
    %v1342 = vpop.f32.mrf.mxu0
    %v1343 = vadd.f32 0.0, %v1342
    %v1344 = vpop.f32.mrf.mxu0
    %v1345 = vadd.f32 0.0, %v1344
    %v1346 = vpop.f32.mrf.mxu0
    %v1347 = vpop.f32.mrf.mxu0
    %1348 = vdwg.mxu0
    %1349 = vmatprep.subr.bf16.mxu0 %v1275
    %1350 = vmatpush1.bf16.msra.mxu0 %v1274
    %1351 = vmatprep.subr.bf16.mxu0 %v1271
    %1352 = vmatpush1.bf16.msra.mxu0 %v1270
    %1353 = vmatprep.subr.bf16.mxu0 %v1267
    %1354 = vmatpush1.bf16.msra.mxu0 %v1266
    %1355 = vmatprep.subr.bf16.mxu0 %v1263
    %1356 = vmatpush1.bf16.msra.mxu0 %v1262
    %1357 = vmatprep.subr.bf16.mxu0 %v1259
    %1358 = vmatpush1.bf16.msra.mxu0 %v1258
    %1359 = vmatprep.subr.bf16.mxu0 %v1255
    %1360 = vmatpush1.bf16.msra.mxu0 %v1254
    %1361 = vmatprep.subr.bf16.mxu0 %v1251
    %1362 = vmatpush1.bf16.msra.mxu0 %v1250
    %1363 = vmatprep.subr.bf16.mxu0 %v1247
    %1364 = vmatpush1.bf16.msra.mxu0 %v1246
    %1365 = vmatprep.subr.bf16.mxu0 0
    %1366 = vmatpush2.bf16.msra.mxu0 0
    %1367 = vmatprep.subr.bf16.mxu0 0
    %1368 = vmatpush2.bf16.msra.mxu0 0
    %1369 = vmatprep.subr.bf16.mxu0 0
    %1370 = vmatpush2.bf16.msra.mxu0 0
    %1371 = vmatprep.subr.bf16.mxu0 0
    %1372 = vmatpush2.bf16.msra.mxu0 0
    %1373 = vmatprep.subr.bf16.mxu0 0
    %1374 = vmatpush2.bf16.msra.mxu0 0
    %1375 = vmatprep.subr.bf16.mxu0 0
    %1376 = vmatpush2.bf16.msra.mxu0 0
    %1377 = vmatprep.subr.bf16.mxu0 0
    %1378 = vmatpush2.bf16.msra.mxu0 0
    %1379 = vmatprep.subr.bf16.mxu0 0
    %1380 = vmatpush2.bf16.msra.mxu0 0
    %1381 = vmatprep.mubr.bf16.mxu0 0
    %1382 = vmatmul.mubr.bf16.gmra.mxu0 %v1108
    %v1383 = vpop.f32.mrf.mxu0
    %v1384 = vadd.f32 0.0, %v1383
    %v1385 = vpop.f32.mrf.mxu0
    %v1386 = vadd.f32 0.0, %v1385
    %v1387 = vpop.f32.mrf.mxu0
    %v1388 = vpop.f32.mrf.mxu0
    %1389 = vdwg.mxu0
    %v1390 = vadd.f32 %v1112, %v1343
    %v1391 = vadd.f32 %v1113, %v1345
    %v1392 = vadd.f32 %v1114, %v1384
    %v1393 = vadd.f32 %v1115, %v1386
    %v1394 = vxor.u32 %v1390, 2147483648
    %v1395 = vmul.f32 %v1394, 1.442695
    %v1396 = vpow.pop %v1395
    %v1397 = vadd.f32 %v1396, 1.0
    %v1398 = vrcp.pop %v1397
    %v1399 = vmul.f32 1.0, %v1398
    %v1400 = vxor.u32 %v1391, 2147483648
    %v1401 = vmul.f32 %v1400, 1.442695
    %v1402 = vpow.pop %v1401
    %v1403 = vadd.f32 %v1402, 1.0
    %v1404 = vrcp.pop %v1403
    %v1405 = vmul.f32 1.0, %v1404
    %v1406 = vtanh.pop %v1392
    %v1407 = vxor.u32 %v1393, 2147483648
    %v1408 = vmul.f32 %v1407, 1.442695
    %v1409 = vpow.pop %v1408
    %v1410 = vadd.f32 %v1409, 1.0
    %v1411 = vrcp.pop %v1410
    %v1412 = vmul.f32 1.0, %v1411
    %v1413 = vmul.f32 %v1405, %v1105
    %v1414 = vmul.f32 %v1399, %v1406
    %v1415 = vadd.f32 %v1413, %v1414
    %v1416 = vtanh.pop %v1415
    %v1417 = vmul.f32 %v1412, %v1416
    %v1418 = vpack.c.bf16 %v1417, %v1417
    %s1419 = scalar_lea.vmem [#allocation11], 8
    %1420 = vst [vmem:[%s1419] sm:$0xf] %v1418
    %s1421 = scalar_lea.vmem [#allocation2], 96
    %v1422 = vld [vmem:[%s1421] sm:$0xff]
    %v1423 = vld [vmem:[%s1421 + $0x8] sm:$0xff]
    %v1424 = vld [vmem:[%s1421 + $0x10] sm:$0xff]
    %v1425 = vld [vmem:[%s1421 + $0x18] sm:$0xff]
    %v1426 = vld [vmem:[#allocation10] sm:$0xff]
    %v1427 = vld [vmem:[#allocation10 + $0x8] sm:$0xff]
    %v1428 = vld [vmem:[#allocation10 + $0x10] sm:$0xff]
    %v1429 = vld [vmem:[#allocation10 + $0x18] sm:$0xff]
    %v1430 = vld [vmem:[#allocation10 + $0x20] sm:$0xff]
    %v1431 = vld [vmem:[#allocation10 + $0x28] sm:$0xff]
    %v1432 = vld [vmem:[#allocation10 + $0x30] sm:$0xff]
    %v1433 = vld [vmem:[#allocation10 + $0x38] sm:$0xff]
    %v1434 = vld [vmem:[#allocation10 + $0x40] sm:$0xff]
    %v1435 = vld [vmem:[#allocation10 + $0x48] sm:$0xff]
    %v1436 = vld [vmem:[#allocation10 + $0x50] sm:$0xff]
    %v1437 = vld [vmem:[#allocation10 + $0x58] sm:$0xff]
    %v1438 = vld [vmem:[#allocation10 + $0x60] sm:$0xff]
    %v1439 = vld [vmem:[#allocation10 + $0x68] sm:$0xff]
    %v1440 = vld [vmem:[#allocation10 + $0x70] sm:$0xff]
    %v1441 = vld [vmem:[#allocation10 + $0x78] sm:$0xff]
    %v1442 = vld [vmem:[#allocation10 + $0x80] sm:$0xff]
    %v1443 = vld [vmem:[#allocation10 + $0x88] sm:$0xff]
    %v1444 = vld [vmem:[#allocation10 + $0x90] sm:$0xff]
    %v1445 = vld [vmem:[#allocation10 + $0x98] sm:$0xff]
    %v1446 = vld [vmem:[#allocation10 + $0xa0] sm:$0xff]
    %v1447 = vld [vmem:[#allocation10 + $0xa8] sm:$0xff]
    %v1448 = vld [vmem:[#allocation10 + $0xb0] sm:$0xff]
    %v1449 = vld [vmem:[#allocation10 + $0xb8] sm:$0xff]
    %v1450 = vld [vmem:[#allocation10 + $0xc0] sm:$0xff]
    %v1451 = vld [vmem:[#allocation10 + $0xc8] sm:$0xff]
    %v1452 = vld [vmem:[#allocation10 + $0xd0] sm:$0xff]
    %v1453 = vld [vmem:[#allocation10 + $0xd8] sm:$0xff]
    %v1454 = vld [vmem:[#allocation10 + $0xe0] sm:$0xff]
    %v1455 = vld [vmem:[#allocation10 + $0xe8] sm:$0xff]
    %v1456 = vld [vmem:[#allocation10 + $0xf0] sm:$0xff]
    %v1457 = vld [vmem:[#allocation10 + $0xf8] sm:$0xff]
    %v1490 = vunpack.c.l.b16 %v1426
    %v1491 = vunpack.c.h.b16 %v1426
    %v1492 = vunpack.c.l.b16 %v1427
    %v1493 = vunpack.c.h.b16 %v1427
    %v1494 = vunpack.c.l.b16 %v1428
    %v1495 = vunpack.c.h.b16 %v1428
    %v1496 = vunpack.c.l.b16 %v1429
    %v1497 = vunpack.c.h.b16 %v1429
    %v1498 = vunpack.c.l.b16 %v1430
    %v1499 = vunpack.c.h.b16 %v1430
    %v1500 = vunpack.c.l.b16 %v1431
    %v1501 = vunpack.c.h.b16 %v1431
    %v1502 = vunpack.c.l.b16 %v1432
    %v1503 = vunpack.c.h.b16 %v1432
    %v1504 = vunpack.c.l.b16 %v1433
    %v1505 = vunpack.c.h.b16 %v1433
    %v1506 = vunpack.c.l.b16 %v1434
    %v1507 = vunpack.c.h.b16 %v1434
    %v1508 = vunpack.c.l.b16 %v1435
    %v1509 = vunpack.c.h.b16 %v1435
    %v1510 = vunpack.c.l.b16 %v1436
    %v1511 = vunpack.c.h.b16 %v1436
    %v1512 = vunpack.c.l.b16 %v1437
    %v1513 = vunpack.c.h.b16 %v1437
    %v1514 = vunpack.c.l.b16 %v1438
    %v1515 = vunpack.c.h.b16 %v1438
    %v1516 = vunpack.c.l.b16 %v1439
    %v1517 = vunpack.c.h.b16 %v1439
    %v1518 = vunpack.c.l.b16 %v1440
    %v1519 = vunpack.c.h.b16 %v1440
    %v1520 = vunpack.c.l.b16 %v1441
    %v1521 = vunpack.c.h.b16 %v1441
    %v1522 = vunpack.c.l.b16 %v1442
    %v1523 = vunpack.c.h.b16 %v1442
    %v1524 = vunpack.c.l.b16 %v1443
    %v1525 = vunpack.c.h.b16 %v1443
    %v1526 = vunpack.c.l.b16 %v1444
    %v1527 = vunpack.c.h.b16 %v1444
    %v1528 = vunpack.c.l.b16 %v1445
    %v1529 = vunpack.c.h.b16 %v1445
    %v1530 = vunpack.c.l.b16 %v1446
    %v1531 = vunpack.c.h.b16 %v1446
    %v1532 = vunpack.c.l.b16 %v1447
    %v1533 = vunpack.c.h.b16 %v1447
    %v1534 = vunpack.c.l.b16 %v1448
    %v1535 = vunpack.c.h.b16 %v1448
    %v1536 = vunpack.c.l.b16 %v1449
    %v1537 = vunpack.c.h.b16 %v1449
    %v1538 = vunpack.c.l.b16 %v1450
    %v1539 = vunpack.c.h.b16 %v1450
    %v1540 = vunpack.c.l.b16 %v1451
    %v1541 = vunpack.c.h.b16 %v1451
    %v1542 = vunpack.c.l.b16 %v1452
    %v1543 = vunpack.c.h.b16 %v1452
    %v1544 = vunpack.c.l.b16 %v1453
    %v1545 = vunpack.c.h.b16 %v1453
    %v1546 = vunpack.c.l.b16 %v1454
    %v1547 = vunpack.c.h.b16 %v1454
    %v1548 = vunpack.c.l.b16 %v1455
    %v1549 = vunpack.c.h.b16 %v1455
    %v1550 = vunpack.c.l.b16 %v1456
    %v1551 = vunpack.c.h.b16 %v1456
    %v1552 = vunpack.c.l.b16 %v1457
    %v1553 = vunpack.c.h.b16 %v1457
    %v1554 = vpack.c.b16 %v1494, %v1490
    %v1555 = vpack.c.b16 %v1495, %v1491
    %v1556 = vpack.c.b16 %v1496, %v1492
    %v1557 = vpack.c.b16 %v1497, %v1493
    %v1558 = vpack.c.b16 %v1502, %v1498
    %v1559 = vpack.c.b16 %v1503, %v1499
    %v1560 = vpack.c.b16 %v1504, %v1500
    %v1561 = vpack.c.b16 %v1505, %v1501
    %v1562 = vpack.c.b16 %v1510, %v1506
    %v1563 = vpack.c.b16 %v1511, %v1507
    %v1564 = vpack.c.b16 %v1512, %v1508
    %v1565 = vpack.c.b16 %v1513, %v1509
    %v1566 = vpack.c.b16 %v1518, %v1514
    %v1567 = vpack.c.b16 %v1519, %v1515
    %v1568 = vpack.c.b16 %v1520, %v1516
    %v1569 = vpack.c.b16 %v1521, %v1517
    %v1570 = vpack.c.b16 %v1526, %v1522
    %v1571 = vpack.c.b16 %v1527, %v1523
    %v1572 = vpack.c.b16 %v1528, %v1524
    %v1573 = vpack.c.b16 %v1529, %v1525
    %v1574 = vpack.c.b16 %v1534, %v1530
    %v1575 = vpack.c.b16 %v1535, %v1531
    %v1576 = vpack.c.b16 %v1536, %v1532
    %v1577 = vpack.c.b16 %v1537, %v1533
    %v1578 = vpack.c.b16 %v1542, %v1538
    %v1579 = vpack.c.b16 %v1543, %v1539
    %v1580 = vpack.c.b16 %v1544, %v1540
    %v1581 = vpack.c.b16 %v1545, %v1541
    %v1582 = vpack.c.b16 %v1550, %v1546
    %v1583 = vpack.c.b16 %v1551, %v1547
    %v1584 = vpack.c.b16 %v1552, %v1548
    %v1585 = vpack.c.b16 %v1553, %v1549
    %1618 = vmatprep.subr.bf16.mxu0 %v1583
    %1619 = vmatpush1.bf16.msra.mxu0 %v1582
    %1620 = vmatprep.subr.bf16.mxu0 %v1579
    %1621 = vmatpush1.bf16.msra.mxu0 %v1578
    %1622 = vmatprep.subr.bf16.mxu0 %v1575
    %1623 = vmatpush1.bf16.msra.mxu0 %v1574
    %1624 = vmatprep.subr.bf16.mxu0 %v1571
    %1625 = vmatpush1.bf16.msra.mxu0 %v1570
    %1626 = vmatprep.subr.bf16.mxu0 %v1567
    %1627 = vmatpush1.bf16.msra.mxu0 %v1566
    %1628 = vmatprep.subr.bf16.mxu0 %v1563
    %1629 = vmatpush1.bf16.msra.mxu0 %v1562
    %1630 = vmatprep.subr.bf16.mxu0 %v1559
    %1631 = vmatpush1.bf16.msra.mxu0 %v1558
    %1632 = vmatprep.subr.bf16.mxu0 %v1555
    %1633 = vmatpush1.bf16.msra.mxu0 %v1554
    %1634 = vmatprep.subr.bf16.mxu0 0
    %1635 = vmatpush2.bf16.msra.mxu0 0
    %1636 = vmatprep.subr.bf16.mxu0 0
    %1637 = vmatpush2.bf16.msra.mxu0 0
    %1638 = vmatprep.subr.bf16.mxu0 0
    %1639 = vmatpush2.bf16.msra.mxu0 0
    %1640 = vmatprep.subr.bf16.mxu0 0
    %1641 = vmatpush2.bf16.msra.mxu0 0
    %1642 = vmatprep.subr.bf16.mxu0 0
    %1643 = vmatpush2.bf16.msra.mxu0 0
    %1644 = vmatprep.subr.bf16.mxu0 0
    %1645 = vmatpush2.bf16.msra.mxu0 0
    %1646 = vmatprep.subr.bf16.mxu0 0
    %1647 = vmatpush2.bf16.msra.mxu0 0
    %1648 = vmatprep.subr.bf16.mxu0 0
    %1649 = vmatpush2.bf16.msra.mxu0 0
    %1650 = vmatprep.mubr.bf16.mxu0 0
    %1651 = vmatmul.mubr.bf16.gmra.mxu0 %v1418
    %v1652 = vpop.f32.mrf.mxu0
    %v1653 = vadd.f32 0.0, %v1652
    %v1654 = vpop.f32.mrf.mxu0
    %v1655 = vadd.f32 0.0, %v1654
    %v1656 = vpop.f32.mrf.mxu0
    %v1657 = vpop.f32.mrf.mxu0
    %1658 = vdwg.mxu0
    %1659 = vmatprep.subr.bf16.mxu0 %v1585
    %1660 = vmatpush1.bf16.msra.mxu0 %v1584
    %1661 = vmatprep.subr.bf16.mxu0 %v1581
    %1662 = vmatpush1.bf16.msra.mxu0 %v1580
    %1663 = vmatprep.subr.bf16.mxu0 %v1577
    %1664 = vmatpush1.bf16.msra.mxu0 %v1576
    %1665 = vmatprep.subr.bf16.mxu0 %v1573
    %1666 = vmatpush1.bf16.msra.mxu0 %v1572
    %1667 = vmatprep.subr.bf16.mxu0 %v1569
    %1668 = vmatpush1.bf16.msra.mxu0 %v1568
    %1669 = vmatprep.subr.bf16.mxu0 %v1565
    %1670 = vmatpush1.bf16.msra.mxu0 %v1564
    %1671 = vmatprep.subr.bf16.mxu0 %v1561
    %1672 = vmatpush1.bf16.msra.mxu0 %v1560
    %1673 = vmatprep.subr.bf16.mxu0 %v1557
    %1674 = vmatpush1.bf16.msra.mxu0 %v1556
    %1675 = vmatprep.subr.bf16.mxu0 0
    %1676 = vmatpush2.bf16.msra.mxu0 0
    %1677 = vmatprep.subr.bf16.mxu0 0
    %1678 = vmatpush2.bf16.msra.mxu0 0
    %1679 = vmatprep.subr.bf16.mxu0 0
    %1680 = vmatpush2.bf16.msra.mxu0 0
    %1681 = vmatprep.subr.bf16.mxu0 0
    %1682 = vmatpush2.bf16.msra.mxu0 0
    %1683 = vmatprep.subr.bf16.mxu0 0
    %1684 = vmatpush2.bf16.msra.mxu0 0
    %1685 = vmatprep.subr.bf16.mxu0 0
    %1686 = vmatpush2.bf16.msra.mxu0 0
    %1687 = vmatprep.subr.bf16.mxu0 0
    %1688 = vmatpush2.bf16.msra.mxu0 0
    %1689 = vmatprep.subr.bf16.mxu0 0
    %1690 = vmatpush2.bf16.msra.mxu0 0
    %1691 = vmatprep.mubr.bf16.mxu0 0
    %1692 = vmatmul.mubr.bf16.gmra.mxu0 %v1418
    %v1693 = vpop.f32.mrf.mxu0
    %v1694 = vadd.f32 0.0, %v1693
    %v1695 = vpop.f32.mrf.mxu0
    %v1696 = vadd.f32 0.0, %v1695
    %v1697 = vpop.f32.mrf.mxu0
    %v1698 = vpop.f32.mrf.mxu0
    %1699 = vdwg.mxu0
    %v1700 = vadd.f32 %v1422, %v1653
    %v1701 = vadd.f32 %v1423, %v1655
    %v1702 = vadd.f32 %v1424, %v1694
    %v1703 = vadd.f32 %v1425, %v1696
    %v1704 = vxor.u32 %v1700, 2147483648
    %v1705 = vmul.f32 %v1704, 1.442695
    %v1706 = vpow.pop %v1705
    %v1707 = vadd.f32 %v1706, 1.0
    %v1708 = vrcp.pop %v1707
    %v1709 = vmul.f32 1.0, %v1708
    %v1710 = vxor.u32 %v1701, 2147483648
    %v1711 = vmul.f32 %v1710, 1.442695
    %v1712 = vpow.pop %v1711
    %v1713 = vadd.f32 %v1712, 1.0
    %v1714 = vrcp.pop %v1713
    %v1715 = vmul.f32 1.0, %v1714
    %v1716 = vtanh.pop %v1702
    %v1717 = vxor.u32 %v1703, 2147483648
    %v1718 = vmul.f32 %v1717, 1.442695
    %v1719 = vpow.pop %v1718
    %v1720 = vadd.f32 %v1719, 1.0
    %v1721 = vrcp.pop %v1720
    %v1722 = vmul.f32 1.0, %v1721
    %v1723 = vmul.f32 %v1715, %v1415
    %v1724 = vmul.f32 %v1709, %v1716
    %v1725 = vadd.f32 %v1723, %v1724
    %v1726 = vtanh.pop %v1725
    %v1727 = vmul.f32 %v1722, %v1726
    %v1728 = vpack.c.bf16 %v1727, %v1727
    %s1729 = scalar_lea.vmem [#allocation11], 12
    %1730 = vst [vmem:[%s1729] sm:$0xf] %v1728
    %s1731 = scalar_lea.vmem [#allocation2], 128
    %v1732 = vld [vmem:[%s1731] sm:$0xff]
    %v1733 = vld [vmem:[%s1731 + $0x8] sm:$0xff]
    %v1734 = vld [vmem:[%s1731 + $0x10] sm:$0xff]
    %v1735 = vld [vmem:[%s1731 + $0x18] sm:$0xff]
    %v1736 = vld [vmem:[#allocation10] sm:$0xff]
    %v1737 = vld [vmem:[#allocation10 + $0x8] sm:$0xff]
    %v1738 = vld [vmem:[#allocation10 + $0x10] sm:$0xff]
    %v1739 = vld [vmem:[#allocation10 + $0x18] sm:$0xff]
    %v1740 = vld [vmem:[#allocation10 + $0x20] sm:$0xff]
    %v1741 = vld [vmem:[#allocation10 + $0x28] sm:$0xff]
    %v1742 = vld [vmem:[#allocation10 + $0x30] sm:$0xff]
    %v1743 = vld [vmem:[#allocation10 + $0x38] sm:$0xff]
    %v1744 = vld [vmem:[#allocation10 + $0x40] sm:$0xff]
    %v1745 = vld [vmem:[#allocation10 + $0x48] sm:$0xff]
    %v1746 = vld [vmem:[#allocation10 + $0x50] sm:$0xff]
    %v1747 = vld [vmem:[#allocation10 + $0x58] sm:$0xff]
    %v1748 = vld [vmem:[#allocation10 + $0x60] sm:$0xff]
    %v1749 = vld [vmem:[#allocation10 + $0x68] sm:$0xff]
    %v1750 = vld [vmem:[#allocation10 + $0x70] sm:$0xff]
    %v1751 = vld [vmem:[#allocation10 + $0x78] sm:$0xff]
    %v1752 = vld [vmem:[#allocation10 + $0x80] sm:$0xff]
    %v1753 = vld [vmem:[#allocation10 + $0x88] sm:$0xff]
    %v1754 = vld [vmem:[#allocation10 + $0x90] sm:$0xff]
    %v1755 = vld [vmem:[#allocation10 + $0x98] sm:$0xff]
    %v1756 = vld [vmem:[#allocation10 + $0xa0] sm:$0xff]
    %v1757 = vld [vmem:[#allocation10 + $0xa8] sm:$0xff]
    %v1758 = vld [vmem:[#allocation10 + $0xb0] sm:$0xff]
    %v1759 = vld [vmem:[#allocation10 + $0xb8] sm:$0xff]
    %v1760 = vld [vmem:[#allocation10 + $0xc0] sm:$0xff]
    %v1761 = vld [vmem:[#allocation10 + $0xc8] sm:$0xff]
    %v1762 = vld [vmem:[#allocation10 + $0xd0] sm:$0xff]
    %v1763 = vld [vmem:[#allocation10 + $0xd8] sm:$0xff]
    %v1764 = vld [vmem:[#allocation10 + $0xe0] sm:$0xff]
    %v1765 = vld [vmem:[#allocation10 + $0xe8] sm:$0xff]
    %v1766 = vld [vmem:[#allocation10 + $0xf0] sm:$0xff]
    %v1767 = vld [vmem:[#allocation10 + $0xf8] sm:$0xff]
    %v1800 = vunpack.c.l.b16 %v1736
    %v1801 = vunpack.c.h.b16 %v1736
    %v1802 = vunpack.c.l.b16 %v1737
    %v1803 = vunpack.c.h.b16 %v1737
    %v1804 = vunpack.c.l.b16 %v1738
    %v1805 = vunpack.c.h.b16 %v1738
    %v1806 = vunpack.c.l.b16 %v1739
    %v1807 = vunpack.c.h.b16 %v1739
    %v1808 = vunpack.c.l.b16 %v1740
    %v1809 = vunpack.c.h.b16 %v1740
    %v1810 = vunpack.c.l.b16 %v1741
    %v1811 = vunpack.c.h.b16 %v1741
    %v1812 = vunpack.c.l.b16 %v1742
    %v1813 = vunpack.c.h.b16 %v1742
    %v1814 = vunpack.c.l.b16 %v1743
    %v1815 = vunpack.c.h.b16 %v1743
    %v1816 = vunpack.c.l.b16 %v1744
    %v1817 = vunpack.c.h.b16 %v1744
    %v1818 = vunpack.c.l.b16 %v1745
    %v1819 = vunpack.c.h.b16 %v1745
    %v1820 = vunpack.c.l.b16 %v1746
    %v1821 = vunpack.c.h.b16 %v1746
    %v1822 = vunpack.c.l.b16 %v1747
    %v1823 = vunpack.c.h.b16 %v1747
    %v1824 = vunpack.c.l.b16 %v1748
    %v1825 = vunpack.c.h.b16 %v1748
    %v1826 = vunpack.c.l.b16 %v1749
    %v1827 = vunpack.c.h.b16 %v1749
    %v1828 = vunpack.c.l.b16 %v1750
    %v1829 = vunpack.c.h.b16 %v1750
    %v1830 = vunpack.c.l.b16 %v1751
    %v1831 = vunpack.c.h.b16 %v1751
    %v1832 = vunpack.c.l.b16 %v1752
    %v1833 = vunpack.c.h.b16 %v1752
    %v1834 = vunpack.c.l.b16 %v1753
    %v1835 = vunpack.c.h.b16 %v1753
    %v1836 = vunpack.c.l.b16 %v1754
    %v1837 = vunpack.c.h.b16 %v1754
    %v1838 = vunpack.c.l.b16 %v1755
    %v1839 = vunpack.c.h.b16 %v1755
    %v1840 = vunpack.c.l.b16 %v1756
    %v1841 = vunpack.c.h.b16 %v1756
    %v1842 = vunpack.c.l.b16 %v1757
    %v1843 = vunpack.c.h.b16 %v1757
    %v1844 = vunpack.c.l.b16 %v1758
    %v1845 = vunpack.c.h.b16 %v1758
    %v1846 = vunpack.c.l.b16 %v1759
    %v1847 = vunpack.c.h.b16 %v1759
    %v1848 = vunpack.c.l.b16 %v1760
    %v1849 = vunpack.c.h.b16 %v1760
    %v1850 = vunpack.c.l.b16 %v1761
    %v1851 = vunpack.c.h.b16 %v1761
    %v1852 = vunpack.c.l.b16 %v1762
    %v1853 = vunpack.c.h.b16 %v1762
    %v1854 = vunpack.c.l.b16 %v1763
    %v1855 = vunpack.c.h.b16 %v1763
    %v1856 = vunpack.c.l.b16 %v1764
    %v1857 = vunpack.c.h.b16 %v1764
    %v1858 = vunpack.c.l.b16 %v1765
    %v1859 = vunpack.c.h.b16 %v1765
    %v1860 = vunpack.c.l.b16 %v1766
    %v1861 = vunpack.c.h.b16 %v1766
    %v1862 = vunpack.c.l.b16 %v1767
    %v1863 = vunpack.c.h.b16 %v1767
    %v1864 = vpack.c.b16 %v1804, %v1800
    %v1865 = vpack.c.b16 %v1805, %v1801
    %v1866 = vpack.c.b16 %v1806, %v1802
    %v1867 = vpack.c.b16 %v1807, %v1803
    %v1868 = vpack.c.b16 %v1812, %v1808
    %v1869 = vpack.c.b16 %v1813, %v1809
    %v1870 = vpack.c.b16 %v1814, %v1810
    %v1871 = vpack.c.b16 %v1815, %v1811
    %v1872 = vpack.c.b16 %v1820, %v1816
    %v1873 = vpack.c.b16 %v1821, %v1817
    %v1874 = vpack.c.b16 %v1822, %v1818
    %v1875 = vpack.c.b16 %v1823, %v1819
    %v1876 = vpack.c.b16 %v1828, %v1824
    %v1877 = vpack.c.b16 %v1829, %v1825
    %v1878 = vpack.c.b16 %v1830, %v1826
    %v1879 = vpack.c.b16 %v1831, %v1827
    %v1880 = vpack.c.b16 %v1836, %v1832
    %v1881 = vpack.c.b16 %v1837, %v1833
    %v1882 = vpack.c.b16 %v1838, %v1834
    %v1883 = vpack.c.b16 %v1839, %v1835
    %v1884 = vpack.c.b16 %v1844, %v1840
    %v1885 = vpack.c.b16 %v1845, %v1841
    %v1886 = vpack.c.b16 %v1846, %v1842
    %v1887 = vpack.c.b16 %v1847, %v1843
    %v1888 = vpack.c.b16 %v1852, %v1848
    %v1889 = vpack.c.b16 %v1853, %v1849
    %v1890 = vpack.c.b16 %v1854, %v1850
    %v1891 = vpack.c.b16 %v1855, %v1851
    %v1892 = vpack.c.b16 %v1860, %v1856
    %v1893 = vpack.c.b16 %v1861, %v1857
    %v1894 = vpack.c.b16 %v1862, %v1858
    %v1895 = vpack.c.b16 %v1863, %v1859
    %1928 = vmatprep.subr.bf16.mxu0 %v1893
    %1929 = vmatpush1.bf16.msra.mxu0 %v1892
    %1930 = vmatprep.subr.bf16.mxu0 %v1889
    %1931 = vmatpush1.bf16.msra.mxu0 %v1888
    %1932 = vmatprep.subr.bf16.mxu0 %v1885
    %1933 = vmatpush1.bf16.msra.mxu0 %v1884
    %1934 = vmatprep.subr.bf16.mxu0 %v1881
    %1935 = vmatpush1.bf16.msra.mxu0 %v1880
    %1936 = vmatprep.subr.bf16.mxu0 %v1877
    %1937 = vmatpush1.bf16.msra.mxu0 %v1876
    %1938 = vmatprep.subr.bf16.mxu0 %v1873
    %1939 = vmatpush1.bf16.msra.mxu0 %v1872
    %1940 = vmatprep.subr.bf16.mxu0 %v1869
    %1941 = vmatpush1.bf16.msra.mxu0 %v1868
    %1942 = vmatprep.subr.bf16.mxu0 %v1865
    %1943 = vmatpush1.bf16.msra.mxu0 %v1864
    %1944 = vmatprep.subr.bf16.mxu0 0
    %1945 = vmatpush2.bf16.msra.mxu0 0
    %1946 = vmatprep.subr.bf16.mxu0 0
    %1947 = vmatpush2.bf16.msra.mxu0 0
    %1948 = vmatprep.subr.bf16.mxu0 0
    %1949 = vmatpush2.bf16.msra.mxu0 0
    %1950 = vmatprep.subr.bf16.mxu0 0
    %1951 = vmatpush2.bf16.msra.mxu0 0
    %1952 = vmatprep.subr.bf16.mxu0 0
    %1953 = vmatpush2.bf16.msra.mxu0 0
    %1954 = vmatprep.subr.bf16.mxu0 0
    %1955 = vmatpush2.bf16.msra.mxu0 0
    %1956 = vmatprep.subr.bf16.mxu0 0
    %1957 = vmatpush2.bf16.msra.mxu0 0
    %1958 = vmatprep.subr.bf16.mxu0 0
    %1959 = vmatpush2.bf16.msra.mxu0 0
    %1960 = vmatprep.mubr.bf16.mxu0 0
    %1961 = vmatmul.mubr.bf16.gmra.mxu0 %v1728
    %v1962 = vpop.f32.mrf.mxu0
    %v1963 = vadd.f32 0.0, %v1962
    %v1964 = vpop.f32.mrf.mxu0
    %v1965 = vadd.f32 0.0, %v1964
    %v1966 = vpop.f32.mrf.mxu0
    %v1967 = vpop.f32.mrf.mxu0
    %1968 = vdwg.mxu0
    %1969 = vmatprep.subr.bf16.mxu0 %v1895
    %1970 = vmatpush1.bf16.msra.mxu0 %v1894
    %1971 = vmatprep.subr.bf16.mxu0 %v1891
    %1972 = vmatpush1.bf16.msra.mxu0 %v1890
    %1973 = vmatprep.subr.bf16.mxu0 %v1887
    %1974 = vmatpush1.bf16.msra.mxu0 %v1886
    %1975 = vmatprep.subr.bf16.mxu0 %v1883
    %1976 = vmatpush1.bf16.msra.mxu0 %v1882
    %1977 = vmatprep.subr.bf16.mxu0 %v1879
    %1978 = vmatpush1.bf16.msra.mxu0 %v1878
    %1979 = vmatprep.subr.bf16.mxu0 %v1875
    %1980 = vmatpush1.bf16.msra.mxu0 %v1874
    %1981 = vmatprep.subr.bf16.mxu0 %v1871
    %1982 = vmatpush1.bf16.msra.mxu0 %v1870
    %1983 = vmatprep.subr.bf16.mxu0 %v1867
    %1984 = vmatpush1.bf16.msra.mxu0 %v1866
    %1985 = vmatprep.subr.bf16.mxu0 0
    %1986 = vmatpush2.bf16.msra.mxu0 0
    %1987 = vmatprep.subr.bf16.mxu0 0
    %1988 = vmatpush2.bf16.msra.mxu0 0
    %1989 = vmatprep.subr.bf16.mxu0 0
    %1990 = vmatpush2.bf16.msra.mxu0 0
    %1991 = vmatprep.subr.bf16.mxu0 0
    %1992 = vmatpush2.bf16.msra.mxu0 0
    %1993 = vmatprep.subr.bf16.mxu0 0
    %1994 = vmatpush2.bf16.msra.mxu0 0
    %1995 = vmatprep.subr.bf16.mxu0 0
    %1996 = vmatpush2.bf16.msra.mxu0 0
    %1997 = vmatprep.subr.bf16.mxu0 0
    %1998 = vmatpush2.bf16.msra.mxu0 0
    %1999 = vmatprep.subr.bf16.mxu0 0
    %2000 = vmatpush2.bf16.msra.mxu0 0
    %2001 = vmatprep.mubr.bf16.mxu0 0
    %2002 = vmatmul.mubr.bf16.gmra.mxu0 %v1728
    %v2003 = vpop.f32.mrf.mxu0
    %v2004 = vadd.f32 0.0, %v2003
    %v2005 = vpop.f32.mrf.mxu0
    %v2006 = vadd.f32 0.0, %v2005
    %v2007 = vpop.f32.mrf.mxu0
    %v2008 = vpop.f32.mrf.mxu0
    %2009 = vdwg.mxu0
    %v2010 = vadd.f32 %v1732, %v1963
    %v2011 = vadd.f32 %v1733, %v1965
    %v2012 = vadd.f32 %v1734, %v2004
    %v2013 = vadd.f32 %v1735, %v2006
    %v2014 = vxor.u32 %v2010, 2147483648
    %v2015 = vmul.f32 %v2014, 1.442695
    %v2016 = vpow.pop %v2015
    %v2017 = vadd.f32 %v2016, 1.0
    %v2018 = vrcp.pop %v2017
    %v2019 = vmul.f32 1.0, %v2018
    %v2020 = vxor.u32 %v2011, 2147483648
    %v2021 = vmul.f32 %v2020, 1.442695
    %v2022 = vpow.pop %v2021
    %v2023 = vadd.f32 %v2022, 1.0
    %v2024 = vrcp.pop %v2023
    %v2025 = vmul.f32 1.0, %v2024
    %v2026 = vtanh.pop %v2012
    %v2027 = vxor.u32 %v2013, 2147483648
    %v2028 = vmul.f32 %v2027, 1.442695
    %v2029 = vpow.pop %v2028
    %v2030 = vadd.f32 %v2029, 1.0
    %v2031 = vrcp.pop %v2030
    %v2032 = vmul.f32 1.0, %v2031
    %v2033 = vmul.f32 %v2025, %v1725
    %v2034 = vmul.f32 %v2019, %v2026
    %v2035 = vadd.f32 %v2033, %v2034
    %v2036 = vtanh.pop %v2035
    %v2037 = vmul.f32 %v2032, %v2036
    %v2038 = vpack.c.bf16 %v2037, %v2037
    %s2039 = scalar_lea.vmem [#allocation11], 16
    %2040 = vst [vmem:[%s2039] sm:$0xf] %v2038
    %s2041 = scalar_lea.vmem [#allocation2], 160
    %v2042 = vld [vmem:[%s2041] sm:$0xff]
    %v2043 = vld [vmem:[%s2041 + $0x8] sm:$0xff]
    %v2044 = vld [vmem:[%s2041 + $0x10] sm:$0xff]
    %v2045 = vld [vmem:[%s2041 + $0x18] sm:$0xff]
    %v2046 = vld [vmem:[#allocation10] sm:$0xff]
    %v2047 = vld [vmem:[#allocation10 + $0x8] sm:$0xff]
    %v2048 = vld [vmem:[#allocation10 + $0x10] sm:$0xff]
    %v2049 = vld [vmem:[#allocation10 + $0x18] sm:$0xff]
    %v2050 = vld [vmem:[#allocation10 + $0x20] sm:$0xff]
    %v2051 = vld [vmem:[#allocation10 + $0x28] sm:$0xff]
    %v2052 = vld [vmem:[#allocation10 + $0x30] sm:$0xff]
    %v2053 = vld [vmem:[#allocation10 + $0x38] sm:$0xff]
    %v2054 = vld [vmem:[#allocation10 + $0x40] sm:$0xff]
    %v2055 = vld [vmem:[#allocation10 + $0x48] sm:$0xff]
    %v2056 = vld [vmem:[#allocation10 + $0x50] sm:$0xff]
    %v2057 = vld [vmem:[#allocation10 + $0x58] sm:$0xff]
    %v2058 = vld [vmem:[#allocation10 + $0x60] sm:$0xff]
    %v2059 = vld [vmem:[#allocation10 + $0x68] sm:$0xff]
    %v2060 = vld [vmem:[#allocation10 + $0x70] sm:$0xff]
    %v2061 = vld [vmem:[#allocation10 + $0x78] sm:$0xff]
    %v2062 = vld [vmem:[#allocation10 + $0x80] sm:$0xff]
    %v2063 = vld [vmem:[#allocation10 + $0x88] sm:$0xff]
    %v2064 = vld [vmem:[#allocation10 + $0x90] sm:$0xff]
    %v2065 = vld [vmem:[#allocation10 + $0x98] sm:$0xff]
    %v2066 = vld [vmem:[#allocation10 + $0xa0] sm:$0xff]
    %v2067 = vld [vmem:[#allocation10 + $0xa8] sm:$0xff]
    %v2068 = vld [vmem:[#allocation10 + $0xb0] sm:$0xff]
    %v2069 = vld [vmem:[#allocation10 + $0xb8] sm:$0xff]
    %v2070 = vld [vmem:[#allocation10 + $0xc0] sm:$0xff]
    %v2071 = vld [vmem:[#allocation10 + $0xc8] sm:$0xff]
    %v2072 = vld [vmem:[#allocation10 + $0xd0] sm:$0xff]
    %v2073 = vld [vmem:[#allocation10 + $0xd8] sm:$0xff]
    %v2074 = vld [vmem:[#allocation10 + $0xe0] sm:$0xff]
    %v2075 = vld [vmem:[#allocation10 + $0xe8] sm:$0xff]
    %v2076 = vld [vmem:[#allocation10 + $0xf0] sm:$0xff]
    %v2077 = vld [vmem:[#allocation10 + $0xf8] sm:$0xff]
    %v2110 = vunpack.c.l.b16 %v2046
    %v2111 = vunpack.c.h.b16 %v2046
    %v2112 = vunpack.c.l.b16 %v2047
    %v2113 = vunpack.c.h.b16 %v2047
    %v2114 = vunpack.c.l.b16 %v2048
    %v2115 = vunpack.c.h.b16 %v2048
    %v2116 = vunpack.c.l.b16 %v2049
    %v2117 = vunpack.c.h.b16 %v2049
    %v2118 = vunpack.c.l.b16 %v2050
    %v2119 = vunpack.c.h.b16 %v2050
    %v2120 = vunpack.c.l.b16 %v2051
    %v2121 = vunpack.c.h.b16 %v2051
    %v2122 = vunpack.c.l.b16 %v2052
    %v2123 = vunpack.c.h.b16 %v2052
    %v2124 = vunpack.c.l.b16 %v2053
    %v2125 = vunpack.c.h.b16 %v2053
    %v2126 = vunpack.c.l.b16 %v2054
    %v2127 = vunpack.c.h.b16 %v2054
    %v2128 = vunpack.c.l.b16 %v2055
    %v2129 = vunpack.c.h.b16 %v2055
    %v2130 = vunpack.c.l.b16 %v2056
    %v2131 = vunpack.c.h.b16 %v2056
    %v2132 = vunpack.c.l.b16 %v2057
    %v2133 = vunpack.c.h.b16 %v2057
    %v2134 = vunpack.c.l.b16 %v2058
    %v2135 = vunpack.c.h.b16 %v2058
    %v2136 = vunpack.c.l.b16 %v2059
    %v2137 = vunpack.c.h.b16 %v2059
    %v2138 = vunpack.c.l.b16 %v2060
    %v2139 = vunpack.c.h.b16 %v2060
    %v2140 = vunpack.c.l.b16 %v2061
    %v2141 = vunpack.c.h.b16 %v2061
    %v2142 = vunpack.c.l.b16 %v2062
    %v2143 = vunpack.c.h.b16 %v2062
    %v2144 = vunpack.c.l.b16 %v2063
    %v2145 = vunpack.c.h.b16 %v2063
    %v2146 = vunpack.c.l.b16 %v2064
    %v2147 = vunpack.c.h.b16 %v2064
    %v2148 = vunpack.c.l.b16 %v2065
    %v2149 = vunpack.c.h.b16 %v2065
    %v2150 = vunpack.c.l.b16 %v2066
    %v2151 = vunpack.c.h.b16 %v2066
    %v2152 = vunpack.c.l.b16 %v2067
    %v2153 = vunpack.c.h.b16 %v2067
    %v2154 = vunpack.c.l.b16 %v2068
    %v2155 = vunpack.c.h.b16 %v2068
    %v2156 = vunpack.c.l.b16 %v2069
    %v2157 = vunpack.c.h.b16 %v2069
    %v2158 = vunpack.c.l.b16 %v2070
    %v2159 = vunpack.c.h.b16 %v2070
    %v2160 = vunpack.c.l.b16 %v2071
    %v2161 = vunpack.c.h.b16 %v2071
    %v2162 = vunpack.c.l.b16 %v2072
    %v2163 = vunpack.c.h.b16 %v2072
    %v2164 = vunpack.c.l.b16 %v2073
    %v2165 = vunpack.c.h.b16 %v2073
    %v2166 = vunpack.c.l.b16 %v2074
    %v2167 = vunpack.c.h.b16 %v2074
    %v2168 = vunpack.c.l.b16 %v2075
    %v2169 = vunpack.c.h.b16 %v2075
    %v2170 = vunpack.c.l.b16 %v2076
    %v2171 = vunpack.c.h.b16 %v2076
    %v2172 = vunpack.c.l.b16 %v2077
    %v2173 = vunpack.c.h.b16 %v2077
    %v2174 = vpack.c.b16 %v2114, %v2110
    %v2175 = vpack.c.b16 %v2115, %v2111
    %v2176 = vpack.c.b16 %v2116, %v2112
    %v2177 = vpack.c.b16 %v2117, %v2113
    %v2178 = vpack.c.b16 %v2122, %v2118
    %v2179 = vpack.c.b16 %v2123, %v2119
    %v2180 = vpack.c.b16 %v2124, %v2120
    %v2181 = vpack.c.b16 %v2125, %v2121
    %v2182 = vpack.c.b16 %v2130, %v2126
    %v2183 = vpack.c.b16 %v2131, %v2127
    %v2184 = vpack.c.b16 %v2132, %v2128
    %v2185 = vpack.c.b16 %v2133, %v2129
    %v2186 = vpack.c.b16 %v2138, %v2134
    %v2187 = vpack.c.b16 %v2139, %v2135
    %v2188 = vpack.c.b16 %v2140, %v2136
    %v2189 = vpack.c.b16 %v2141, %v2137
    %v2190 = vpack.c.b16 %v2146, %v2142
    %v2191 = vpack.c.b16 %v2147, %v2143
    %v2192 = vpack.c.b16 %v2148, %v2144
    %v2193 = vpack.c.b16 %v2149, %v2145
    %v2194 = vpack.c.b16 %v2154, %v2150
    %v2195 = vpack.c.b16 %v2155, %v2151
    %v2196 = vpack.c.b16 %v2156, %v2152
    %v2197 = vpack.c.b16 %v2157, %v2153
    %v2198 = vpack.c.b16 %v2162, %v2158
    %v2199 = vpack.c.b16 %v2163, %v2159
    %v2200 = vpack.c.b16 %v2164, %v2160
    %v2201 = vpack.c.b16 %v2165, %v2161
    %v2202 = vpack.c.b16 %v2170, %v2166
    %v2203 = vpack.c.b16 %v2171, %v2167
    %v2204 = vpack.c.b16 %v2172, %v2168
    %v2205 = vpack.c.b16 %v2173, %v2169
    %2238 = vmatprep.subr.bf16.mxu0 %v2203
    %2239 = vmatpush1.bf16.msra.mxu0 %v2202
    %2240 = vmatprep.subr.bf16.mxu0 %v2199
    %2241 = vmatpush1.bf16.msra.mxu0 %v2198
    %2242 = vmatprep.subr.bf16.mxu0 %v2195
    %2243 = vmatpush1.bf16.msra.mxu0 %v2194
    %2244 = vmatprep.subr.bf16.mxu0 %v2191
    %2245 = vmatpush1.bf16.msra.mxu0 %v2190
    %2246 = vmatprep.subr.bf16.mxu0 %v2187
    %2247 = vmatpush1.bf16.msra.mxu0 %v2186
    %2248 = vmatprep.subr.bf16.mxu0 %v2183
    %2249 = vmatpush1.bf16.msra.mxu0 %v2182
    %2250 = vmatprep.subr.bf16.mxu0 %v2179
    %2251 = vmatpush1.bf16.msra.mxu0 %v2178
    %2252 = vmatprep.subr.bf16.mxu0 %v2175
    %2253 = vmatpush1.bf16.msra.mxu0 %v2174
    %2254 = vmatprep.subr.bf16.mxu0 0
    %2255 = vmatpush2.bf16.msra.mxu0 0
    %2256 = vmatprep.subr.bf16.mxu0 0
    %2257 = vmatpush2.bf16.msra.mxu0 0
    %2258 = vmatprep.subr.bf16.mxu0 0
    %2259 = vmatpush2.bf16.msra.mxu0 0
    %2260 = vmatprep.subr.bf16.mxu0 0
    %2261 = vmatpush2.bf16.msra.mxu0 0
    %2262 = vmatprep.subr.bf16.mxu0 0
    %2263 = vmatpush2.bf16.msra.mxu0 0
    %2264 = vmatprep.subr.bf16.mxu0 0
    %2265 = vmatpush2.bf16.msra.mxu0 0
    %2266 = vmatprep.subr.bf16.mxu0 0
    %2267 = vmatpush2.bf16.msra.mxu0 0
    %2268 = vmatprep.subr.bf16.mxu0 0
    %2269 = vmatpush2.bf16.msra.mxu0 0
    %2270 = vmatprep.mubr.bf16.mxu0 0
    %2271 = vmatmul.mubr.bf16.gmra.mxu0 %v2038
    %v2272 = vpop.f32.mrf.mxu0
    %v2273 = vadd.f32 0.0, %v2272
    %v2274 = vpop.f32.mrf.mxu0
    %v2275 = vadd.f32 0.0, %v2274
    %v2276 = vpop.f32.mrf.mxu0
    %v2277 = vpop.f32.mrf.mxu0
    %2278 = vdwg.mxu0
    %2279 = vmatprep.subr.bf16.mxu0 %v2205
    %2280 = vmatpush1.bf16.msra.mxu0 %v2204
    %2281 = vmatprep.subr.bf16.mxu0 %v2201
    %2282 = vmatpush1.bf16.msra.mxu0 %v2200
    %2283 = vmatprep.subr.bf16.mxu0 %v2197
    %2284 = vmatpush1.bf16.msra.mxu0 %v2196
    %2285 = vmatprep.subr.bf16.mxu0 %v2193
    %2286 = vmatpush1.bf16.msra.mxu0 %v2192
    %2287 = vmatprep.subr.bf16.mxu0 %v2189
    %2288 = vmatpush1.bf16.msra.mxu0 %v2188
    %2289 = vmatprep.subr.bf16.mxu0 %v2185
    %2290 = vmatpush1.bf16.msra.mxu0 %v2184
    %2291 = vmatprep.subr.bf16.mxu0 %v2181
    %2292 = vmatpush1.bf16.msra.mxu0 %v2180
    %2293 = vmatprep.subr.bf16.mxu0 %v2177
    %2294 = vmatpush1.bf16.msra.mxu0 %v2176
    %2295 = vmatprep.subr.bf16.mxu0 0
    %2296 = vmatpush2.bf16.msra.mxu0 0
    %2297 = vmatprep.subr.bf16.mxu0 0
    %2298 = vmatpush2.bf16.msra.mxu0 0
    %2299 = vmatprep.subr.bf16.mxu0 0
    %2300 = vmatpush2.bf16.msra.mxu0 0
    %2301 = vmatprep.subr.bf16.mxu0 0
    %2302 = vmatpush2.bf16.msra.mxu0 0
    %2303 = vmatprep.subr.bf16.mxu0 0
    %2304 = vmatpush2.bf16.msra.mxu0 0
    %2305 = vmatprep.subr.bf16.mxu0 0
    %2306 = vmatpush2.bf16.msra.mxu0 0
    %2307 = vmatprep.subr.bf16.mxu0 0
    %2308 = vmatpush2.bf16.msra.mxu0 0
    %2309 = vmatprep.subr.bf16.mxu0 0
    %2310 = vmatpush2.bf16.msra.mxu0 0
    %2311 = vmatprep.mubr.bf16.mxu0 0
    %2312 = vmatmul.mubr.bf16.gmra.mxu0 %v2038
    %v2313 = vpop.f32.mrf.mxu0
    %v2314 = vadd.f32 0.0, %v2313
    %v2315 = vpop.f32.mrf.mxu0
    %v2316 = vadd.f32 0.0, %v2315
    %v2317 = vpop.f32.mrf.mxu0
    %v2318 = vpop.f32.mrf.mxu0
    %2319 = vdwg.mxu0
    %v2320 = vadd.f32 %v2042, %v2273
    %v2321 = vadd.f32 %v2043, %v2275
    %v2322 = vadd.f32 %v2044, %v2314
    %v2323 = vadd.f32 %v2045, %v2316
    %v2324 = vxor.u32 %v2320, 2147483648
    %v2325 = vmul.f32 %v2324, 1.442695
    %v2326 = vpow.pop %v2325
    %v2327 = vadd.f32 %v2326, 1.0
    %v2328 = vrcp.pop %v2327
    %v2329 = vmul.f32 1.0, %v2328
    %v2330 = vxor.u32 %v2321, 2147483648
    %v2331 = vmul.f32 %v2330, 1.442695
    %v2332 = vpow.pop %v2331
    %v2333 = vadd.f32 %v2332, 1.0
    %v2334 = vrcp.pop %v2333
    %v2335 = vmul.f32 1.0, %v2334
    %v2336 = vtanh.pop %v2322
    %v2337 = vxor.u32 %v2323, 2147483648
    %v2338 = vmul.f32 %v2337, 1.442695
    %v2339 = vpow.pop %v2338
    %v2340 = vadd.f32 %v2339, 1.0
    %v2341 = vrcp.pop %v2340
    %v2342 = vmul.f32 1.0, %v2341
    %v2343 = vmul.f32 %v2335, %v2035
    %v2344 = vmul.f32 %v2329, %v2336
    %v2345 = vadd.f32 %v2343, %v2344
    %v2346 = vtanh.pop %v2345
    %v2347 = vmul.f32 %v2342, %v2346
    %v2348 = vpack.c.bf16 %v2347, %v2347
    %s2349 = scalar_lea.vmem [#allocation11], 20
    %2350 = vst [vmem:[%s2349] sm:$0xf] %v2348
    %s2351 = scalar_lea.vmem [#allocation2], 192
    %v2352 = vld [vmem:[%s2351] sm:$0xff]
    %v2353 = vld [vmem:[%s2351 + $0x8] sm:$0xff]
    %v2354 = vld [vmem:[%s2351 + $0x10] sm:$0xff]
    %v2355 = vld [vmem:[%s2351 + $0x18] sm:$0xff]
    %v2356 = vld [vmem:[#allocation10] sm:$0xff]
    %v2357 = vld [vmem:[#allocation10 + $0x8] sm:$0xff]
    %v2358 = vld [vmem:[#allocation10 + $0x10] sm:$0xff]
    %v2359 = vld [vmem:[#allocation10 + $0x18] sm:$0xff]
    %v2360 = vld [vmem:[#allocation10 + $0x20] sm:$0xff]
    %v2361 = vld [vmem:[#allocation10 + $0x28] sm:$0xff]
    %v2362 = vld [vmem:[#allocation10 + $0x30] sm:$0xff]
    %v2363 = vld [vmem:[#allocation10 + $0x38] sm:$0xff]
    %v2364 = vld [vmem:[#allocation10 + $0x40] sm:$0xff]
    %v2365 = vld [vmem:[#allocation10 + $0x48] sm:$0xff]
    %v2366 = vld [vmem:[#allocation10 + $0x50] sm:$0xff]
    %v2367 = vld [vmem:[#allocation10 + $0x58] sm:$0xff]
    %v2368 = vld [vmem:[#allocation10 + $0x60] sm:$0xff]
    %v2369 = vld [vmem:[#allocation10 + $0x68] sm:$0xff]
    %v2370 = vld [vmem:[#allocation10 + $0x70] sm:$0xff]
    %v2371 = vld [vmem:[#allocation10 + $0x78] sm:$0xff]
    %v2372 = vld [vmem:[#allocation10 + $0x80] sm:$0xff]
    %v2373 = vld [vmem:[#allocation10 + $0x88] sm:$0xff]
    %v2374 = vld [vmem:[#allocation10 + $0x90] sm:$0xff]
    %v2375 = vld [vmem:[#allocation10 + $0x98] sm:$0xff]
    %v2376 = vld [vmem:[#allocation10 + $0xa0] sm:$0xff]
    %v2377 = vld [vmem:[#allocation10 + $0xa8] sm:$0xff]
    %v2378 = vld [vmem:[#allocation10 + $0xb0] sm:$0xff]
    %v2379 = vld [vmem:[#allocation10 + $0xb8] sm:$0xff]
    %v2380 = vld [vmem:[#allocation10 + $0xc0] sm:$0xff]
    %v2381 = vld [vmem:[#allocation10 + $0xc8] sm:$0xff]
    %v2382 = vld [vmem:[#allocation10 + $0xd0] sm:$0xff]
    %v2383 = vld [vmem:[#allocation10 + $0xd8] sm:$0xff]
    %v2384 = vld [vmem:[#allocation10 + $0xe0] sm:$0xff]
    %v2385 = vld [vmem:[#allocation10 + $0xe8] sm:$0xff]
    %v2386 = vld [vmem:[#allocation10 + $0xf0] sm:$0xff]
    %v2387 = vld [vmem:[#allocation10 + $0xf8] sm:$0xff]
    %v2420 = vunpack.c.l.b16 %v2356
    %v2421 = vunpack.c.h.b16 %v2356
    %v2422 = vunpack.c.l.b16 %v2357
    %v2423 = vunpack.c.h.b16 %v2357
    %v2424 = vunpack.c.l.b16 %v2358
    %v2425 = vunpack.c.h.b16 %v2358
    %v2426 = vunpack.c.l.b16 %v2359
    %v2427 = vunpack.c.h.b16 %v2359
    %v2428 = vunpack.c.l.b16 %v2360
    %v2429 = vunpack.c.h.b16 %v2360
    %v2430 = vunpack.c.l.b16 %v2361
    %v2431 = vunpack.c.h.b16 %v2361
    %v2432 = vunpack.c.l.b16 %v2362
    %v2433 = vunpack.c.h.b16 %v2362
    %v2434 = vunpack.c.l.b16 %v2363
    %v2435 = vunpack.c.h.b16 %v2363
    %v2436 = vunpack.c.l.b16 %v2364
    %v2437 = vunpack.c.h.b16 %v2364
    %v2438 = vunpack.c.l.b16 %v2365
    %v2439 = vunpack.c.h.b16 %v2365
    %v2440 = vunpack.c.l.b16 %v2366
    %v2441 = vunpack.c.h.b16 %v2366
    %v2442 = vunpack.c.l.b16 %v2367
    %v2443 = vunpack.c.h.b16 %v2367
    %v2444 = vunpack.c.l.b16 %v2368
    %v2445 = vunpack.c.h.b16 %v2368
    %v2446 = vunpack.c.l.b16 %v2369
    %v2447 = vunpack.c.h.b16 %v2369
    %v2448 = vunpack.c.l.b16 %v2370
    %v2449 = vunpack.c.h.b16 %v2370
    %v2450 = vunpack.c.l.b16 %v2371
    %v2451 = vunpack.c.h.b16 %v2371
    %v2452 = vunpack.c.l.b16 %v2372
    %v2453 = vunpack.c.h.b16 %v2372
    %v2454 = vunpack.c.l.b16 %v2373
    %v2455 = vunpack.c.h.b16 %v2373
    %v2456 = vunpack.c.l.b16 %v2374
    %v2457 = vunpack.c.h.b16 %v2374
    %v2458 = vunpack.c.l.b16 %v2375
    %v2459 = vunpack.c.h.b16 %v2375
    %v2460 = vunpack.c.l.b16 %v2376
    %v2461 = vunpack.c.h.b16 %v2376
    %v2462 = vunpack.c.l.b16 %v2377
    %v2463 = vunpack.c.h.b16 %v2377
    %v2464 = vunpack.c.l.b16 %v2378
    %v2465 = vunpack.c.h.b16 %v2378
    %v2466 = vunpack.c.l.b16 %v2379
    %v2467 = vunpack.c.h.b16 %v2379
    %v2468 = vunpack.c.l.b16 %v2380
    %v2469 = vunpack.c.h.b16 %v2380
    %v2470 = vunpack.c.l.b16 %v2381
    %v2471 = vunpack.c.h.b16 %v2381
    %v2472 = vunpack.c.l.b16 %v2382
    %v2473 = vunpack.c.h.b16 %v2382
    %v2474 = vunpack.c.l.b16 %v2383
    %v2475 = vunpack.c.h.b16 %v2383
    %v2476 = vunpack.c.l.b16 %v2384
    %v2477 = vunpack.c.h.b16 %v2384
    %v2478 = vunpack.c.l.b16 %v2385
    %v2479 = vunpack.c.h.b16 %v2385
    %v2480 = vunpack.c.l.b16 %v2386
    %v2481 = vunpack.c.h.b16 %v2386
    %v2482 = vunpack.c.l.b16 %v2387
    %v2483 = vunpack.c.h.b16 %v2387
    %v2484 = vpack.c.b16 %v2424, %v2420
    %v2485 = vpack.c.b16 %v2425, %v2421
    %v2486 = vpack.c.b16 %v2426, %v2422
    %v2487 = vpack.c.b16 %v2427, %v2423
    %v2488 = vpack.c.b16 %v2432, %v2428
    %v2489 = vpack.c.b16 %v2433, %v2429
    %v2490 = vpack.c.b16 %v2434, %v2430
    %v2491 = vpack.c.b16 %v2435, %v2431
    %v2492 = vpack.c.b16 %v2440, %v2436
    %v2493 = vpack.c.b16 %v2441, %v2437
    %v2494 = vpack.c.b16 %v2442, %v2438
    %v2495 = vpack.c.b16 %v2443, %v2439
    %v2496 = vpack.c.b16 %v2448, %v2444
    %v2497 = vpack.c.b16 %v2449, %v2445
    %v2498 = vpack.c.b16 %v2450, %v2446
    %v2499 = vpack.c.b16 %v2451, %v2447
    %v2500 = vpack.c.b16 %v2456, %v2452
    %v2501 = vpack.c.b16 %v2457, %v2453
    %v2502 = vpack.c.b16 %v2458, %v2454
    %v2503 = vpack.c.b16 %v2459, %v2455
    %v2504 = vpack.c.b16 %v2464, %v2460
    %v2505 = vpack.c.b16 %v2465, %v2461
    %v2506 = vpack.c.b16 %v2466, %v2462
    %v2507 = vpack.c.b16 %v2467, %v2463
    %v2508 = vpack.c.b16 %v2472, %v2468
    %v2509 = vpack.c.b16 %v2473, %v2469
    %v2510 = vpack.c.b16 %v2474, %v2470
    %v2511 = vpack.c.b16 %v2475, %v2471
    %v2512 = vpack.c.b16 %v2480, %v2476
    %v2513 = vpack.c.b16 %v2481, %v2477
    %v2514 = vpack.c.b16 %v2482, %v2478
    %v2515 = vpack.c.b16 %v2483, %v2479
    %2548 = vmatprep.subr.bf16.mxu0 %v2513
    %2549 = vmatpush1.bf16.msra.mxu0 %v2512
    %2550 = vmatprep.subr.bf16.mxu0 %v2509
    %2551 = vmatpush1.bf16.msra.mxu0 %v2508
    %2552 = vmatprep.subr.bf16.mxu0 %v2505
    %2553 = vmatpush1.bf16.msra.mxu0 %v2504
    %2554 = vmatprep.subr.bf16.mxu0 %v2501
    %2555 = vmatpush1.bf16.msra.mxu0 %v2500
    %2556 = vmatprep.subr.bf16.mxu0 %v2497
    %2557 = vmatpush1.bf16.msra.mxu0 %v2496
    %2558 = vmatprep.subr.bf16.mxu0 %v2493
    %2559 = vmatpush1.bf16.msra.mxu0 %v2492
    %2560 = vmatprep.subr.bf16.mxu0 %v2489
    %2561 = vmatpush1.bf16.msra.mxu0 %v2488
    %2562 = vmatprep.subr.bf16.mxu0 %v2485
    %2563 = vmatpush1.bf16.msra.mxu0 %v2484
    %2564 = vmatprep.subr.bf16.mxu0 0
    %2565 = vmatpush2.bf16.msra.mxu0 0
    %2566 = vmatprep.subr.bf16.mxu0 0
    %2567 = vmatpush2.bf16.msra.mxu0 0
    %2568 = vmatprep.subr.bf16.mxu0 0
    %2569 = vmatpush2.bf16.msra.mxu0 0
    %2570 = vmatprep.subr.bf16.mxu0 0
    %2571 = vmatpush2.bf16.msra.mxu0 0
    %2572 = vmatprep.subr.bf16.mxu0 0
    %2573 = vmatpush2.bf16.msra.mxu0 0
    %2574 = vmatprep.subr.bf16.mxu0 0
    %2575 = vmatpush2.bf16.msra.mxu0 0
    %2576 = vmatprep.subr.bf16.mxu0 0
    %2577 = vmatpush2.bf16.msra.mxu0 0
    %2578 = vmatprep.subr.bf16.mxu0 0
    %2579 = vmatpush2.bf16.msra.mxu0 0
    %2580 = vmatprep.mubr.bf16.mxu0 0
    %2581 = vmatmul.mubr.bf16.gmra.mxu0 %v2348
    %v2582 = vpop.f32.mrf.mxu0
    %v2583 = vadd.f32 0.0, %v2582
    %v2584 = vpop.f32.mrf.mxu0
    %v2585 = vadd.f32 0.0, %v2584
    %v2586 = vpop.f32.mrf.mxu0
    %v2587 = vpop.f32.mrf.mxu0
    %2588 = vdwg.mxu0
    %2589 = vmatprep.subr.bf16.mxu0 %v2515
    %2590 = vmatpush1.bf16.msra.mxu0 %v2514
    %2591 = vmatprep.subr.bf16.mxu0 %v2511
    %2592 = vmatpush1.bf16.msra.mxu0 %v2510
    %2593 = vmatprep.subr.bf16.mxu0 %v2507
    %2594 = vmatpush1.bf16.msra.mxu0 %v2506
    %2595 = vmatprep.subr.bf16.mxu0 %v2503
    %2596 = vmatpush1.bf16.msra.mxu0 %v2502
    %2597 = vmatprep.subr.bf16.mxu0 %v2499
    %2598 = vmatpush1.bf16.msra.mxu0 %v2498
    %2599 = vmatprep.subr.bf16.mxu0 %v2495
    %2600 = vmatpush1.bf16.msra.mxu0 %v2494
    %2601 = vmatprep.subr.bf16.mxu0 %v2491
    %2602 = vmatpush1.bf16.msra.mxu0 %v2490
    %2603 = vmatprep.subr.bf16.mxu0 %v2487
    %2604 = vmatpush1.bf16.msra.mxu0 %v2486
    %2605 = vmatprep.subr.bf16.mxu0 0
    %2606 = vmatpush2.bf16.msra.mxu0 0
    %2607 = vmatprep.subr.bf16.mxu0 0
    %2608 = vmatpush2.bf16.msra.mxu0 0
    %2609 = vmatprep.subr.bf16.mxu0 0
    %2610 = vmatpush2.bf16.msra.mxu0 0
    %2611 = vmatprep.subr.bf16.mxu0 0
    %2612 = vmatpush2.bf16.msra.mxu0 0
    %2613 = vmatprep.subr.bf16.mxu0 0
    %2614 = vmatpush2.bf16.msra.mxu0 0
    %2615 = vmatprep.subr.bf16.mxu0 0
    %2616 = vmatpush2.bf16.msra.mxu0 0
    %2617 = vmatprep.subr.bf16.mxu0 0
    %2618 = vmatpush2.bf16.msra.mxu0 0
    %2619 = vmatprep.subr.bf16.mxu0 0
    %2620 = vmatpush2.bf16.msra.mxu0 0
    %2621 = vmatprep.mubr.bf16.mxu0 0
    %2622 = vmatmul.mubr.bf16.gmra.mxu0 %v2348
    %v2623 = vpop.f32.mrf.mxu0
    %v2624 = vadd.f32 0.0, %v2623
    %v2625 = vpop.f32.mrf.mxu0
    %v2626 = vadd.f32 0.0, %v2625
    %v2627 = vpop.f32.mrf.mxu0
    %v2628 = vpop.f32.mrf.mxu0
    %2629 = vdwg.mxu0
    %v2630 = vadd.f32 %v2352, %v2583
    %v2631 = vadd.f32 %v2353, %v2585
    %v2632 = vadd.f32 %v2354, %v2624
    %v2633 = vadd.f32 %v2355, %v2626
    %v2634 = vxor.u32 %v2630, 2147483648
    %v2635 = vmul.f32 %v2634, 1.442695
    %v2636 = vpow.pop %v2635
    %v2637 = vadd.f32 %v2636, 1.0
    %v2638 = vrcp.pop %v2637
    %v2639 = vmul.f32 1.0, %v2638
    %v2640 = vxor.u32 %v2631, 2147483648
    %v2641 = vmul.f32 %v2640, 1.442695
    %v2642 = vpow.pop %v2641
    %v2643 = vadd.f32 %v2642, 1.0
    %v2644 = vrcp.pop %v2643
    %v2645 = vmul.f32 1.0, %v2644
    %v2646 = vtanh.pop %v2632
    %v2647 = vxor.u32 %v2633, 2147483648
    %v2648 = vmul.f32 %v2647, 1.442695
    %v2649 = vpow.pop %v2648
    %v2650 = vadd.f32 %v2649, 1.0
    %v2651 = vrcp.pop %v2650
    %v2652 = vmul.f32 1.0, %v2651
    %v2653 = vmul.f32 %v2645, %v2345
    %v2654 = vmul.f32 %v2639, %v2646
    %v2655 = vadd.f32 %v2653, %v2654
    %v2656 = vtanh.pop %v2655
    %v2657 = vmul.f32 %v2652, %v2656
    %v2658 = vpack.c.bf16 %v2657, %v2657
    %s2659 = scalar_lea.vmem [#allocation11], 24
    %2660 = vst [vmem:[%s2659] sm:$0xf] %v2658
    %s2661 = scalar_lea.vmem [#allocation2], 224
    %v2662 = vld [vmem:[%s2661] sm:$0xff]
    %v2663 = vld [vmem:[%s2661 + $0x8] sm:$0xff]
    %v2664 = vld [vmem:[%s2661 + $0x10] sm:$0xff]
    %v2665 = vld [vmem:[%s2661 + $0x18] sm:$0xff]
    %v2666 = vld [vmem:[#allocation10] sm:$0xff]
    %v2667 = vld [vmem:[#allocation10 + $0x8] sm:$0xff]
    %v2668 = vld [vmem:[#allocation10 + $0x10] sm:$0xff]
    %v2669 = vld [vmem:[#allocation10 + $0x18] sm:$0xff]
    %v2670 = vld [vmem:[#allocation10 + $0x20] sm:$0xff]
    %v2671 = vld [vmem:[#allocation10 + $0x28] sm:$0xff]
    %v2672 = vld [vmem:[#allocation10 + $0x30] sm:$0xff]
    %v2673 = vld [vmem:[#allocation10 + $0x38] sm:$0xff]
    %v2674 = vld [vmem:[#allocation10 + $0x40] sm:$0xff]
    %v2675 = vld [vmem:[#allocation10 + $0x48] sm:$0xff]
    %v2676 = vld [vmem:[#allocation10 + $0x50] sm:$0xff]
    %v2677 = vld [vmem:[#allocation10 + $0x58] sm:$0xff]
    %v2678 = vld [vmem:[#allocation10 + $0x60] sm:$0xff]
    %v2679 = vld [vmem:[#allocation10 + $0x68] sm:$0xff]
    %v2680 = vld [vmem:[#allocation10 + $0x70] sm:$0xff]
    %v2681 = vld [vmem:[#allocation10 + $0x78] sm:$0xff]
    %v2682 = vld [vmem:[#allocation10 + $0x80] sm:$0xff]
    %v2683 = vld [vmem:[#allocation10 + $0x88] sm:$0xff]
    %v2684 = vld [vmem:[#allocation10 + $0x90] sm:$0xff]
    %v2685 = vld [vmem:[#allocation10 + $0x98] sm:$0xff]
    %v2686 = vld [vmem:[#allocation10 + $0xa0] sm:$0xff]
    %v2687 = vld [vmem:[#allocation10 + $0xa8] sm:$0xff]
    %v2688 = vld [vmem:[#allocation10 + $0xb0] sm:$0xff]
    %v2689 = vld [vmem:[#allocation10 + $0xb8] sm:$0xff]
    %v2690 = vld [vmem:[#allocation10 + $0xc0] sm:$0xff]
    %v2691 = vld [vmem:[#allocation10 + $0xc8] sm:$0xff]
    %v2692 = vld [vmem:[#allocation10 + $0xd0] sm:$0xff]
    %v2693 = vld [vmem:[#allocation10 + $0xd8] sm:$0xff]
    %v2694 = vld [vmem:[#allocation10 + $0xe0] sm:$0xff]
    %v2695 = vld [vmem:[#allocation10 + $0xe8] sm:$0xff]
    %v2696 = vld [vmem:[#allocation10 + $0xf0] sm:$0xff]
    %v2697 = vld [vmem:[#allocation10 + $0xf8] sm:$0xff]
    %v2730 = vunpack.c.l.b16 %v2666
    %v2731 = vunpack.c.h.b16 %v2666
    %v2732 = vunpack.c.l.b16 %v2667
    %v2733 = vunpack.c.h.b16 %v2667
    %v2734 = vunpack.c.l.b16 %v2668
    %v2735 = vunpack.c.h.b16 %v2668
    %v2736 = vunpack.c.l.b16 %v2669
    %v2737 = vunpack.c.h.b16 %v2669
    %v2738 = vunpack.c.l.b16 %v2670
    %v2739 = vunpack.c.h.b16 %v2670
    %v2740 = vunpack.c.l.b16 %v2671
    %v2741 = vunpack.c.h.b16 %v2671
    %v2742 = vunpack.c.l.b16 %v2672
    %v2743 = vunpack.c.h.b16 %v2672
    %v2744 = vunpack.c.l.b16 %v2673
    %v2745 = vunpack.c.h.b16 %v2673
    %v2746 = vunpack.c.l.b16 %v2674
    %v2747 = vunpack.c.h.b16 %v2674
    %v2748 = vunpack.c.l.b16 %v2675
    %v2749 = vunpack.c.h.b16 %v2675
    %v2750 = vunpack.c.l.b16 %v2676
    %v2751 = vunpack.c.h.b16 %v2676
    %v2752 = vunpack.c.l.b16 %v2677
    %v2753 = vunpack.c.h.b16 %v2677
    %v2754 = vunpack.c.l.b16 %v2678
    %v2755 = vunpack.c.h.b16 %v2678
    %v2756 = vunpack.c.l.b16 %v2679
    %v2757 = vunpack.c.h.b16 %v2679
    %v2758 = vunpack.c.l.b16 %v2680
    %v2759 = vunpack.c.h.b16 %v2680
    %v2760 = vunpack.c.l.b16 %v2681
    %v2761 = vunpack.c.h.b16 %v2681
    %v2762 = vunpack.c.l.b16 %v2682
    %v2763 = vunpack.c.h.b16 %v2682
    %v2764 = vunpack.c.l.b16 %v2683
    %v2765 = vunpack.c.h.b16 %v2683
    %v2766 = vunpack.c.l.b16 %v2684
    %v2767 = vunpack.c.h.b16 %v2684
    %v2768 = vunpack.c.l.b16 %v2685
    %v2769 = vunpack.c.h.b16 %v2685
    %v2770 = vunpack.c.l.b16 %v2686
    %v2771 = vunpack.c.h.b16 %v2686
    %v2772 = vunpack.c.l.b16 %v2687
    %v2773 = vunpack.c.h.b16 %v2687
    %v2774 = vunpack.c.l.b16 %v2688
    %v2775 = vunpack.c.h.b16 %v2688
    %v2776 = vunpack.c.l.b16 %v2689
    %v2777 = vunpack.c.h.b16 %v2689
    %v2778 = vunpack.c.l.b16 %v2690
    %v2779 = vunpack.c.h.b16 %v2690
    %v2780 = vunpack.c.l.b16 %v2691
    %v2781 = vunpack.c.h.b16 %v2691
    %v2782 = vunpack.c.l.b16 %v2692
    %v2783 = vunpack.c.h.b16 %v2692
    %v2784 = vunpack.c.l.b16 %v2693
    %v2785 = vunpack.c.h.b16 %v2693
    %v2786 = vunpack.c.l.b16 %v2694
    %v2787 = vunpack.c.h.b16 %v2694
    %v2788 = vunpack.c.l.b16 %v2695
    %v2789 = vunpack.c.h.b16 %v2695
    %v2790 = vunpack.c.l.b16 %v2696
    %v2791 = vunpack.c.h.b16 %v2696
    %v2792 = vunpack.c.l.b16 %v2697
    %v2793 = vunpack.c.h.b16 %v2697
    %v2794 = vpack.c.b16 %v2734, %v2730
    %v2795 = vpack.c.b16 %v2735, %v2731
    %v2796 = vpack.c.b16 %v2736, %v2732
    %v2797 = vpack.c.b16 %v2737, %v2733
    %v2798 = vpack.c.b16 %v2742, %v2738
    %v2799 = vpack.c.b16 %v2743, %v2739
    %v2800 = vpack.c.b16 %v2744, %v2740
    %v2801 = vpack.c.b16 %v2745, %v2741
    %v2802 = vpack.c.b16 %v2750, %v2746
    %v2803 = vpack.c.b16 %v2751, %v2747
    %v2804 = vpack.c.b16 %v2752, %v2748
    %v2805 = vpack.c.b16 %v2753, %v2749
    %v2806 = vpack.c.b16 %v2758, %v2754
    %v2807 = vpack.c.b16 %v2759, %v2755
    %v2808 = vpack.c.b16 %v2760, %v2756
    %v2809 = vpack.c.b16 %v2761, %v2757
    %v2810 = vpack.c.b16 %v2766, %v2762
    %v2811 = vpack.c.b16 %v2767, %v2763
    %v2812 = vpack.c.b16 %v2768, %v2764
    %v2813 = vpack.c.b16 %v2769, %v2765
    %v2814 = vpack.c.b16 %v2774, %v2770
    %v2815 = vpack.c.b16 %v2775, %v2771
    %v2816 = vpack.c.b16 %v2776, %v2772
    %v2817 = vpack.c.b16 %v2777, %v2773
    %v2818 = vpack.c.b16 %v2782, %v2778
    %v2819 = vpack.c.b16 %v2783, %v2779
    %v2820 = vpack.c.b16 %v2784, %v2780
    %v2821 = vpack.c.b16 %v2785, %v2781
    %v2822 = vpack.c.b16 %v2790, %v2786
    %v2823 = vpack.c.b16 %v2791, %v2787
    %v2824 = vpack.c.b16 %v2792, %v2788
    %v2825 = vpack.c.b16 %v2793, %v2789
    %2858 = vmatprep.subr.bf16.mxu0 %v2823
    %2859 = vmatpush1.bf16.msra.mxu0 %v2822
    %2860 = vmatprep.subr.bf16.mxu0 %v2819
    %2861 = vmatpush1.bf16.msra.mxu0 %v2818
    %2862 = vmatprep.subr.bf16.mxu0 %v2815
    %2863 = vmatpush1.bf16.msra.mxu0 %v2814
    %2864 = vmatprep.subr.bf16.mxu0 %v2811
    %2865 = vmatpush1.bf16.msra.mxu0 %v2810
    %2866 = vmatprep.subr.bf16.mxu0 %v2807
    %2867 = vmatpush1.bf16.msra.mxu0 %v2806
    %2868 = vmatprep.subr.bf16.mxu0 %v2803
    %2869 = vmatpush1.bf16.msra.mxu0 %v2802
    %2870 = vmatprep.subr.bf16.mxu0 %v2799
    %2871 = vmatpush1.bf16.msra.mxu0 %v2798
    %2872 = vmatprep.subr.bf16.mxu0 %v2795
    %2873 = vmatpush1.bf16.msra.mxu0 %v2794
    %2874 = vmatprep.subr.bf16.mxu0 0
    %2875 = vmatpush2.bf16.msra.mxu0 0
    %2876 = vmatprep.subr.bf16.mxu0 0
    %2877 = vmatpush2.bf16.msra.mxu0 0
    %2878 = vmatprep.subr.bf16.mxu0 0
    %2879 = vmatpush2.bf16.msra.mxu0 0
    %2880 = vmatprep.subr.bf16.mxu0 0
    %2881 = vmatpush2.bf16.msra.mxu0 0
    %2882 = vmatprep.subr.bf16.mxu0 0
    %2883 = vmatpush2.bf16.msra.mxu0 0
    %2884 = vmatprep.subr.bf16.mxu0 0
    %2885 = vmatpush2.bf16.msra.mxu0 0
    %2886 = vmatprep.subr.bf16.mxu0 0
    %2887 = vmatpush2.bf16.msra.mxu0 0
    %2888 = vmatprep.subr.bf16.mxu0 0
    %2889 = vmatpush2.bf16.msra.mxu0 0
    %2890 = vmatprep.mubr.bf16.mxu0 0
    %2891 = vmatmul.mubr.bf16.gmra.mxu0 %v2658
    %v2892 = vpop.f32.mrf.mxu0
    %v2893 = vadd.f32 0.0, %v2892
    %v2894 = vpop.f32.mrf.mxu0
    %v2895 = vadd.f32 0.0, %v2894
    %v2896 = vpop.f32.mrf.mxu0
    %v2897 = vpop.f32.mrf.mxu0
    %2898 = vdwg.mxu0
    %2899 = vmatprep.subr.bf16.mxu0 %v2825
    %2900 = vmatpush1.bf16.msra.mxu0 %v2824
    %2901 = vmatprep.subr.bf16.mxu0 %v2821
    %2902 = vmatpush1.bf16.msra.mxu0 %v2820
    %2903 = vmatprep.subr.bf16.mxu0 %v2817
    %2904 = vmatpush1.bf16.msra.mxu0 %v2816
    %2905 = vmatprep.subr.bf16.mxu0 %v2813
    %2906 = vmatpush1.bf16.msra.mxu0 %v2812
    %2907 = vmatprep.subr.bf16.mxu0 %v2809
    %2908 = vmatpush1.bf16.msra.mxu0 %v2808
    %2909 = vmatprep.subr.bf16.mxu0 %v2805
    %2910 = vmatpush1.bf16.msra.mxu0 %v2804
    %2911 = vmatprep.subr.bf16.mxu0 %v2801
    %2912 = vmatpush1.bf16.msra.mxu0 %v2800
    %2913 = vmatprep.subr.bf16.mxu0 %v2797
    %2914 = vmatpush1.bf16.msra.mxu0 %v2796
    %2915 = vmatprep.subr.bf16.mxu0 0
    %2916 = vmatpush2.bf16.msra.mxu0 0
    %2917 = vmatprep.subr.bf16.mxu0 0
    %2918 = vmatpush2.bf16.msra.mxu0 0
    %2919 = vmatprep.subr.bf16.mxu0 0
    %2920 = vmatpush2.bf16.msra.mxu0 0
    %2921 = vmatprep.subr.bf16.mxu0 0
    %2922 = vmatpush2.bf16.msra.mxu0 0
    %2923 = vmatprep.subr.bf16.mxu0 0
    %2924 = vmatpush2.bf16.msra.mxu0 0
    %2925 = vmatprep.subr.bf16.mxu0 0
    %2926 = vmatpush2.bf16.msra.mxu0 0
    %2927 = vmatprep.subr.bf16.mxu0 0
    %2928 = vmatpush2.bf16.msra.mxu0 0
    %2929 = vmatprep.subr.bf16.mxu0 0
    %2930 = vmatpush2.bf16.msra.mxu0 0
    %2931 = vmatprep.mubr.bf16.mxu0 0
    %2932 = vmatmul.mubr.bf16.gmra.mxu0 %v2658
    %v2933 = vpop.f32.mrf.mxu0
    %v2934 = vadd.f32 0.0, %v2933
    %v2935 = vpop.f32.mrf.mxu0
    %v2936 = vadd.f32 0.0, %v2935
    %v2937 = vpop.f32.mrf.mxu0
    %v2938 = vpop.f32.mrf.mxu0
    %2939 = vdwg.mxu0
    %v2940 = vadd.f32 %v2662, %v2893
    %v2941 = vadd.f32 %v2663, %v2895
    %v2942 = vadd.f32 %v2664, %v2934
    %v2943 = vadd.f32 %v2665, %v2936
    %v2944 = vxor.u32 %v2940, 2147483648
    %v2945 = vmul.f32 %v2944, 1.442695
    %v2946 = vpow.pop %v2945
    %v2947 = vadd.f32 %v2946, 1.0
    %v2948 = vrcp.pop %v2947
    %v2949 = vmul.f32 1.0, %v2948
    %v2950 = vxor.u32 %v2941, 2147483648
    %v2951 = vmul.f32 %v2950, 1.442695
    %v2952 = vpow.pop %v2951
    %v2953 = vadd.f32 %v2952, 1.0
    %v2954 = vrcp.pop %v2953
    %v2955 = vmul.f32 1.0, %v2954
    %v2956 = vtanh.pop %v2942
    %v2957 = vxor.u32 %v2943, 2147483648
    %v2958 = vmul.f32 %v2957, 1.442695
    %v2959 = vpow.pop %v2958
    %v2960 = vadd.f32 %v2959, 1.0
    %v2961 = vrcp.pop %v2960
    %v2962 = vmul.f32 1.0, %v2961
    %v2963 = vmul.f32 %v2955, %v2655
    %v2964 = vmul.f32 %v2949, %v2956
    %v2965 = vadd.f32 %v2963, %v2964
    %v2966 = vtanh.pop %v2965
    %v2967 = vmul.f32 %v2962, %v2966
    %v2968 = vpack.c.bf16 %v2967, %v2967
    %s2969 = scalar_lea.vmem [#allocation11], 28
    %2970 = vst [vmem:[%s2969] sm:$0xf] %v2968
    %2971 = vst [vmem:[#allocation3] sm:$0xff] %v2967
    %2972 = vst [vmem:[#allocation4] sm:$0xff] %v2965
    // Predicated region
    $region34: #{tpu_custom_call.1} parent=1 // pred_check
      _
    $region35: #{tpu_custom_call.1} parent=1 // pred_check_branch
      %2974 = sbr.rel (0) target = $region37
    $region36: #{tpu_custom_call.1} parent=1 // pred_region
      %s2976 = ssub.s32 512, 512
      %2977 = vsyncadd [#allocation7], %s2976
      %s2978 = sshll.u32 [#allocation11], 4
      %s2979 = int_to_ptr.vmem [resolvable:$true] %s2978
      %2984 = dma.vmem_to_hbm [thread:$0]  %s2979, 512, %s4, [#allocation7], 64, 64, 4
    $region37: #{tpu_custom_call.1} parent=1 // pred_fallthru
      _
    // Predicated region
    $region38: #{tpu_custom_call.1} parent=1 // pred_check
      _
    $region39: #{tpu_custom_call.1} parent=1 // pred_check_branch
      %2986 = sbr.rel (0) target = $region41
    $region40: #{tpu_custom_call.1} parent=1 // pred_region
      %2987 = dma.done [#allocation7], 512
    $region41: #{tpu_custom_call.1} parent=1 // pred_fallthru
      _
    %2988 = vsyncpa [#allocation6], 1
    %2989 = vsyncpa [#allocation9], 1
    %2990 = vsyncpa [#allocation7], 1

</llo_original>
